<compile_context>
chip_gen: v6e
topology: v6e:2x2x1
jax: 0.10.0
libtpu: 0.0.40
codegen_flags: <defaults>
</compile_context>

<pallas_src>
import functools

import jax
import jax.numpy as jnp
from jax import lax
from jax.experimental import pallas as pl
from jax.experimental.pallas import tpu as pltpu

CP = 128                        # padded channel width (lane dimension)
KS = (3, 5, 7, 7, 14)           # kernel sizes of conv1..conv5 (conv2 stride 2)
COUT_FINAL = 80                 # real output channels of conv5


def _round8(n):
    return (n + 7) // 8 * 8


def _decoder_kernel(x_ref, w_ref, b_ref, sel_ref, o_ref, *, rows, bt):
    """All 5 conv layers fused; activations stay resident in VMEM/vregs."""
    C1, C2F, C2, C3, C4, C5 = rows

    # Hoist resident operands out of the per-batch loop (loaded once per step).
    w_slabs, off = [], 0
    for k in KS:
        w_slabs.append(w_ref[off:off + k * CP, :])           # (k*CP, CP) bf16
        off += k * CP
    ball = b_ref[...]                                         # (8, CP) f32
    biases = [lax.slice(ball, (i, 0), (i + 1, CP)) for i in range(5)]
    sel = sel_ref[...]                                        # (C2, C2F) bf16

    def conv(h, li, rows_out, out_dtype=jnp.bfloat16):
        """Valid stride-1 conv as a single im2col matmul."""
        k = KS[li]
        w = w_slabs[li]
        hb = h.astype(w.dtype)                                # one cast / layer
        taps = [lax.slice(hb, (t, 0), (t + rows_out, CP)) for t in range(k)]
        patches = jnp.concatenate(taps, axis=1)               # (rows_out, k*CP)
        acc = jnp.dot(patches, w, preferred_element_type=jnp.float32)
        return (acc + biases[li]).astype(out_dtype)

    for bi in range(bt):                                      # static unroll
        x = x_ref[bi]                                         # (R0, CP) bf16
        h1 = conv(x, 0, C1)                                   # conv1 k=3
        h2f = conv(h1, 1, C2F)                                # conv2 k=5 @ s=1
        # stride-2 decimation: precomputed 0/1 bf16 selection matmul
        h2 = jnp.dot(sel, h2f, preferred_element_type=jnp.float32)
        h3 = conv(h2, 2, C3)                                  # conv3 k=7
        h4 = conv(h3, 3, C4)                                  # conv4 k=7
        h5 = conv(h4, 4, C5, out_dtype=o_ref.dtype)           # conv5 k=14
        o_ref[bi] = h5


def prepare_params(params):
    """One-time prep: torch (Cout,Cin,K) weights -> one fused bf16 weight slab
    (sum(K)*CP, CP) plus one (8, CP) f32 bias block."""
    w_blocks, b_rows = [], []
    for w, b, _s in params:
        cout, cin, k = w.shape
        wt = jnp.transpose(w, (2, 1, 0))                      # (K, Cin, Cout)
        wt = jnp.pad(wt, ((0, 0), (0, CP - cin), (0, CP - cout)))
        w_blocks.append(wt.reshape(k * CP, CP))
        b_rows.append(jnp.pad(b, (0, CP - cout)))
    w_all = jnp.concatenate(w_blocks, axis=0).astype(jnp.bfloat16)
    b_all = jnp.stack(b_rows, axis=0).astype(jnp.float32)     # (5, CP)
    b_all = jnp.pad(b_all, ((0, 8 - b_all.shape[0]), (0, 0))) # (8, CP)
    return w_all, b_all


def _pick_bt(n):
    """Largest divisor of n that is <= min(8, n//2): batches per grid step,
    keeping the outer grid >= 2 so both v7x TensorCores stay busy."""
    cap = min(8, max(1, n // 2))
    for bt in range(cap, 0, -1):
        if n % bt == 0:
            return bt
    return 1


@jax.jit
def decoder_forward(x_ncw, w_all, b_all):
    """x_ncw: (N, 100, L) torch NCW layout. Returns (N, 80, L_out)."""
    N, cin, L = x_ncw.shape
    # True valid-conv lengths (as the torch module computes them).
    L1 = L - 2
    L2 = (L1 - 5) // 2 + 1
    L3 = L2 - 6
    L4 = L3 - 6
    L5 = L4 - 13
    # 8-aligned padded row chain, derived back-to-front so every in-kernel
    # slice is in-bounds and every intermediate is a clean (8,128) tile.
    C5 = _round8(L5)
    C4 = _round8(C5 + 13)
    C3 = _round8(C4 + 6)
    C2 = _round8(C3 + 6)             # rows of h2 (after stride-2 decimation)
    C2F = _round8(2 * C2 - 1)        # stride-1 conv2 rows feeding decimation
    C1 = _round8(C2F + 4)
    R0 = _round8(max(C1 + 2, L))

    bt = _pick_bt(N)

    # NCW -> NLC, cast to bf16 (halves HBM->VMEM DMA), pad rows + channels.
    x = jnp.transpose(x_ncw, (0, 2, 1)).astype(jnp.bfloat16)
    x = jnp.pad(x, ((0, 0), (0, R0 - L), (0, CP - cin)))

    # 0/1 stride-2 selection matrix (sel[j, 2j] = 1), built once per call.
    sel = (jnp.arange(C2F)[None, :] == 2 * jnp.arange(C2)[:, None])
    sel = sel.astype(jnp.bfloat16)

    flops = 2 * N * (CP * CP * (3 * C1 + 5 * C2F + 7 * C3 + 7 * C4 + 14 * C5)
                     + C2 * C2F * CP)
    bytes_accessed = (N * R0 * CP * 2 + int(w_all.size) * 2
                      + int(b_all.size) * 4 + C2 * C2F * 2 + N * C5 * CP * 4)

    kernel = functools.partial(
        _decoder_kernel, rows=(C1, C2F, C2, C3, C4, C5), bt=bt)

    out = pl.pallas_call(
        kernel,
        out_shape=jax.ShapeDtypeStruct((N, C5, CP), jnp.float32),
        grid=(N // bt,),
        in_specs=[
            pl.BlockSpec((bt, R0, CP), lambda n: (n, 0, 0)),   # activations
            pl.BlockSpec(w_all.shape, lambda n: (0, 0)),       # fused weights
            pl.BlockSpec(b_all.shape, lambda n: (0, 0)),       # fused biases
            pl.BlockSpec((C2, C2F), lambda n: (0, 0)),         # sel matrix
        ],
        out_specs=pl.BlockSpec((bt, C5, CP), lambda n: (n, 0, 0)),
        compiler_params=pltpu.CompilerParams(
            dimension_semantics=("parallel",)),                # both TCs on v7x
        cost_estimate=pl.CostEstimate(
            flops=flops, transcendentals=0, bytes_accessed=bytes_accessed),
    )(x, w_all, b_all, sel)

    # NLC -> NCW; drop padded garbage rows / channels.
    return jnp.transpose(out[:, :L5, :COUT_FINAL], (0, 2, 1))


if __name__ == "__main__":
    key = jax.random.PRNGKey(0)
    N, L = 2, 64   # L chosen so the final conv (k=14) still has length >= 1

    # (cin, cout, kernel_size, stride) per layer, matching Decoder.__init__
    layer_specs = [
        (100, 100, 3, 1),
        (100, 100, 5, 2),
        (100, 100, 7, 1),
        (100, 100, 7, 1),
        (100, 80, 14, 1),
    ]

    params = []
    for cin, cout, k, s in layer_specs:
        key, kw, kb = jax.random.split(key, 3)
        bound = 1.0 / (cin * k) ** 0.5   # torch Conv1d default uniform bound
        w = jax.random.uniform(kw, (cout, cin, k), jnp.float32, -bound, bound)
        b = jax.random.uniform(kb, (cout,), jnp.float32, -bound, bound)
        params.append((w, b, s))

    key, kx = jax.random.split(key)
    x = jax.random.normal(kx, (N, 100, L), jnp.float32)   # torch NCW input

    w_all, b_all = prepare_params(params)    # one-time weight prep (hoisted)
    y = decoder_forward(x, w_all, b_all)
    y = jax.block_until_ready(y)

    # Pure-JAX f32 reference (same semantics as torch Conv1d, padding=0)
    y_ref = x
    for w, b, s in params:
        y_ref = lax.conv_general_dilated(
            y_ref, w, window_strides=(s,), padding="VALID",
            dimension_numbers=("NCH", "OIH", "NCH")) + b[None, :, None]
    y_ref = jax.block_until_ready(y_ref)

    assert y.shape == y_ref.shape, (y.shape, y_ref.shape)
    # bf16 MXU operands / bf16 activations with f32 accumulation: allow small
    # relative error.
    err = float(jnp.max(jnp.abs(y - y_ref)))
    scale = float(jnp.max(jnp.abs(y_ref)))
    assert err <= 0.05 * scale + 1e-5, (err, scale)
    print("KERNEL_OK")
</pallas_src>

<mosaic_0001>
module attributes {stable_mosaic.version = 11 : i64} {
  func.func @_decoder_kernel(%arg0: i32, %arg1: memref<1x96x128xbf16, #tpu.memory_space<vmem>>, %arg2: memref<4608x128xbf16, #tpu.memory_space<vmem>>, %arg3: memref<8x128xf32, #tpu.memory_space<vmem>>, %arg4: memref<40x80xbf16, #tpu.memory_space<vmem>>, %arg5: memref<1x8x128xf32, #tpu.memory_space<vmem>>) attributes {dimension_semantics = [#tpu.dimension_semantics<parallel>], iteration_bounds = array<i64: 2>, scalar_prefetch = 0 : i64, scratch_operands = 0 : i64, tpu.core_type = #tpu.core_type<tc>, window_params = [{transform_indices = @transform_0, window_bounds = array<i64: 1, 96, 128>}, {pipeline_mode = #tpu.pipeline_mode<synchronous>, transform_indices = @transform_1, window_bounds = array<i64: 4608, 128>}, {pipeline_mode = #tpu.pipeline_mode<synchronous>, transform_indices = @transform_2, window_bounds = array<i64: 8, 128>}, {pipeline_mode = #tpu.pipeline_mode<synchronous>, transform_indices = @transform_3, window_bounds = array<i64: 40, 80>}, {transform_indices = @transform_4, window_bounds = array<i64: 1, 8, 128>}]} {
    %c0 = arith.constant 0 : index
    %c0_0 = arith.constant 0 : index
    %0 = vector.load %arg2[%c0, %c0_0] : memref<4608x128xbf16, #tpu.memory_space<vmem>>, vector<384x128xbf16>
    %c384 = arith.constant 384 : index
    %c0_1 = arith.constant 0 : index
    %1 = vector.load %arg2[%c384, %c0_1] : memref<4608x128xbf16, #tpu.memory_space<vmem>>, vector<640x128xbf16>
    %c1024 = arith.constant 1024 : index
    %c0_2 = arith.constant 0 : index
    %2 = vector.load %arg2[%c1024, %c0_2] : memref<4608x128xbf16, #tpu.memory_space<vmem>>, vector<896x128xbf16>
    %c1920 = arith.constant 1920 : index
    %c0_3 = arith.constant 0 : index
    %3 = vector.load %arg2[%c1920, %c0_3] : memref<4608x128xbf16, #tpu.memory_space<vmem>>, vector<896x128xbf16>
    %c2816 = arith.constant 2816 : index
    %c0_4 = arith.constant 0 : index
    %4 = vector.load %arg2[%c2816, %c0_4] : memref<4608x128xbf16, #tpu.memory_space<vmem>>, vector<1792x128xbf16>
    %c0_5 = arith.constant 0 : index
    %c0_6 = arith.constant 0 : index
    %5 = vector.load %arg3[%c0_5, %c0_6] : memref<8x128xf32, #tpu.memory_space<vmem>>, vector<8x128xf32>
    %6 = vector.extract_strided_slice %5 {offsets = [0, 0], sizes = [1, 128], strides = [1, 1]} : vector<8x128xf32> to vector<1x128xf32>
    %7 = vector.extract_strided_slice %5 {offsets = [1, 0], sizes = [1, 128], strides = [1, 1]} : vector<8x128xf32> to vector<1x128xf32>
    %8 = vector.extract_strided_slice %5 {offsets = [2, 0], sizes = [1, 128], strides = [1, 1]} : vector<8x128xf32> to vector<1x128xf32>
    %9 = vector.extract_strided_slice %5 {offsets = [3, 0], sizes = [1, 128], strides = [1, 1]} : vector<8x128xf32> to vector<1x128xf32>
    %10 = vector.extract_strided_slice %5 {offsets = [4, 0], sizes = [1, 128], strides = [1, 1]} : vector<8x128xf32> to vector<1x128xf32>
    %c0_7 = arith.constant 0 : index
    %c0_8 = arith.constant 0 : index
    %11 = vector.load %arg4[%c0_7, %c0_8] : memref<40x80xbf16, #tpu.memory_space<vmem>>, vector<40x80xbf16>
    %c0_9 = arith.constant 0 : index
    %c0_10 = arith.constant 0 : index
    %c0_11 = arith.constant 0 : index
    %12 = vector.load %arg1[%c0_9, %c0_10, %c0_11] : memref<1x96x128xbf16, #tpu.memory_space<vmem>>, vector<1x96x128xbf16>
    %13 = vector.shape_cast %12 : vector<1x96x128xbf16> to vector<96x128xbf16>
    %14 = vector.extract_strided_slice %13 {offsets = [0, 0], sizes = [88, 128], strides = [1, 1]} : vector<96x128xbf16> to vector<88x128xbf16>
    %15 = vector.extract_strided_slice %13 {offsets = [1, 0], sizes = [88, 128], strides = [1, 1]} : vector<96x128xbf16> to vector<88x128xbf16>
    %16 = vector.extract_strided_slice %13 {offsets = [2, 0], sizes = [88, 128], strides = [1, 1]} : vector<96x128xbf16> to vector<88x128xbf16>
    %17 = tpu.concatenate %14, %15, %16 in 1 : vector<88x128xbf16>, vector<88x128xbf16>, vector<88x128xbf16> -> vector<88x384xbf16>
    %cst = arith.constant dense<0.000000e+00> : vector<88x128xf32>
    %18 = tpu.matmul %17, %0, %cst {dimension_numbers = #tpu.dot_dimension_numbers<[1], [0], [0], [1], [0, 0, 1, 1], [], []>} : vector<88x384xbf16>, vector<384x128xbf16>, vector<88x128xf32> -> vector<88x128xf32>
    %19 = vector.broadcast %6 : vector<1x128xf32> to vector<88x128xf32>
    %20 = arith.addf %18, %19 : vector<88x128xf32>
    %21 = arith.truncf %20 : vector<88x128xf32> to vector<88x128xbf16>
    %22 = vector.extract_strided_slice %21 {offsets = [0, 0], sizes = [80, 128], strides = [1, 1]} : vector<88x128xbf16> to vector<80x128xbf16>
    %23 = vector.extract_strided_slice %21 {offsets = [1, 0], sizes = [80, 128], strides = [1, 1]} : vector<88x128xbf16> to vector<80x128xbf16>
    %24 = vector.extract_strided_slice %21 {offsets = [2, 0], sizes = [80, 128], strides = [1, 1]} : vector<88x128xbf16> to vector<80x128xbf16>
    %25 = vector.extract_strided_slice %21 {offsets = [3, 0], sizes = [80, 128], strides = [1, 1]} : vector<88x128xbf16> to vector<80x128xbf16>
    %26 = vector.extract_strided_slice %21 {offsets = [4, 0], sizes = [80, 128], strides = [1, 1]} : vector<88x128xbf16> to vector<80x128xbf16>
    %27 = tpu.concatenate %22, %23, %24, %25, %26 in 1 : vector<80x128xbf16>, vector<80x128xbf16>, vector<80x128xbf16>, vector<80x128xbf16>, vector<80x128xbf16> -> vector<80x640xbf16>
    %cst_12 = arith.constant dense<0.000000e+00> : vector<80x128xf32>
    %28 = tpu.matmul %27, %1, %cst_12 {dimension_numbers = #tpu.dot_dimension_numbers<[1], [0], [0], [1], [0, 0, 1, 1], [], []>} : vector<80x640xbf16>, vector<640x128xbf16>, vector<80x128xf32> -> vector<80x128xf32>
    %29 = vector.broadcast %7 : vector<1x128xf32> to vector<80x128xf32>
    %30 = arith.addf %28, %29 : vector<80x128xf32>
    %31 = arith.truncf %30 : vector<80x128xf32> to vector<80x128xbf16>
    %cst_13 = arith.constant dense<0.000000e+00> : vector<40x128xf32>
    %32 = tpu.matmul %11, %31, %cst_13 {dimension_numbers = #tpu.dot_dimension_numbers<[1], [0], [0], [1], [0, 0, 1, 1], [], []>} : vector<40x80xbf16>, vector<80x128xbf16>, vector<40x128xf32> -> vector<40x128xf32>
    %33 = arith.truncf %32 : vector<40x128xf32> to vector<40x128xbf16>
    %34 = vector.extract_strided_slice %33 {offsets = [0, 0], sizes = [32, 128], strides = [1, 1]} : vector<40x128xbf16> to vector<32x128xbf16>
    %35 = vector.extract_strided_slice %33 {offsets = [1, 0], sizes = [32, 128], strides = [1, 1]} : vector<40x128xbf16> to vector<32x128xbf16>
    %36 = vector.extract_strided_slice %33 {offsets = [2, 0], sizes = [32, 128], strides = [1, 1]} : vector<40x128xbf16> to vector<32x128xbf16>
    %37 = vector.extract_strided_slice %33 {offsets = [3, 0], sizes = [32, 128], strides = [1, 1]} : vector<40x128xbf16> to vector<32x128xbf16>
    %38 = vector.extract_strided_slice %33 {offsets = [4, 0], sizes = [32, 128], strides = [1, 1]} : vector<40x128xbf16> to vector<32x128xbf16>
    %39 = vector.extract_strided_slice %33 {offsets = [5, 0], sizes = [32, 128], strides = [1, 1]} : vector<40x128xbf16> to vector<32x128xbf16>
    %40 = vector.extract_strided_slice %33 {offsets = [6, 0], sizes = [32, 128], strides = [1, 1]} : vector<40x128xbf16> to vector<32x128xbf16>
    %41 = tpu.concatenate %34, %35, %36, %37, %38, %39, %40 in 1 : vector<32x128xbf16>, vector<32x128xbf16>, vector<32x128xbf16>, vector<32x128xbf16>, vector<32x128xbf16>, vector<32x128xbf16>, vector<32x128xbf16> -> vector<32x896xbf16>
    %cst_14 = arith.constant dense<0.000000e+00> : vector<32x128xf32>
    %42 = tpu.matmul %41, %2, %cst_14 {dimension_numbers = #tpu.dot_dimension_numbers<[1], [0], [0], [1], [0, 0, 1, 1], [], []>} : vector<32x896xbf16>, vector<896x128xbf16>, vector<32x128xf32> -> vector<32x128xf32>
    %43 = vector.broadcast %8 : vector<1x128xf32> to vector<32x128xf32>
    %44 = arith.addf %42, %43 : vector<32x128xf32>
    %45 = arith.truncf %44 : vector<32x128xf32> to vector<32x128xbf16>
    %46 = vector.extract_strided_slice %45 {offsets = [0, 0], sizes = [24, 128], strides = [1, 1]} : vector<32x128xbf16> to vector<24x128xbf16>
    %47 = vector.extract_strided_slice %45 {offsets = [1, 0], sizes = [24, 128], strides = [1, 1]} : vector<32x128xbf16> to vector<24x128xbf16>
    %48 = vector.extract_strided_slice %45 {offsets = [2, 0], sizes = [24, 128], strides = [1, 1]} : vector<32x128xbf16> to vector<24x128xbf16>
    %49 = vector.extract_strided_slice %45 {offsets = [3, 0], sizes = [24, 128], strides = [1, 1]} : vector<32x128xbf16> to vector<24x128xbf16>
    %50 = vector.extract_strided_slice %45 {offsets = [4, 0], sizes = [24, 128], strides = [1, 1]} : vector<32x128xbf16> to vector<24x128xbf16>
    %51 = vector.extract_strided_slice %45 {offsets = [5, 0], sizes = [24, 128], strides = [1, 1]} : vector<32x128xbf16> to vector<24x128xbf16>
    %52 = vector.extract_strided_slice %45 {offsets = [6, 0], sizes = [24, 128], strides = [1, 1]} : vector<32x128xbf16> to vector<24x128xbf16>
    %53 = tpu.concatenate %46, %47, %48, %49, %50, %51, %52 in 1 : vector<24x128xbf16>, vector<24x128xbf16>, vector<24x128xbf16>, vector<24x128xbf16>, vector<24x128xbf16>, vector<24x128xbf16>, vector<24x128xbf16> -> vector<24x896xbf16>
    %cst_15 = arith.constant dense<0.000000e+00> : vector<24x128xf32>
    %54 = tpu.matmul %53, %3, %cst_15 {dimension_numbers = #tpu.dot_dimension_numbers<[1], [0], [0], [1], [0, 0, 1, 1], [], []>} : vector<24x896xbf16>, vector<896x128xbf16>, vector<24x128xf32> -> vector<24x128xf32>
    %55 = vector.broadcast %9 : vector<1x128xf32> to vector<24x128xf32>
    %56 = arith.addf %54, %55 : vector<24x128xf32>
    %57 = arith.truncf %56 : vector<24x128xf32> to vector<24x128xbf16>
    %58 = vector.extract_strided_slice %57 {offsets = [0, 0], sizes = [8, 128], strides = [1, 1]} : vector<24x128xbf16> to vector<8x128xbf16>
    %59 = vector.extract_strided_slice %57 {offsets = [1, 0], sizes = [8, 128], strides = [1, 1]} : vector<24x128xbf16> to vector<8x128xbf16>
    %60 = vector.extract_strided_slice %57 {offsets = [2, 0], sizes = [8, 128], strides = [1, 1]} : vector<24x128xbf16> to vector<8x128xbf16>
    %61 = vector.extract_strided_slice %57 {offsets = [3, 0], sizes = [8, 128], strides = [1, 1]} : vector<24x128xbf16> to vector<8x128xbf16>
    %62 = vector.extract_strided_slice %57 {offsets = [4, 0], sizes = [8, 128], strides = [1, 1]} : vector<24x128xbf16> to vector<8x128xbf16>
    %63 = vector.extract_strided_slice %57 {offsets = [5, 0], sizes = [8, 128], strides = [1, 1]} : vector<24x128xbf16> to vector<8x128xbf16>
    %64 = vector.extract_strided_slice %57 {offsets = [6, 0], sizes = [8, 128], strides = [1, 1]} : vector<24x128xbf16> to vector<8x128xbf16>
    %65 = vector.extract_strided_slice %57 {offsets = [7, 0], sizes = [8, 128], strides = [1, 1]} : vector<24x128xbf16> to vector<8x128xbf16>
    %66 = vector.extract_strided_slice %57 {offsets = [8, 0], sizes = [8, 128], strides = [1, 1]} : vector<24x128xbf16> to vector<8x128xbf16>
    %67 = vector.extract_strided_slice %57 {offsets = [9, 0], sizes = [8, 128], strides = [1, 1]} : vector<24x128xbf16> to vector<8x128xbf16>
    %68 = vector.extract_strided_slice %57 {offsets = [10, 0], sizes = [8, 128], strides = [1, 1]} : vector<24x128xbf16> to vector<8x128xbf16>
    %69 = vector.extract_strided_slice %57 {offsets = [11, 0], sizes = [8, 128], strides = [1, 1]} : vector<24x128xbf16> to vector<8x128xbf16>
    %70 = vector.extract_strided_slice %57 {offsets = [12, 0], sizes = [8, 128], strides = [1, 1]} : vector<24x128xbf16> to vector<8x128xbf16>
    %71 = vector.extract_strided_slice %57 {offsets = [13, 0], sizes = [8, 128], strides = [1, 1]} : vector<24x128xbf16> to vector<8x128xbf16>
    %72 = tpu.concatenate %58, %59, %60, %61, %62, %63, %64, %65, %66, %67, %68, %69, %70, %71 in 1 : vector<8x128xbf16>, vector<8x128xbf16>, vector<8x128xbf16>, vector<8x128xbf16>, vector<8x128xbf16>, vector<8x128xbf16>, vector<8x128xbf16>, vector<8x128xbf16>, vector<8x128xbf16>, vector<8x128xbf16>, vector<8x128xbf16>, vector<8x128xbf16>, vector<8x128xbf16>, vector<8x128xbf16> -> vector<8x1792xbf16>
    %cst_16 = arith.constant dense<0.000000e+00> : vector<8x128xf32>
    %73 = tpu.matmul %72, %4, %cst_16 {dimension_numbers = #tpu.dot_dimension_numbers<[1], [0], [0], [1], [0, 0, 1, 1], [], []>} : vector<8x1792xbf16>, vector<1792x128xbf16>, vector<8x128xf32> -> vector<8x128xf32>
    %74 = vector.broadcast %10 : vector<1x128xf32> to vector<8x128xf32>
    %75 = arith.addf %73, %74 : vector<8x128xf32>
    %c0_17 = arith.constant 0 : index
    %c0_18 = arith.constant 0 : index
    %c0_19 = arith.constant 0 : index
    %76 = vector.load %arg5[%c0_17, %c0_18, %c0_19] : memref<1x8x128xf32, #tpu.memory_space<vmem>>, vector<1x8x128xf32>
    %77 = vector.shape_cast %76 : vector<1x8x128xf32> to vector<8x128xf32>
    %78 = vector.shape_cast %75 : vector<8x128xf32> to vector<1x8x128xf32>
    tpu.vector_store %arg5[%c0_17, %c0_18, %c0_19], %78 {strides = array<i32>} : memref<1x8x128xf32, #tpu.memory_space<vmem>>, vector<1x8x128xf32>,
    return
  }
  func.func @transform_0(%arg0: i32) -> (i32, i32, i32) {
    %c0_i32 = arith.constant 0 : i32
    %c0_i32_0 = arith.constant 0 : i32
    %c0_i32_1 = arith.constant 0 : i32
    return %arg0, %c0_i32, %c0_i32_0 : i32, i32, i32
  }
  func.func @transform_1(%arg0: i32) -> (i32, i32) {
    %c0_i32 = arith.constant 0 : i32
    %c0_i32_0 = arith.constant 0 : i32
    %c0_i32_1 = arith.constant 0 : i32
    return %c0_i32, %c0_i32_0 : i32, i32
  }
  func.func @transform_2(%arg0: i32) -> (i32, i32) {
    %c0_i32 = arith.constant 0 : i32
    %c0_i32_0 = arith.constant 0 : i32
    %c0_i32_1 = arith.constant 0 : i32
    return %c0_i32, %c0_i32_0 : i32, i32
  }
  func.func @transform_3(%arg0: i32) -> (i32, i32) {
    %c0_i32 = arith.constant 0 : i32
    %c0_i32_0 = arith.constant 0 : i32
    %c0_i32_1 = arith.constant 0 : i32
    return %c0_i32, %c0_i32_0 : i32, i32
  }
  func.func @transform_4(%arg0: i32) -> (i32, i32, i32) {
    %c0_i32 = arith.constant 0 : i32
    %c0_i32_0 = arith.constant 0 : i32
    %c0_i32_1 = arith.constant 0 : i32
    return %arg0, %c0_i32, %c0_i32_0 : i32, i32, i32
  }
}

</mosaic_0001>

<llo_original>
// kernel: decoder_forward.1
$region0: #{decoder_forward.1}
  #allocation0 [shape = 'u32[]', space=smem, size = 0x4, offset = 0x4, fixed_abs, tag = 'smem constant byte address 0x4 - core index']
  #allocation1 [shape = 'u32[144,128]{1,0:T(1,128)}', space=vmem, size = 0x12000, scoped, tag = 'internal scratch']
  %s0 = inlined_call_operand.vmem [shape: bf16[2,96,128], index: 0, kind: input, shape index: {}]
  %s1 = inlined_call_operand.hbm [shape: bf16[4608,128], index: 1, kind: input, shape index: {}]
  %s2 = inlined_call_operand.hbm [shape: f32[8,128], index: 2, kind: input, shape index: {}]
  %s3 = inlined_call_operand.vmem [shape: bf16[40,80], index: 3, kind: input, shape index: {}]
  %s4 = inlined_call_operand.vmem [shape: f32[2,8,128], index: 4, kind: output, shape index: {}]
  %s5 = sld [smem:[#allocation0]]
  $region57: #{decoder_forward.1} parent=0
    _
  %s7 = ssub.s32 1, %s5
  %s8 = scalar_select 0, %s7, %s5
  $region1: #{decoder_forward.1} parent=0
    #allocation2 [shape = 'u8[1179648]{0}', space=vmem, size = 0x120000, scoped, tag = 'input window, operand 1, single buffered']
    #allocation3 [shape = 's32[2]{0}', space=sflag, size = 0x8, scoped, tag = 'scoped memory for decoder_forward.1']
    #allocation4 [shape = 'u8[4096]{0}', space=vmem, size = 0x1000, scoped, tag = 'input window, operand 2, single buffered']
    #allocation5 [shape = 's32[1]{0}', space=sflag, size = 0x4, scoped, tag = 'scoped memory for decoder_forward.1']
    %9 = vsyncpa [#allocation3], 0
    %10 = vsyncpa [#allocation5], 0
    loop: start=0, step=1, limit=4
    $region2: #{decoder_forward.1} parent=1 // loop_pre_header
      _
    $region3: #{decoder_forward.1} parent=1 // loop_header
      %s12 = sphi 0, %s16
      %p13 = scmp.ge.s32.totalorder %s12, 4
      %s22 = sphi 0, %s24
      %s25 = sphi 0, %s22
      %s26 = sphi 0, %s25
      %s42 = sphi 0, %s26
      %s46 = sphi 0, %s46
      %s48 = sphi 0, %s46
      %s49 = sphi 0, %s48
      %s63 = sphi 0, %s49
      %s67 = sphi 0, %s67
      %s69 = sphi 0, %s67
      %s70 = sphi 0, %s69
      %s84 = sphi 0, %s70
      %s88 = sphi 0, %s88
      %s90 = sphi 0, %s88
      %s91 = sphi 0, %s90
      %s105 = sphi 0, %s91
      %s111 = sphi 0, %s113
      %s114 = sphi 0, %s111
      %s115 = sphi 0, %s114
      %s131 = sphi 0, %s115
    $region4: #{decoder_forward.1} parent=1 // loop_header_branch
      %15 = sbr.rel (%p13) target = $region8
    $region5: #{decoder_forward.1} parent=1 // loop_body
      %s17 = ssub.s32 %s12, 1
      %s18 = ssub.s32 %s12, 2
      %s19 = sadd.s32 %s12, 1
      %s20 = ssub.s32 %s12, %s19
      %p21 = scmp.eq.s32.totalorder %s20, 0
      %s23 = sadd.s32 %s22, 1
      %s24 = scalar_select %p21, %s22, %s23
      %p27 = pneg %p21
      %p28 = scmp.eq.s32.totalorder %s12, 1
      %p29 = por %p27, %p28
      %p30 = scmp.ne.s32.totalorder %s22, %s25
      %p31 = scmp.eq.s32.totalorder %s12, 0
      %p32 = por %p30, %p31
      %p33 = scmp.ne.s32.totalorder %s22, %s25
      %p34 = scmp.eq.s32.totalorder %s17, 1
      %p35 = por %p33, %p34
      %p36 = scmp.ne.s32.totalorder %s25, %s26
      %p37 = scmp.eq.s32.totalorder %s17, 0
      %p38 = por %p36, %p37
      %p39 = scmp.ne.s32.totalorder %s25, %s26
      %p40 = scmp.eq.s32.totalorder %s18, 1
      %p41 = por %p39, %p40
      %p43 = scmp.ne.s32.totalorder %s26, %s42
      %p44 = scmp.eq.s32.totalorder %s18, 0
      %p45 = por %p43, %p44
      %s47 = sadd.s32 %s46, 1
      %p50 = scmp.eq.s32.totalorder %s12, 1
      %p51 = scmp.ne.s32.totalorder %s46, %s48
      %p52 = scmp.eq.s32.totalorder %s12, 0
      %p53 = por %p51, %p52
      %p54 = scmp.ne.s32.totalorder %s46, %s48
      %p55 = scmp.eq.s32.totalorder %s17, 1
      %p56 = por %p54, %p55
      %p57 = scmp.ne.s32.totalorder %s48, %s49
      %p58 = scmp.eq.s32.totalorder %s17, 0
      %p59 = por %p57, %p58
      %p60 = scmp.ne.s32.totalorder %s48, %s49
      %p61 = scmp.eq.s32.totalorder %s18, 1
      %p62 = por %p60, %p61
      %p64 = scmp.ne.s32.totalorder %s49, %s63
      %p65 = scmp.eq.s32.totalorder %s18, 0
      %p66 = por %p64, %p65
      %s68 = sadd.s32 %s67, 1
      %p71 = scmp.eq.s32.totalorder %s12, 1
      %p72 = scmp.ne.s32.totalorder %s67, %s69
      %p73 = scmp.eq.s32.totalorder %s12, 0
      %p74 = por %p72, %p73
      %p75 = scmp.ne.s32.totalorder %s67, %s69
      %p76 = scmp.eq.s32.totalorder %s17, 1
      %p77 = por %p75, %p76
      %p78 = scmp.ne.s32.totalorder %s69, %s70
      %p79 = scmp.eq.s32.totalorder %s17, 0
      %p80 = por %p78, %p79
      %p81 = scmp.ne.s32.totalorder %s69, %s70
      %p82 = scmp.eq.s32.totalorder %s18, 1
      %p83 = por %p81, %p82
      %p85 = scmp.ne.s32.totalorder %s70, %s84
      %p86 = scmp.eq.s32.totalorder %s18, 0
      %p87 = por %p85, %p86
      %s89 = sadd.s32 %s88, 1
      %p92 = scmp.eq.s32.totalorder %s12, 1
      %p93 = scmp.ne.s32.totalorder %s88, %s90
      %p94 = scmp.eq.s32.totalorder %s12, 0
      %p95 = por %p93, %p94
      %p96 = scmp.ne.s32.totalorder %s88, %s90
      %p97 = scmp.eq.s32.totalorder %s17, 1
      %p98 = por %p96, %p97
      %p99 = scmp.ne.s32.totalorder %s90, %s91
      %p100 = scmp.eq.s32.totalorder %s17, 0
      %p101 = por %p99, %p100
      %p102 = scmp.ne.s32.totalorder %s90, %s91
      %p103 = scmp.eq.s32.totalorder %s18, 1
      %p104 = por %p102, %p103
      %p106 = scmp.ne.s32.totalorder %s91, %s105
      %p107 = scmp.eq.s32.totalorder %s18, 0
      %p108 = por %p106, %p107
      %s109 = ssub.s32 %s12, %s19
      %p110 = scmp.eq.s32.totalorder %s109, 0
      %s112 = sadd.s32 %s111, 1
      %s113 = scalar_select %p110, %s111, %s112
      %p116 = pneg %p110
      %p117 = scmp.eq.s32.totalorder %s12, 1
      %p118 = por %p116, %p117
      %p119 = scmp.ne.s32.totalorder %s111, %s114
      %p120 = scmp.eq.s32.totalorder %s12, 0
      %p121 = por %p119, %p120
      %p122 = scmp.ne.s32.totalorder %s111, %s114
      %p123 = scmp.eq.s32.totalorder %s17, 1
      %p124 = por %p122, %p123
      %p125 = scmp.ne.s32.totalorder %s114, %s115
      %p126 = scmp.eq.s32.totalorder %s17, 0
      %p127 = por %p125, %p126
      %p128 = scmp.ne.s32.totalorder %s114, %s115
      %p129 = scmp.eq.s32.totalorder %s18, 1
      %p130 = por %p128, %p129
      %p132 = scmp.ne.s32.totalorder %s115, %s131
      %p133 = scmp.eq.s32.totalorder %s18, 0
      %p134 = por %p132, %p133
      %p135 = scmp.le.s32.totalorder 1, %s12
      %p136 = scmp.lt.s32.totalorder %s12, 3
      %p137 = pnand %p135, %p136
      %p138 = pneg %p137
      // Predicated region
      $region9: #{decoder_forward.1} parent=5 // pred_check
        _
      $region10: #{decoder_forward.1} parent=5 // pred_check_branch
        %140 = sbr.rel (%p137) target = $region12
      $region11: #{decoder_forward.1} parent=5 // pred_region
        %s141 = ssub.s32 %s12, 1
        // Predicated region
        $region13: #{decoder_forward.1} parent=11 // pred_check
          %p142 = pneg %p59
        $region14: #{decoder_forward.1} parent=11 // pred_check_branch
          %144 = sbr.rel (%p142) target = $region16
        $region15: #{decoder_forward.1} parent=11 // pred_region
          %s146 = ssub.s32 36864, 36864
          %147 = vsyncadd [#allocation3], %s146
          %s148 = sshll.u32 [#allocation2], 4
          %s149 = int_to_ptr.vmem [resolvable:$true] %s148
          %154 = dma.hbm_to_vmem [thread:$0]  %s1, 36864, %s149, [#allocation3], 64, 64, 4
        $region16: #{decoder_forward.1} parent=11 // pred_fallthru
          _
        // Predicated region
        $region17: #{decoder_forward.1} parent=11 // pred_check
          %p155 = pneg %p80
        $region18: #{decoder_forward.1} parent=11 // pred_check_branch
          %157 = sbr.rel (%p155) target = $region20
        $region19: #{decoder_forward.1} parent=11 // pred_region
          %s159 = ssub.s32 128, 128
          %160 = vsyncadd [#allocation5], %s159
          %s162 = sshll.u32 [#allocation4], 4
          %s163 = int_to_ptr.vmem [resolvable:$true] %s162
          %165 = dma.hbm_to_vmem [thread:$0]  %s2, 128, %s163, [#allocation5]
        $region20: #{decoder_forward.1} parent=11 // pred_fallthru
          _
        // Predicated region
        $region21: #{decoder_forward.1} parent=11 // pred_check
          %p166 = pneg %p101
        $region22: #{decoder_forward.1} parent=11 // pred_check_branch
          %168 = sbr.rel (%p166) target = $region24
        $region23: #{decoder_forward.1} parent=11 // pred_region
          _
        $region24: #{decoder_forward.1} parent=11 // pred_fallthru
          _
      $region12: #{decoder_forward.1} parent=5 // pred_fallthru
        _
      %p169 = scmp.lt.s32.totalorder %s12, 2
      // Predicated region
      $region25: #{decoder_forward.1} parent=5 // pred_check
        %p170 = pneg %p169
      $region26: #{decoder_forward.1} parent=5 // pred_check_branch
        %172 = sbr.rel (%p170) target = $region28
      $region27: #{decoder_forward.1} parent=5 // pred_region
        // Predicated region
        $region29: #{decoder_forward.1} parent=27 // pred_check
          %p173 = pneg %p32
        $region30: #{decoder_forward.1} parent=27 // pred_check_branch
          %175 = sbr.rel (%p173) target = $region32
        $region31: #{decoder_forward.1} parent=27 // pred_region
          %p176 = scmp.lt.s32.totalorder %s12, 1
          %s177 = scalar_select %p176, %s12, 1
          %s178 = smul.addr %s177, 12
          %s179 = smul.addr %s178, 4
          %s180 = scalar_lea.vmem %s0, %s179
        $region32: #{decoder_forward.1} parent=27 // pred_fallthru
          _
      $region28: #{decoder_forward.1} parent=5 // pred_fallthru
        _
      %p181 = scmp.le.s32.totalorder 1, %s12
      %p182 = scmp.lt.s32.totalorder %s12, 3
      %p183 = pnand %p181, %p182
      %p184 = pneg %p183
      // Predicated region
      $region33: #{decoder_forward.1} parent=5 // pred_check
        _
      $region34: #{decoder_forward.1} parent=5 // pred_check_branch
        %186 = sbr.rel (%p183) target = $region36
      $region35: #{decoder_forward.1} parent=5 // pred_region
        %s187 = ssub.s32 %s12, 1
        // Predicated region
        $region37: #{decoder_forward.1} parent=35 // pred_check
          %p188 = pneg %p59
        $region38: #{decoder_forward.1} parent=35 // pred_check_branch
          %190 = sbr.rel (%p188) target = $region40
        $region39: #{decoder_forward.1} parent=35 // pred_region
          %191 = dma.done [#allocation3], 36864
        $region40: #{decoder_forward.1} parent=35 // pred_fallthru
          _
        // Predicated region
        $region41: #{decoder_forward.1} parent=35 // pred_check
          %p192 = pneg %p80
        $region42: #{decoder_forward.1} parent=35 // pred_check_branch
          %194 = sbr.rel (%p192) target = $region44
        $region43: #{decoder_forward.1} parent=35 // pred_region
          %195 = dma.done [#allocation5], 128
        $region44: #{decoder_forward.1} parent=35 // pred_fallthru
          _
        %p196 = scmp.lt.s32.totalorder %s17, 1
        %s197 = scalar_select %p196, %s17, 1
        %s198 = smul.addr %s197, 12
        %s199 = smul.addr %s198, 4
        %s200 = scalar_lea.vmem %s0, %s199
        %p201 = pneg %p38
        %p202 = pneg %p35
        %p203 = pneg %p59
        %p204 = pneg %p56
        %p205 = pneg %p80
        %p206 = pneg %p77
        %p207 = pneg %p101
        %p208 = pneg %p98
        %p209 = pneg %p127
        %p210 = pneg %p124
        %p211 = scmp.lt.s32.totalorder %s17, 1
        %s212 = scalar_select %p211, %s17, 1
        %s213 = smul.addr %s212, 8
        %s214 = scalar_lea.vmem %s4, %s213
        %p215 = scmp.lt.s32.totalorder %s17, 1
        %s216 = scalar_select %p215, %s17, 1
        %s217 = smul.addr %s216, 12
        %s218 = smul.addr %s217, 4
        %s219 = scalar_lea.vmem %s0, %s218
        %p220 = scmp.lt.s32.totalorder %s17, 1
        %s221 = scalar_select %p220, %s17, 1
        %s222 = smul.addr %s221, 8
        %s223 = scalar_lea.vmem %s4, %s222
        %v225 = vld [vmem:[#allocation2] sm:$0xf]
        %v226 = vld [vmem:[#allocation2 + $0x4] sm:$0xf]
        %v227 = vld [vmem:[#allocation2 + $0x8] sm:$0xf]
        %v228 = vld [vmem:[#allocation2 + $0xc] sm:$0xf]
        %v229 = vld [vmem:[#allocation2 + $0x10] sm:$0xf]
        %v230 = vld [vmem:[#allocation2 + $0x14] sm:$0xf]
        %v231 = vld [vmem:[#allocation2 + $0x18] sm:$0xf]
        %v232 = vld [vmem:[#allocation2 + $0x1c] sm:$0xf]
        %v233 = vld [vmem:[#allocation2 + $0x20] sm:$0xf]
        %v234 = vld [vmem:[#allocation2 + $0x24] sm:$0xf]
        %v235 = vld [vmem:[#allocation2 + $0x28] sm:$0xf]
        %v236 = vld [vmem:[#allocation2 + $0x2c] sm:$0xf]
        %v237 = vld [vmem:[#allocation2 + $0x30] sm:$0xf]
        %v238 = vld [vmem:[#allocation2 + $0x34] sm:$0xf]
        %v239 = vld [vmem:[#allocation2 + $0x38] sm:$0xf]
        %v240 = vld [vmem:[#allocation2 + $0x3c] sm:$0xf]
        %v241 = vld [vmem:[#allocation2 + $0x40] sm:$0xf]
        %v242 = vld [vmem:[#allocation2 + $0x44] sm:$0xf]
        %v243 = vld [vmem:[#allocation2 + $0x48] sm:$0xf]
        %v244 = vld [vmem:[#allocation2 + $0x4c] sm:$0xf]
        %v245 = vld [vmem:[#allocation2 + $0x50] sm:$0xf]
        %v246 = vld [vmem:[#allocation2 + $0x54] sm:$0xf]
        %v247 = vld [vmem:[#allocation2 + $0x58] sm:$0xf]
        %v248 = vld [vmem:[#allocation2 + $0x5c] sm:$0xf]
        %v249 = vld [vmem:[#allocation2 + $0x60] sm:$0xf]
        %v250 = vld [vmem:[#allocation2 + $0x64] sm:$0xf]
        %v251 = vld [vmem:[#allocation2 + $0x68] sm:$0xf]
        %v252 = vld [vmem:[#allocation2 + $0x6c] sm:$0xf]
        %v253 = vld [vmem:[#allocation2 + $0x70] sm:$0xf]
        %v254 = vld [vmem:[#allocation2 + $0x74] sm:$0xf]
        %v255 = vld [vmem:[#allocation2 + $0x78] sm:$0xf]
        %v256 = vld [vmem:[#allocation2 + $0x7c] sm:$0xf]
        %v257 = vld [vmem:[#allocation2 + $0x80] sm:$0xf]
        %v258 = vld [vmem:[#allocation2 + $0x84] sm:$0xf]
        %v259 = vld [vmem:[#allocation2 + $0x88] sm:$0xf]
        %v260 = vld [vmem:[#allocation2 + $0x8c] sm:$0xf]
        %v261 = vld [vmem:[#allocation2 + $0x90] sm:$0xf]
        %v262 = vld [vmem:[#allocation2 + $0x94] sm:$0xf]
        %v263 = vld [vmem:[#allocation2 + $0x98] sm:$0xf]
        %v264 = vld [vmem:[#allocation2 + $0x9c] sm:$0xf]
        %v265 = vld [vmem:[#allocation2 + $0xa0] sm:$0xf]
        %v266 = vld [vmem:[#allocation2 + $0xa4] sm:$0xf]
        %v267 = vld [vmem:[#allocation2 + $0xa8] sm:$0xf]
        %v268 = vld [vmem:[#allocation2 + $0xac] sm:$0xf]
        %v269 = vld [vmem:[#allocation2 + $0xb0] sm:$0xf]
        %v270 = vld [vmem:[#allocation2 + $0xb4] sm:$0xf]
        %v271 = vld [vmem:[#allocation2 + $0xb8] sm:$0xf]
        %v272 = vld [vmem:[#allocation2 + $0xbc] sm:$0xf]
        %v273 = vld [vmem:[#allocation2 + $0xc0] sm:$0xf]
        %v274 = vld [vmem:[#allocation2 + $0xc4] sm:$0xf]
        %v275 = vld [vmem:[#allocation2 + $0xc8] sm:$0xf]
        %v276 = vld [vmem:[#allocation2 + $0xcc] sm:$0xf]
        %v277 = vld [vmem:[#allocation2 + $0xd0] sm:$0xf]
        %v278 = vld [vmem:[#allocation2 + $0xd4] sm:$0xf]
        %v279 = vld [vmem:[#allocation2 + $0xd8] sm:$0xf]
        %v280 = vld [vmem:[#allocation2 + $0xdc] sm:$0xf]
        %v281 = vld [vmem:[#allocation2 + $0xe0] sm:$0xf]
        %v282 = vld [vmem:[#allocation2 + $0xe4] sm:$0xf]
        %v283 = vld [vmem:[#allocation2 + $0xe8] sm:$0xf]
        %v284 = vld [vmem:[#allocation2 + $0xec] sm:$0xf]
        %v285 = vld [vmem:[#allocation2 + $0xf0] sm:$0xf]
        %v286 = vld [vmem:[#allocation2 + $0xf4] sm:$0xf]
        %v287 = vld [vmem:[#allocation2 + $0xf8] sm:$0xf]
        %v288 = vld [vmem:[#allocation2 + $0xfc] sm:$0xf]
        %v289 = vld [vmem:[#allocation2 + $0x100] sm:$0xf]
        %v290 = vld [vmem:[#allocation2 + $0x104] sm:$0xf]
        %v291 = vld [vmem:[#allocation2 + $0x108] sm:$0xf]
        %v292 = vld [vmem:[#allocation2 + $0x10c] sm:$0xf]
        %v293 = vld [vmem:[#allocation2 + $0x110] sm:$0xf]
        %v294 = vld [vmem:[#allocation2 + $0x114] sm:$0xf]
        %v295 = vld [vmem:[#allocation2 + $0x118] sm:$0xf]
        %v296 = vld [vmem:[#allocation2 + $0x11c] sm:$0xf]
        %v297 = vld [vmem:[#allocation2 + $0x120] sm:$0xf]
        %v298 = vld [vmem:[#allocation2 + $0x124] sm:$0xf]
        %v299 = vld [vmem:[#allocation2 + $0x128] sm:$0xf]
        %v300 = vld [vmem:[#allocation2 + $0x12c] sm:$0xf]
        %v301 = vld [vmem:[#allocation2 + $0x130] sm:$0xf]
        %v302 = vld [vmem:[#allocation2 + $0x134] sm:$0xf]
        %v303 = vld [vmem:[#allocation2 + $0x138] sm:$0xf]
        %v304 = vld [vmem:[#allocation2 + $0x13c] sm:$0xf]
        %v305 = vld [vmem:[#allocation2 + $0x140] sm:$0xf]
        %v306 = vld [vmem:[#allocation2 + $0x144] sm:$0xf]
        %v307 = vld [vmem:[#allocation2 + $0x148] sm:$0xf]
        %v308 = vld [vmem:[#allocation2 + $0x14c] sm:$0xf]
        %v309 = vld [vmem:[#allocation2 + $0x150] sm:$0xf]
        %v310 = vld [vmem:[#allocation2 + $0x154] sm:$0xf]
        %v311 = vld [vmem:[#allocation2 + $0x158] sm:$0xf]
        %v312 = vld [vmem:[#allocation2 + $0x15c] sm:$0xf]
        %v313 = vld [vmem:[#allocation2 + $0x160] sm:$0xf]
        %v314 = vld [vmem:[#allocation2 + $0x164] sm:$0xf]
        %v315 = vld [vmem:[#allocation2 + $0x168] sm:$0xf]
        %v316 = vld [vmem:[#allocation2 + $0x16c] sm:$0xf]
        %v317 = vld [vmem:[#allocation2 + $0x170] sm:$0xf]
        %v318 = vld [vmem:[#allocation2 + $0x174] sm:$0xf]
        %v319 = vld [vmem:[#allocation2 + $0x178] sm:$0xf]
        %v320 = vld [vmem:[#allocation2 + $0x17c] sm:$0xf]
        %v321 = vld [vmem:[#allocation2 + $0x180] sm:$0xf]
        %v322 = vld [vmem:[#allocation2 + $0x184] sm:$0xf]
        %v323 = vld [vmem:[#allocation2 + $0x188] sm:$0xf]
        %v324 = vld [vmem:[#allocation2 + $0x18c] sm:$0xf]
        %v325 = vld [vmem:[#allocation2 + $0x190] sm:$0xf]
        %v326 = vld [vmem:[#allocation2 + $0x194] sm:$0xf]
        %v327 = vld [vmem:[#allocation2 + $0x198] sm:$0xf]
        %v328 = vld [vmem:[#allocation2 + $0x19c] sm:$0xf]
        %v329 = vld [vmem:[#allocation2 + $0x1a0] sm:$0xf]
        %v330 = vld [vmem:[#allocation2 + $0x1a4] sm:$0xf]
        %v331 = vld [vmem:[#allocation2 + $0x1a8] sm:$0xf]
        %v332 = vld [vmem:[#allocation2 + $0x1ac] sm:$0xf]
        %v333 = vld [vmem:[#allocation2 + $0x1b0] sm:$0xf]
        %v334 = vld [vmem:[#allocation2 + $0x1b4] sm:$0xf]
        %v335 = vld [vmem:[#allocation2 + $0x1b8] sm:$0xf]
        %v336 = vld [vmem:[#allocation2 + $0x1bc] sm:$0xf]
        %v337 = vld [vmem:[#allocation2 + $0x1c0] sm:$0xf]
        %v338 = vld [vmem:[#allocation2 + $0x1c4] sm:$0xf]
        %v339 = vld [vmem:[#allocation2 + $0x1c8] sm:$0xf]
        %v340 = vld [vmem:[#allocation2 + $0x1cc] sm:$0xf]
        %v341 = vld [vmem:[#allocation2 + $0x1d0] sm:$0xf]
        %v342 = vld [vmem:[#allocation2 + $0x1d4] sm:$0xf]
        %v343 = vld [vmem:[#allocation2 + $0x1d8] sm:$0xf]
        %v344 = vld [vmem:[#allocation2 + $0x1dc] sm:$0xf]
        %v345 = vld [vmem:[#allocation2 + $0x1e0] sm:$0xf]
        %v346 = vld [vmem:[#allocation2 + $0x1e4] sm:$0xf]
        %v347 = vld [vmem:[#allocation2 + $0x1e8] sm:$0xf]
        %v348 = vld [vmem:[#allocation2 + $0x1ec] sm:$0xf]
        %v349 = vld [vmem:[#allocation2 + $0x1f0] sm:$0xf]
        %v350 = vld [vmem:[#allocation2 + $0x1f4] sm:$0xf]
        %v351 = vld [vmem:[#allocation2 + $0x1f8] sm:$0xf]
        %v352 = vld [vmem:[#allocation2 + $0x1fc] sm:$0xf]
        %v353 = vld [vmem:[#allocation2 + $0x200] sm:$0xf]
        %v354 = vld [vmem:[#allocation2 + $0x204] sm:$0xf]
        %v355 = vld [vmem:[#allocation2 + $0x208] sm:$0xf]
        %v356 = vld [vmem:[#allocation2 + $0x20c] sm:$0xf]
        %v357 = vld [vmem:[#allocation2 + $0x210] sm:$0xf]
        %v358 = vld [vmem:[#allocation2 + $0x214] sm:$0xf]
        %v359 = vld [vmem:[#allocation2 + $0x218] sm:$0xf]
        %v360 = vld [vmem:[#allocation2 + $0x21c] sm:$0xf]
        %v361 = vld [vmem:[#allocation2 + $0x220] sm:$0xf]
        %v362 = vld [vmem:[#allocation2 + $0x224] sm:$0xf]
        %v363 = vld [vmem:[#allocation2 + $0x228] sm:$0xf]
        %v364 = vld [vmem:[#allocation2 + $0x22c] sm:$0xf]
        %v365 = vld [vmem:[#allocation2 + $0x230] sm:$0xf]
        %v366 = vld [vmem:[#allocation2 + $0x234] sm:$0xf]
        %v367 = vld [vmem:[#allocation2 + $0x238] sm:$0xf]
        %v368 = vld [vmem:[#allocation2 + $0x23c] sm:$0xf]
        %v369 = vld [vmem:[#allocation2 + $0x240] sm:$0xf]
        %v370 = vld [vmem:[#allocation2 + $0x244] sm:$0xf]
        %v371 = vld [vmem:[#allocation2 + $0x248] sm:$0xf]
        %v372 = vld [vmem:[#allocation2 + $0x24c] sm:$0xf]
        %v373 = vld [vmem:[#allocation2 + $0x250] sm:$0xf]
        %v374 = vld [vmem:[#allocation2 + $0x254] sm:$0xf]
        %v375 = vld [vmem:[#allocation2 + $0x258] sm:$0xf]
        %v376 = vld [vmem:[#allocation2 + $0x25c] sm:$0xf]
        %v377 = vld [vmem:[#allocation2 + $0x260] sm:$0xf]
        %v378 = vld [vmem:[#allocation2 + $0x264] sm:$0xf]
        %v379 = vld [vmem:[#allocation2 + $0x268] sm:$0xf]
        %v380 = vld [vmem:[#allocation2 + $0x26c] sm:$0xf]
        %v381 = vld [vmem:[#allocation2 + $0x270] sm:$0xf]
        %v382 = vld [vmem:[#allocation2 + $0x274] sm:$0xf]
        %v383 = vld [vmem:[#allocation2 + $0x278] sm:$0xf]
        %v384 = vld [vmem:[#allocation2 + $0x27c] sm:$0xf]
        %v385 = vld [vmem:[#allocation2 + $0x280] sm:$0xf]
        %v386 = vld [vmem:[#allocation2 + $0x284] sm:$0xf]
        %v387 = vld [vmem:[#allocation2 + $0x288] sm:$0xf]
        %v388 = vld [vmem:[#allocation2 + $0x28c] sm:$0xf]
        %v389 = vld [vmem:[#allocation2 + $0x290] sm:$0xf]
        %v390 = vld [vmem:[#allocation2 + $0x294] sm:$0xf]
        %v391 = vld [vmem:[#allocation2 + $0x298] sm:$0xf]
        %v392 = vld [vmem:[#allocation2 + $0x29c] sm:$0xf]
        %v393 = vld [vmem:[#allocation2 + $0x2a0] sm:$0xf]
        %v394 = vld [vmem:[#allocation2 + $0x2a4] sm:$0xf]
        %v395 = vld [vmem:[#allocation2 + $0x2a8] sm:$0xf]
        %v396 = vld [vmem:[#allocation2 + $0x2ac] sm:$0xf]
        %v397 = vld [vmem:[#allocation2 + $0x2b0] sm:$0xf]
        %v398 = vld [vmem:[#allocation2 + $0x2b4] sm:$0xf]
        %v399 = vld [vmem:[#allocation2 + $0x2b8] sm:$0xf]
        %v400 = vld [vmem:[#allocation2 + $0x2bc] sm:$0xf]
        %v401 = vld [vmem:[#allocation2 + $0x2c0] sm:$0xf]
        %v402 = vld [vmem:[#allocation2 + $0x2c4] sm:$0xf]
        %v403 = vld [vmem:[#allocation2 + $0x2c8] sm:$0xf]
        %v404 = vld [vmem:[#allocation2 + $0x2cc] sm:$0xf]
        %v405 = vld [vmem:[#allocation2 + $0x2d0] sm:$0xf]
        %v406 = vld [vmem:[#allocation2 + $0x2d4] sm:$0xf]
        %v407 = vld [vmem:[#allocation2 + $0x2d8] sm:$0xf]
        %v408 = vld [vmem:[#allocation2 + $0x2dc] sm:$0xf]
        %v409 = vld [vmem:[#allocation2 + $0x2e0] sm:$0xf]
        %v410 = vld [vmem:[#allocation2 + $0x2e4] sm:$0xf]
        %v411 = vld [vmem:[#allocation2 + $0x2e8] sm:$0xf]
        %v412 = vld [vmem:[#allocation2 + $0x2ec] sm:$0xf]
        %v413 = vld [vmem:[#allocation2 + $0x2f0] sm:$0xf]
        %v414 = vld [vmem:[#allocation2 + $0x2f4] sm:$0xf]
        %v415 = vld [vmem:[#allocation2 + $0x2f8] sm:$0xf]
        %v416 = vld [vmem:[#allocation2 + $0x2fc] sm:$0xf]
        %v417 = vld [vmem:[#allocation2 + $0x300] sm:$0xf]
        %v418 = vld [vmem:[#allocation2 + $0x304] sm:$0xf]
        %v419 = vld [vmem:[#allocation2 + $0x308] sm:$0xf]
        %v420 = vld [vmem:[#allocation2 + $0x30c] sm:$0xf]
        %v421 = vld [vmem:[#allocation2 + $0x310] sm:$0xf]
        %v422 = vld [vmem:[#allocation2 + $0x314] sm:$0xf]
        %v423 = vld [vmem:[#allocation2 + $0x318] sm:$0xf]
        %v424 = vld [vmem:[#allocation2 + $0x31c] sm:$0xf]
        %v425 = vld [vmem:[#allocation2 + $0x320] sm:$0xf]
        %v426 = vld [vmem:[#allocation2 + $0x324] sm:$0xf]
        %v427 = vld [vmem:[#allocation2 + $0x328] sm:$0xf]
        %v428 = vld [vmem:[#allocation2 + $0x32c] sm:$0xf]
        %v429 = vld [vmem:[#allocation2 + $0x330] sm:$0xf]
        %v430 = vld [vmem:[#allocation2 + $0x334] sm:$0xf]
        %v431 = vld [vmem:[#allocation2 + $0x338] sm:$0xf]
        %v432 = vld [vmem:[#allocation2 + $0x33c] sm:$0xf]
        %v433 = vld [vmem:[#allocation2 + $0x340] sm:$0xf]
        %v434 = vld [vmem:[#allocation2 + $0x344] sm:$0xf]
        %v435 = vld [vmem:[#allocation2 + $0x348] sm:$0xf]
        %v436 = vld [vmem:[#allocation2 + $0x34c] sm:$0xf]
        %v437 = vld [vmem:[#allocation2 + $0x350] sm:$0xf]
        %v438 = vld [vmem:[#allocation2 + $0x354] sm:$0xf]
        %v439 = vld [vmem:[#allocation2 + $0x358] sm:$0xf]
        %v440 = vld [vmem:[#allocation2 + $0x35c] sm:$0xf]
        %v441 = vld [vmem:[#allocation2 + $0x360] sm:$0xf]
        %v442 = vld [vmem:[#allocation2 + $0x364] sm:$0xf]
        %v443 = vld [vmem:[#allocation2 + $0x368] sm:$0xf]
        %v444 = vld [vmem:[#allocation2 + $0x36c] sm:$0xf]
        %v445 = vld [vmem:[#allocation2 + $0x370] sm:$0xf]
        %v446 = vld [vmem:[#allocation2 + $0x374] sm:$0xf]
        %v447 = vld [vmem:[#allocation2 + $0x378] sm:$0xf]
        %v448 = vld [vmem:[#allocation2 + $0x37c] sm:$0xf]
        %v449 = vld [vmem:[#allocation2 + $0x380] sm:$0xf]
        %v450 = vld [vmem:[#allocation2 + $0x384] sm:$0xf]
        %v451 = vld [vmem:[#allocation2 + $0x388] sm:$0xf]
        %v452 = vld [vmem:[#allocation2 + $0x38c] sm:$0xf]
        %v453 = vld [vmem:[#allocation2 + $0x390] sm:$0xf]
        %v454 = vld [vmem:[#allocation2 + $0x394] sm:$0xf]
        %v455 = vld [vmem:[#allocation2 + $0x398] sm:$0xf]
        %v456 = vld [vmem:[#allocation2 + $0x39c] sm:$0xf]
        %v457 = vld [vmem:[#allocation2 + $0x3a0] sm:$0xf]
        %v458 = vld [vmem:[#allocation2 + $0x3a4] sm:$0xf]
        %v459 = vld [vmem:[#allocation2 + $0x3a8] sm:$0xf]
        %v460 = vld [vmem:[#allocation2 + $0x3ac] sm:$0xf]
        %v461 = vld [vmem:[#allocation2 + $0x3b0] sm:$0xf]
        %v462 = vld [vmem:[#allocation2 + $0x3b4] sm:$0xf]
        %v463 = vld [vmem:[#allocation2 + $0x3b8] sm:$0xf]
        %v464 = vld [vmem:[#allocation2 + $0x3bc] sm:$0xf]
        %v465 = vld [vmem:[#allocation2 + $0x3c0] sm:$0xf]
        %v466 = vld [vmem:[#allocation2 + $0x3c4] sm:$0xf]
        %v467 = vld [vmem:[#allocation2 + $0x3c8] sm:$0xf]
        %v468 = vld [vmem:[#allocation2 + $0x3cc] sm:$0xf]
        %v469 = vld [vmem:[#allocation2 + $0x3d0] sm:$0xf]
        %v470 = vld [vmem:[#allocation2 + $0x3d4] sm:$0xf]
        %v471 = vld [vmem:[#allocation2 + $0x3d8] sm:$0xf]
        %v472 = vld [vmem:[#allocation2 + $0x3dc] sm:$0xf]
        %v473 = vld [vmem:[#allocation2 + $0x3e0] sm:$0xf]
        %v474 = vld [vmem:[#allocation2 + $0x3e4] sm:$0xf]
        %v475 = vld [vmem:[#allocation2 + $0x3e8] sm:$0xf]
        %v476 = vld [vmem:[#allocation2 + $0x3ec] sm:$0xf]
        %v477 = vld [vmem:[#allocation2 + $0x3f0] sm:$0xf]
        %v478 = vld [vmem:[#allocation2 + $0x3f4] sm:$0xf]
        %v479 = vld [vmem:[#allocation2 + $0x3f8] sm:$0xf]
        %v480 = vld [vmem:[#allocation2 + $0x3fc] sm:$0xf]
        %v481 = vld [vmem:[#allocation2 + $0x400] sm:$0xf]
        %v482 = vld [vmem:[#allocation2 + $0x404] sm:$0xf]
        %v483 = vld [vmem:[#allocation2 + $0x408] sm:$0xf]
        %v484 = vld [vmem:[#allocation2 + $0x40c] sm:$0xf]
        %v485 = vld [vmem:[#allocation2 + $0x410] sm:$0xf]
        %v486 = vld [vmem:[#allocation2 + $0x414] sm:$0xf]
        %v487 = vld [vmem:[#allocation2 + $0x418] sm:$0xf]
        %v488 = vld [vmem:[#allocation2 + $0x41c] sm:$0xf]
        %v489 = vld [vmem:[#allocation2 + $0x420] sm:$0xf]
        %v490 = vld [vmem:[#allocation2 + $0x424] sm:$0xf]
        %v491 = vld [vmem:[#allocation2 + $0x428] sm:$0xf]
        %v492 = vld [vmem:[#allocation2 + $0x42c] sm:$0xf]
        %v493 = vld [vmem:[#allocation2 + $0x430] sm:$0xf]
        %v494 = vld [vmem:[#allocation2 + $0x434] sm:$0xf]
        %v495 = vld [vmem:[#allocation2 + $0x438] sm:$0xf]
        %v496 = vld [vmem:[#allocation2 + $0x43c] sm:$0xf]
        %v497 = vld [vmem:[#allocation2 + $0x440] sm:$0xf]
        %v498 = vld [vmem:[#allocation2 + $0x444] sm:$0xf]
        %v499 = vld [vmem:[#allocation2 + $0x448] sm:$0xf]
        %v500 = vld [vmem:[#allocation2 + $0x44c] sm:$0xf]
        %v501 = vld [vmem:[#allocation2 + $0x450] sm:$0xf]
        %v502 = vld [vmem:[#allocation2 + $0x454] sm:$0xf]
        %v503 = vld [vmem:[#allocation2 + $0x458] sm:$0xf]
        %v504 = vld [vmem:[#allocation2 + $0x45c] sm:$0xf]
        %v505 = vld [vmem:[#allocation2 + $0x460] sm:$0xf]
        %v506 = vld [vmem:[#allocation2 + $0x464] sm:$0xf]
        %v507 = vld [vmem:[#allocation2 + $0x468] sm:$0xf]
        %v508 = vld [vmem:[#allocation2 + $0x46c] sm:$0xf]
        %v509 = vld [vmem:[#allocation2 + $0x470] sm:$0xf]
        %v510 = vld [vmem:[#allocation2 + $0x474] sm:$0xf]
        %v511 = vld [vmem:[#allocation2 + $0x478] sm:$0xf]
        %v512 = vld [vmem:[#allocation2 + $0x47c] sm:$0xf]
        %v513 = vld [vmem:[#allocation2 + $0x480] sm:$0xf]
        %v514 = vld [vmem:[#allocation2 + $0x484] sm:$0xf]
        %v515 = vld [vmem:[#allocation2 + $0x488] sm:$0xf]
        %v516 = vld [vmem:[#allocation2 + $0x48c] sm:$0xf]
        %v517 = vld [vmem:[#allocation2 + $0x490] sm:$0xf]
        %v518 = vld [vmem:[#allocation2 + $0x494] sm:$0xf]
        %v519 = vld [vmem:[#allocation2 + $0x498] sm:$0xf]
        %v520 = vld [vmem:[#allocation2 + $0x49c] sm:$0xf]
        %v521 = vld [vmem:[#allocation2 + $0x4a0] sm:$0xf]
        %v522 = vld [vmem:[#allocation2 + $0x4a4] sm:$0xf]
        %v523 = vld [vmem:[#allocation2 + $0x4a8] sm:$0xf]
        %v524 = vld [vmem:[#allocation2 + $0x4ac] sm:$0xf]
        %v525 = vld [vmem:[#allocation2 + $0x4b0] sm:$0xf]
        %v526 = vld [vmem:[#allocation2 + $0x4b4] sm:$0xf]
        %v527 = vld [vmem:[#allocation2 + $0x4b8] sm:$0xf]
        %v528 = vld [vmem:[#allocation2 + $0x4bc] sm:$0xf]
        %v529 = vld [vmem:[#allocation2 + $0x4c0] sm:$0xf]
        %v530 = vld [vmem:[#allocation2 + $0x4c4] sm:$0xf]
        %v531 = vld [vmem:[#allocation2 + $0x4c8] sm:$0xf]
        %v532 = vld [vmem:[#allocation2 + $0x4cc] sm:$0xf]
        %v533 = vld [vmem:[#allocation2 + $0x4d0] sm:$0xf]
        %v534 = vld [vmem:[#allocation2 + $0x4d4] sm:$0xf]
        %v535 = vld [vmem:[#allocation2 + $0x4d8] sm:$0xf]
        %v536 = vld [vmem:[#allocation2 + $0x4dc] sm:$0xf]
        %v537 = vld [vmem:[#allocation2 + $0x4e0] sm:$0xf]
        %v538 = vld [vmem:[#allocation2 + $0x4e4] sm:$0xf]
        %v539 = vld [vmem:[#allocation2 + $0x4e8] sm:$0xf]
        %v540 = vld [vmem:[#allocation2 + $0x4ec] sm:$0xf]
        %v541 = vld [vmem:[#allocation2 + $0x4f0] sm:$0xf]
        %v542 = vld [vmem:[#allocation2 + $0x4f4] sm:$0xf]
        %v543 = vld [vmem:[#allocation2 + $0x4f8] sm:$0xf]
        %v544 = vld [vmem:[#allocation2 + $0x4fc] sm:$0xf]
        %v545 = vld [vmem:[#allocation2 + $0x500] sm:$0xf]
        %v546 = vld [vmem:[#allocation2 + $0x504] sm:$0xf]
        %v547 = vld [vmem:[#allocation2 + $0x508] sm:$0xf]
        %v548 = vld [vmem:[#allocation2 + $0x50c] sm:$0xf]
        %v549 = vld [vmem:[#allocation2 + $0x510] sm:$0xf]
        %v550 = vld [vmem:[#allocation2 + $0x514] sm:$0xf]
        %v551 = vld [vmem:[#allocation2 + $0x518] sm:$0xf]
        %v552 = vld [vmem:[#allocation2 + $0x51c] sm:$0xf]
        %v553 = vld [vmem:[#allocation2 + $0x520] sm:$0xf]
        %v554 = vld [vmem:[#allocation2 + $0x524] sm:$0xf]
        %v555 = vld [vmem:[#allocation2 + $0x528] sm:$0xf]
        %v556 = vld [vmem:[#allocation2 + $0x52c] sm:$0xf]
        %v557 = vld [vmem:[#allocation2 + $0x530] sm:$0xf]
        %v558 = vld [vmem:[#allocation2 + $0x534] sm:$0xf]
        %v559 = vld [vmem:[#allocation2 + $0x538] sm:$0xf]
        %v560 = vld [vmem:[#allocation2 + $0x53c] sm:$0xf]
        %v561 = vld [vmem:[#allocation2 + $0x540] sm:$0xf]
        %v562 = vld [vmem:[#allocation2 + $0x544] sm:$0xf]
        %v563 = vld [vmem:[#allocation2 + $0x548] sm:$0xf]
        %v564 = vld [vmem:[#allocation2 + $0x54c] sm:$0xf]
        %v565 = vld [vmem:[#allocation2 + $0x550] sm:$0xf]
        %v566 = vld [vmem:[#allocation2 + $0x554] sm:$0xf]
        %v567 = vld [vmem:[#allocation2 + $0x558] sm:$0xf]
        %v568 = vld [vmem:[#allocation2 + $0x55c] sm:$0xf]
        %v569 = vld [vmem:[#allocation2 + $0x560] sm:$0xf]
        %v570 = vld [vmem:[#allocation2 + $0x564] sm:$0xf]
        %v571 = vld [vmem:[#allocation2 + $0x568] sm:$0xf]
        %v572 = vld [vmem:[#allocation2 + $0x56c] sm:$0xf]
        %v573 = vld [vmem:[#allocation2 + $0x570] sm:$0xf]
        %v574 = vld [vmem:[#allocation2 + $0x574] sm:$0xf]
        %v575 = vld [vmem:[#allocation2 + $0x578] sm:$0xf]
        %v576 = vld [vmem:[#allocation2 + $0x57c] sm:$0xf]
        %v577 = vld [vmem:[#allocation2 + $0x580] sm:$0xf]
        %v578 = vld [vmem:[#allocation2 + $0x584] sm:$0xf]
        %v579 = vld [vmem:[#allocation2 + $0x588] sm:$0xf]
        %v580 = vld [vmem:[#allocation2 + $0x58c] sm:$0xf]
        %v581 = vld [vmem:[#allocation2 + $0x590] sm:$0xf]
        %v582 = vld [vmem:[#allocation2 + $0x594] sm:$0xf]
        %v583 = vld [vmem:[#allocation2 + $0x598] sm:$0xf]
        %v584 = vld [vmem:[#allocation2 + $0x59c] sm:$0xf]
        %v585 = vld [vmem:[#allocation2 + $0x5a0] sm:$0xf]
        %v586 = vld [vmem:[#allocation2 + $0x5a4] sm:$0xf]
        %v587 = vld [vmem:[#allocation2 + $0x5a8] sm:$0xf]
        %v588 = vld [vmem:[#allocation2 + $0x5ac] sm:$0xf]
        %v589 = vld [vmem:[#allocation2 + $0x5b0] sm:$0xf]
        %v590 = vld [vmem:[#allocation2 + $0x5b4] sm:$0xf]
        %v591 = vld [vmem:[#allocation2 + $0x5b8] sm:$0xf]
        %v592 = vld [vmem:[#allocation2 + $0x5bc] sm:$0xf]
        %v593 = vld [vmem:[#allocation2 + $0x5c0] sm:$0xf]
        %v594 = vld [vmem:[#allocation2 + $0x5c4] sm:$0xf]
        %v595 = vld [vmem:[#allocation2 + $0x5c8] sm:$0xf]
        %v596 = vld [vmem:[#allocation2 + $0x5cc] sm:$0xf]
        %v597 = vld [vmem:[#allocation2 + $0x5d0] sm:$0xf]
        %v598 = vld [vmem:[#allocation2 + $0x5d4] sm:$0xf]
        %v599 = vld [vmem:[#allocation2 + $0x5d8] sm:$0xf]
        %v600 = vld [vmem:[#allocation2 + $0x5dc] sm:$0xf]
        %v601 = vld [vmem:[#allocation2 + $0x5e0] sm:$0xf]
        %v602 = vld [vmem:[#allocation2 + $0x5e4] sm:$0xf]
        %v603 = vld [vmem:[#allocation2 + $0x5e8] sm:$0xf]
        %v604 = vld [vmem:[#allocation2 + $0x5ec] sm:$0xf]
        %v605 = vld [vmem:[#allocation2 + $0x5f0] sm:$0xf]
        %v606 = vld [vmem:[#allocation2 + $0x5f4] sm:$0xf]
        %v607 = vld [vmem:[#allocation2 + $0x5f8] sm:$0xf]
        %v608 = vld [vmem:[#allocation2 + $0x5fc] sm:$0xf]
        %v609 = vld [vmem:[#allocation2 + $0x600] sm:$0xf]
        %v610 = vld [vmem:[#allocation2 + $0x604] sm:$0xf]
        %v611 = vld [vmem:[#allocation2 + $0x608] sm:$0xf]
        %v612 = vld [vmem:[#allocation2 + $0x60c] sm:$0xf]
        %v613 = vld [vmem:[#allocation2 + $0x610] sm:$0xf]
        %v614 = vld [vmem:[#allocation2 + $0x614] sm:$0xf]
        %v615 = vld [vmem:[#allocation2 + $0x618] sm:$0xf]
        %v616 = vld [vmem:[#allocation2 + $0x61c] sm:$0xf]
        %v617 = vld [vmem:[#allocation2 + $0x620] sm:$0xf]
        %v618 = vld [vmem:[#allocation2 + $0x624] sm:$0xf]
        %v619 = vld [vmem:[#allocation2 + $0x628] sm:$0xf]
        %v620 = vld [vmem:[#allocation2 + $0x62c] sm:$0xf]
        %v621 = vld [vmem:[#allocation2 + $0x630] sm:$0xf]
        %v622 = vld [vmem:[#allocation2 + $0x634] sm:$0xf]
        %v623 = vld [vmem:[#allocation2 + $0x638] sm:$0xf]
        %v624 = vld [vmem:[#allocation2 + $0x63c] sm:$0xf]
        %v625 = vld [vmem:[#allocation2 + $0x640] sm:$0xf]
        %v626 = vld [vmem:[#allocation2 + $0x644] sm:$0xf]
        %v627 = vld [vmem:[#allocation2 + $0x648] sm:$0xf]
        %v628 = vld [vmem:[#allocation2 + $0x64c] sm:$0xf]
        %v629 = vld [vmem:[#allocation2 + $0x650] sm:$0xf]
        %v630 = vld [vmem:[#allocation2 + $0x654] sm:$0xf]
        %v631 = vld [vmem:[#allocation2 + $0x658] sm:$0xf]
        %v632 = vld [vmem:[#allocation2 + $0x65c] sm:$0xf]
        %v633 = vld [vmem:[#allocation2 + $0x660] sm:$0xf]
        %v634 = vld [vmem:[#allocation2 + $0x664] sm:$0xf]
        %v635 = vld [vmem:[#allocation2 + $0x668] sm:$0xf]
        %v636 = vld [vmem:[#allocation2 + $0x66c] sm:$0xf]
        %v637 = vld [vmem:[#allocation2 + $0x670] sm:$0xf]
        %v638 = vld [vmem:[#allocation2 + $0x674] sm:$0xf]
        %v639 = vld [vmem:[#allocation2 + $0x678] sm:$0xf]
        %v640 = vld [vmem:[#allocation2 + $0x67c] sm:$0xf]
        %v641 = vld [vmem:[#allocation2 + $0x680] sm:$0xf]
        %v642 = vld [vmem:[#allocation2 + $0x684] sm:$0xf]
        %v643 = vld [vmem:[#allocation2 + $0x688] sm:$0xf]
        %v644 = vld [vmem:[#allocation2 + $0x68c] sm:$0xf]
        %v645 = vld [vmem:[#allocation2 + $0x690] sm:$0xf]
        %v646 = vld [vmem:[#allocation2 + $0x694] sm:$0xf]
        %v647 = vld [vmem:[#allocation2 + $0x698] sm:$0xf]
        %v648 = vld [vmem:[#allocation2 + $0x69c] sm:$0xf]
        %v649 = vld [vmem:[#allocation2 + $0x6a0] sm:$0xf]
        %v650 = vld [vmem:[#allocation2 + $0x6a4] sm:$0xf]
        %v651 = vld [vmem:[#allocation2 + $0x6a8] sm:$0xf]
        %v652 = vld [vmem:[#allocation2 + $0x6ac] sm:$0xf]
        %v653 = vld [vmem:[#allocation2 + $0x6b0] sm:$0xf]
        %v654 = vld [vmem:[#allocation2 + $0x6b4] sm:$0xf]
        %v655 = vld [vmem:[#allocation2 + $0x6b8] sm:$0xf]
        %v656 = vld [vmem:[#allocation2 + $0x6bc] sm:$0xf]
        %v657 = vld [vmem:[#allocation2 + $0x6c0] sm:$0xf]
        %v658 = vld [vmem:[#allocation2 + $0x6c4] sm:$0xf]
        %v659 = vld [vmem:[#allocation2 + $0x6c8] sm:$0xf]
        %v660 = vld [vmem:[#allocation2 + $0x6cc] sm:$0xf]
        %v661 = vld [vmem:[#allocation2 + $0x6d0] sm:$0xf]
        %v662 = vld [vmem:[#allocation2 + $0x6d4] sm:$0xf]
        %v663 = vld [vmem:[#allocation2 + $0x6d8] sm:$0xf]
        %v664 = vld [vmem:[#allocation2 + $0x6dc] sm:$0xf]
        %v665 = vld [vmem:[#allocation2 + $0x6e0] sm:$0xf]
        %v666 = vld [vmem:[#allocation2 + $0x6e4] sm:$0xf]
        %v667 = vld [vmem:[#allocation2 + $0x6e8] sm:$0xf]
        %v668 = vld [vmem:[#allocation2 + $0x6ec] sm:$0xf]
        %v669 = vld [vmem:[#allocation2 + $0x6f0] sm:$0xf]
        %v670 = vld [vmem:[#allocation2 + $0x6f4] sm:$0xf]
        %v671 = vld [vmem:[#allocation2 + $0x6f8] sm:$0xf]
        %v672 = vld [vmem:[#allocation2 + $0x6fc] sm:$0xf]
        %v673 = vld [vmem:[#allocation2 + $0x700] sm:$0xf]
        %v674 = vld [vmem:[#allocation2 + $0x704] sm:$0xf]
        %v675 = vld [vmem:[#allocation2 + $0x708] sm:$0xf]
        %v676 = vld [vmem:[#allocation2 + $0x70c] sm:$0xf]
        %v677 = vld [vmem:[#allocation2 + $0x710] sm:$0xf]
        %v678 = vld [vmem:[#allocation2 + $0x714] sm:$0xf]
        %v679 = vld [vmem:[#allocation2 + $0x718] sm:$0xf]
        %v680 = vld [vmem:[#allocation2 + $0x71c] sm:$0xf]
        %v681 = vld [vmem:[#allocation2 + $0x720] sm:$0xf]
        %v682 = vld [vmem:[#allocation2 + $0x724] sm:$0xf]
        %v683 = vld [vmem:[#allocation2 + $0x728] sm:$0xf]
        %v684 = vld [vmem:[#allocation2 + $0x72c] sm:$0xf]
        %v685 = vld [vmem:[#allocation2 + $0x730] sm:$0xf]
        %v686 = vld [vmem:[#allocation2 + $0x734] sm:$0xf]
        %v687 = vld [vmem:[#allocation2 + $0x738] sm:$0xf]
        %v688 = vld [vmem:[#allocation2 + $0x73c] sm:$0xf]
        %v689 = vld [vmem:[#allocation2 + $0x740] sm:$0xf]
        %v690 = vld [vmem:[#allocation2 + $0x744] sm:$0xf]
        %v691 = vld [vmem:[#allocation2 + $0x748] sm:$0xf]
        %v692 = vld [vmem:[#allocation2 + $0x74c] sm:$0xf]
        %v693 = vld [vmem:[#allocation2 + $0x750] sm:$0xf]
        %v694 = vld [vmem:[#allocation2 + $0x754] sm:$0xf]
        %v695 = vld [vmem:[#allocation2 + $0x758] sm:$0xf]
        %v696 = vld [vmem:[#allocation2 + $0x75c] sm:$0xf]
        %v697 = vld [vmem:[#allocation2 + $0x760] sm:$0xf]
        %v698 = vld [vmem:[#allocation2 + $0x764] sm:$0xf]
        %v699 = vld [vmem:[#allocation2 + $0x768] sm:$0xf]
        %v700 = vld [vmem:[#allocation2 + $0x76c] sm:$0xf]
        %v701 = vld [vmem:[#allocation2 + $0x770] sm:$0xf]
        %v702 = vld [vmem:[#allocation2 + $0x774] sm:$0xf]
        %v703 = vld [vmem:[#allocation2 + $0x778] sm:$0xf]
        %v704 = vld [vmem:[#allocation2 + $0x77c] sm:$0xf]
        %v705 = vld [vmem:[#allocation2 + $0x780] sm:$0xf]
        %v706 = vld [vmem:[#allocation2 + $0x784] sm:$0xf]
        %v707 = vld [vmem:[#allocation2 + $0x788] sm:$0xf]
        %v708 = vld [vmem:[#allocation2 + $0x78c] sm:$0xf]
        %v709 = vld [vmem:[#allocation2 + $0x790] sm:$0xf]
        %v710 = vld [vmem:[#allocation2 + $0x794] sm:$0xf]
        %v711 = vld [vmem:[#allocation2 + $0x798] sm:$0xf]
        %v712 = vld [vmem:[#allocation2 + $0x79c] sm:$0xf]
        %v713 = vld [vmem:[#allocation2 + $0x7a0] sm:$0xf]
        %v714 = vld [vmem:[#allocation2 + $0x7a4] sm:$0xf]
        %v715 = vld [vmem:[#allocation2 + $0x7a8] sm:$0xf]
        %v716 = vld [vmem:[#allocation2 + $0x7ac] sm:$0xf]
        %v717 = vld [vmem:[#allocation2 + $0x7b0] sm:$0xf]
        %v718 = vld [vmem:[#allocation2 + $0x7b4] sm:$0xf]
        %v719 = vld [vmem:[#allocation2 + $0x7b8] sm:$0xf]
        %v720 = vld [vmem:[#allocation2 + $0x7bc] sm:$0xf]
        %v721 = vld [vmem:[#allocation2 + $0x7c0] sm:$0xf]
        %v722 = vld [vmem:[#allocation2 + $0x7c4] sm:$0xf]
        %v723 = vld [vmem:[#allocation2 + $0x7c8] sm:$0xf]
        %v724 = vld [vmem:[#allocation2 + $0x7cc] sm:$0xf]
        %v725 = vld [vmem:[#allocation2 + $0x7d0] sm:$0xf]
        %v726 = vld [vmem:[#allocation2 + $0x7d4] sm:$0xf]
        %v727 = vld [vmem:[#allocation2 + $0x7d8] sm:$0xf]
        %v728 = vld [vmem:[#allocation2 + $0x7dc] sm:$0xf]
        %v729 = vld [vmem:[#allocation2 + $0x7e0] sm:$0xf]
        %v730 = vld [vmem:[#allocation2 + $0x7e4] sm:$0xf]
        %v731 = vld [vmem:[#allocation2 + $0x7e8] sm:$0xf]
        %v732 = vld [vmem:[#allocation2 + $0x7ec] sm:$0xf]
        %v733 = vld [vmem:[#allocation2 + $0x7f0] sm:$0xf]
        %v734 = vld [vmem:[#allocation2 + $0x7f4] sm:$0xf]
        %v735 = vld [vmem:[#allocation2 + $0x7f8] sm:$0xf]
        %v736 = vld [vmem:[#allocation2 + $0x7fc] sm:$0xf]
        %v737 = vld [vmem:[#allocation2 + $0x800] sm:$0xf]
        %v738 = vld [vmem:[#allocation2 + $0x804] sm:$0xf]
        %v739 = vld [vmem:[#allocation2 + $0x808] sm:$0xf]
        %v740 = vld [vmem:[#allocation2 + $0x80c] sm:$0xf]
        %v741 = vld [vmem:[#allocation2 + $0x810] sm:$0xf]
        %v742 = vld [vmem:[#allocation2 + $0x814] sm:$0xf]
        %v743 = vld [vmem:[#allocation2 + $0x818] sm:$0xf]
        %v744 = vld [vmem:[#allocation2 + $0x81c] sm:$0xf]
        %v745 = vld [vmem:[#allocation2 + $0x820] sm:$0xf]
        %v746 = vld [vmem:[#allocation2 + $0x824] sm:$0xf]
        %v747 = vld [vmem:[#allocation2 + $0x828] sm:$0xf]
        %v748 = vld [vmem:[#allocation2 + $0x82c] sm:$0xf]
        %v749 = vld [vmem:[#allocation2 + $0x830] sm:$0xf]
        %v750 = vld [vmem:[#allocation2 + $0x834] sm:$0xf]
        %v751 = vld [vmem:[#allocation2 + $0x838] sm:$0xf]
        %v752 = vld [vmem:[#allocation2 + $0x83c] sm:$0xf]
        %v753 = vld [vmem:[#allocation2 + $0x840] sm:$0xf]
        %v754 = vld [vmem:[#allocation2 + $0x844] sm:$0xf]
        %v755 = vld [vmem:[#allocation2 + $0x848] sm:$0xf]
        %v756 = vld [vmem:[#allocation2 + $0x84c] sm:$0xf]
        %v757 = vld [vmem:[#allocation2 + $0x850] sm:$0xf]
        %v758 = vld [vmem:[#allocation2 + $0x854] sm:$0xf]
        %v759 = vld [vmem:[#allocation2 + $0x858] sm:$0xf]
        %v760 = vld [vmem:[#allocation2 + $0x85c] sm:$0xf]
        %v761 = vld [vmem:[#allocation2 + $0x860] sm:$0xf]
        %v762 = vld [vmem:[#allocation2 + $0x864] sm:$0xf]
        %v763 = vld [vmem:[#allocation2 + $0x868] sm:$0xf]
        %v764 = vld [vmem:[#allocation2 + $0x86c] sm:$0xf]
        %v765 = vld [vmem:[#allocation2 + $0x870] sm:$0xf]
        %v766 = vld [vmem:[#allocation2 + $0x874] sm:$0xf]
        %v767 = vld [vmem:[#allocation2 + $0x878] sm:$0xf]
        %v768 = vld [vmem:[#allocation2 + $0x87c] sm:$0xf]
        %v769 = vld [vmem:[#allocation2 + $0x880] sm:$0xf]
        %v770 = vld [vmem:[#allocation2 + $0x884] sm:$0xf]
        %v771 = vld [vmem:[#allocation2 + $0x888] sm:$0xf]
        %v772 = vld [vmem:[#allocation2 + $0x88c] sm:$0xf]
        %v773 = vld [vmem:[#allocation2 + $0x890] sm:$0xf]
        %v774 = vld [vmem:[#allocation2 + $0x894] sm:$0xf]
        %v775 = vld [vmem:[#allocation2 + $0x898] sm:$0xf]
        %v776 = vld [vmem:[#allocation2 + $0x89c] sm:$0xf]
        %v777 = vld [vmem:[#allocation2 + $0x8a0] sm:$0xf]
        %v778 = vld [vmem:[#allocation2 + $0x8a4] sm:$0xf]
        %v779 = vld [vmem:[#allocation2 + $0x8a8] sm:$0xf]
        %v780 = vld [vmem:[#allocation2 + $0x8ac] sm:$0xf]
        %v781 = vld [vmem:[#allocation2 + $0x8b0] sm:$0xf]
        %v782 = vld [vmem:[#allocation2 + $0x8b4] sm:$0xf]
        %v783 = vld [vmem:[#allocation2 + $0x8b8] sm:$0xf]
        %v784 = vld [vmem:[#allocation2 + $0x8bc] sm:$0xf]
        %v785 = vld [vmem:[#allocation2 + $0x8c0] sm:$0xf]
        %v786 = vld [vmem:[#allocation2 + $0x8c4] sm:$0xf]
        %v787 = vld [vmem:[#allocation2 + $0x8c8] sm:$0xf]
        %v788 = vld [vmem:[#allocation2 + $0x8cc] sm:$0xf]
        %v789 = vld [vmem:[#allocation2 + $0x8d0] sm:$0xf]
        %v790 = vld [vmem:[#allocation2 + $0x8d4] sm:$0xf]
        %v791 = vld [vmem:[#allocation2 + $0x8d8] sm:$0xf]
        %v792 = vld [vmem:[#allocation2 + $0x8dc] sm:$0xf]
        %v793 = vld [vmem:[#allocation2 + $0x8e0] sm:$0xf]
        %v794 = vld [vmem:[#allocation2 + $0x8e4] sm:$0xf]
        %v795 = vld [vmem:[#allocation2 + $0x8e8] sm:$0xf]
        %v796 = vld [vmem:[#allocation2 + $0x8ec] sm:$0xf]
        %v797 = vld [vmem:[#allocation2 + $0x8f0] sm:$0xf]
        %v798 = vld [vmem:[#allocation2 + $0x8f4] sm:$0xf]
        %v799 = vld [vmem:[#allocation2 + $0x8f8] sm:$0xf]
        %v800 = vld [vmem:[#allocation2 + $0x8fc] sm:$0xf]
        %v801 = vld [vmem:[#allocation4] sm:$0xff]
        %v802 = vld [vmem:[%s3] sm:$0xf]
        %v803 = vld [vmem:[%s3 + $0x4] sm:$0xf]
        %v804 = vld [vmem:[%s3 + $0x8] sm:$0xf]
        %v805 = vld [vmem:[%s3 + $0xc] sm:$0xf]
        %v806 = vld [vmem:[%s3 + $0x10] sm:$0xf]
        %v807 = vld [vmem:[%s219] sm:$0xf]
        %v808 = vld [vmem:[%s219 + $0x4] sm:$0xf]
        %v809 = vld [vmem:[%s219 + $0x8] sm:$0xf]
        %v810 = vld [vmem:[%s219 + $0xc] sm:$0xf]
        %v811 = vld [vmem:[%s219 + $0x10] sm:$0xf]
        %v812 = vld [vmem:[%s219 + $0x14] sm:$0xf]
        %v813 = vld [vmem:[%s219 + $0x18] sm:$0xf]
        %v814 = vld [vmem:[%s219 + $0x1c] sm:$0xf]
        %v815 = vld [vmem:[%s219 + $0x20] sm:$0xf]
        %v816 = vld [vmem:[%s219 + $0x24] sm:$0xf]
        %v817 = vld [vmem:[%s219 + $0x28] sm:$0xf]
        %v818 = vld [vmem:[%s219 + $0x2c] sm:$0xf]
        %v830 = vunpack.c.l.b16 %v807
        %v831 = vunpack.c.l.b16 %v808
        %v832 = vunpack.c.l.b16 %v809
        %v833 = vunpack.c.l.b16 %v810
        %v834 = vunpack.c.l.b16 %v811
        %v835 = vunpack.c.l.b16 %v812
        %v836 = vunpack.c.l.b16 %v813
        %v837 = vunpack.c.l.b16 %v814
        %v838 = vunpack.c.l.b16 %v815
        %v839 = vunpack.c.l.b16 %v816
        %v840 = vunpack.c.l.b16 %v817
        %v841 = vpack.c.b16 %v831, %v830
        %v842 = vpack.c.b16 %v833, %v832
        %v843 = vpack.c.b16 %v835, %v834
        %v844 = vpack.c.b16 %v837, %v836
        %v845 = vpack.c.b16 %v839, %v838
        %v846 = vpack.c.b16 %v840, %v840
        %v854 = vunpack.c.l.b16 %v818
        %v855 = vpack.c.b16 %v854, %v840
        %vm856 = vsmask.f32 7424
        %v858 = vshrl.u32 %v841, 16
        %v860 = vshll.u32 %v841, 16
        %v862 = vrot.slane %v860, 1
        %v863 = vor.u32 %v858, %v862
        %v865 = vshll.u32 %v842, 16
        %v867 = vrot.slane %v865, 1
        %v868 = vsel %vm856, %v863, %v867
        %v869 = vshrl.u32 %v842, 16
        %v871 = vor.u32 %v869, %v867
        %v873 = vshll.u32 %v843, 16
        %v875 = vrot.slane %v873, 1
        %v876 = vsel %vm856, %v871, %v875
        %v877 = vshrl.u32 %v843, 16
        %v879 = vor.u32 %v877, %v875
        %v881 = vshll.u32 %v844, 16
        %v883 = vrot.slane %v881, 1
        %v884 = vsel %vm856, %v879, %v883
        %v885 = vshrl.u32 %v844, 16
        %v887 = vor.u32 %v885, %v883
        %v889 = vshll.u32 %v845, 16
        %v891 = vrot.slane %v889, 1
        %v892 = vsel %vm856, %v887, %v891
        %v893 = vshrl.u32 %v845, 16
        %v895 = vor.u32 %v893, %v891
        %v897 = vshll.u32 %v855, 16
        %v899 = vrot.slane %v897, 1
        %v900 = vsel %vm856, %v895, %v899
        %v901 = vshrl.u32 %v855, 16
        %v903 = vor.u32 %v901, %v899
        %vm910 = vcmask 1046528
        %v911 = vrot.slane %v841, 1
        %v912 = vrot.slane %v842, 1
        %v913 = vsel %vm910, %v911, %v912
        %v914 = vrot.slane %v843, 1
        %v915 = vsel %vm910, %v912, %v914
        %v916 = vrot.slane %v844, 1
        %v917 = vsel %vm910, %v914, %v916
        %v918 = vrot.slane %v845, 1
        %v919 = vsel %vm910, %v916, %v918
        %v920 = vrot.slane %v855, 1
        %v921 = vsel %vm910, %v918, %v920
        %v928 = vlaneseq
        %v929 = vshrl.u32 %v928, 7
        %v930 = vsub.s32 0, %v929
        %v931 = vrot.slane %v801, %v930
        %v980 = vunpack.c.l.b16 %v225
        %v981 = vunpack.c.l.b16 %v226
        %v982 = vunpack.c.l.b16 %v227
        %v983 = vunpack.c.l.b16 %v228
        %v984 = vunpack.c.l.b16 %v229
        %v985 = vunpack.c.l.b16 %v230
        %v986 = vunpack.c.l.b16 %v231
        %v987 = vunpack.c.l.b16 %v232
        %v988 = vunpack.c.l.b16 %v233
        %v989 = vunpack.c.l.b16 %v234
        %v990 = vunpack.c.l.b16 %v235
        %v991 = vunpack.c.l.b16 %v236
        %v992 = vunpack.c.l.b16 %v237
        %v993 = vunpack.c.l.b16 %v238
        %v994 = vunpack.c.l.b16 %v239
        %v995 = vunpack.c.l.b16 %v240
        %v996 = vunpack.c.l.b16 %v241
        %v997 = vunpack.c.l.b16 %v242
        %v998 = vunpack.c.l.b16 %v243
        %v999 = vunpack.c.l.b16 %v244
        %v1000 = vunpack.c.l.b16 %v245
        %v1001 = vunpack.c.l.b16 %v246
        %v1002 = vunpack.c.l.b16 %v247
        %v1003 = vunpack.c.l.b16 %v248
        %v1004 = vunpack.c.l.b16 %v249
        %v1005 = vunpack.c.l.b16 %v250
        %v1006 = vunpack.c.l.b16 %v251
        %v1007 = vunpack.c.l.b16 %v252
        %v1008 = vunpack.c.l.b16 %v253
        %v1009 = vunpack.c.l.b16 %v254
        %v1010 = vunpack.c.l.b16 %v255
        %v1011 = vunpack.c.l.b16 %v256
        %v1012 = vunpack.c.l.b16 %v257
        %v1013 = vunpack.c.l.b16 %v258
        %v1014 = vunpack.c.l.b16 %v259
        %v1015 = vunpack.c.l.b16 %v260
        %v1016 = vunpack.c.l.b16 %v261
        %v1017 = vunpack.c.l.b16 %v262
        %v1018 = vunpack.c.l.b16 %v263
        %v1019 = vunpack.c.l.b16 %v264
        %v1020 = vunpack.c.l.b16 %v265
        %v1021 = vunpack.c.l.b16 %v266
        %v1022 = vunpack.c.l.b16 %v267
        %v1023 = vunpack.c.l.b16 %v268
        %v1024 = vunpack.c.l.b16 %v269
        %v1025 = vunpack.c.l.b16 %v270
        %v1026 = vunpack.c.l.b16 %v271
        %v1027 = vunpack.c.l.b16 %v272
        %v1028 = vpack.c.b16 %v981, %v980
        %v1029 = vpack.c.b16 %v983, %v982
        %v1030 = vpack.c.b16 %v985, %v984
        %v1031 = vpack.c.b16 %v987, %v986
        %v1032 = vpack.c.b16 %v989, %v988
        %v1033 = vpack.c.b16 %v991, %v990
        %v1034 = vpack.c.b16 %v993, %v992
        %v1035 = vpack.c.b16 %v995, %v994
        %v1036 = vpack.c.b16 %v997, %v996
        %v1037 = vpack.c.b16 %v999, %v998
        %v1038 = vpack.c.b16 %v1001, %v1000
        %v1039 = vpack.c.b16 %v1003, %v1002
        %v1040 = vpack.c.b16 %v1005, %v1004
        %v1041 = vpack.c.b16 %v1007, %v1006
        %v1042 = vpack.c.b16 %v1009, %v1008
        %v1043 = vpack.c.b16 %v1011, %v1010
        %v1044 = vpack.c.b16 %v1013, %v1012
        %v1045 = vpack.c.b16 %v1015, %v1014
        %v1046 = vpack.c.b16 %v1017, %v1016
        %v1047 = vpack.c.b16 %v1019, %v1018
        %v1048 = vpack.c.b16 %v1021, %v1020
        %v1049 = vpack.c.b16 %v1023, %v1022
        %v1050 = vpack.c.b16 %v1025, %v1024
        %v1051 = vpack.c.b16 %v1027, %v1026
        %1076 = vmatprep.subr.bf16.mxu0 0
        %1077 = vmatpush1.bf16.msra.mxu0 %v1035
        %1078 = vmatprep.subr.bf16.mxu0 0
        %1079 = vmatpush1.bf16.msra.mxu0 %v1034
        %1080 = vmatprep.subr.bf16.mxu0 0
        %1081 = vmatpush1.bf16.msra.mxu0 %v1033
        %1082 = vmatprep.subr.bf16.mxu0 0
        %1083 = vmatpush1.bf16.msra.mxu0 %v1032
        %1084 = vmatprep.subr.bf16.mxu0 0
        %1085 = vmatpush1.bf16.msra.mxu0 %v1031
        %1086 = vmatprep.subr.bf16.mxu0 0
        %1087 = vmatpush1.bf16.msra.mxu0 %v1030
        %1088 = vmatprep.subr.bf16.mxu0 0
        %1089 = vmatpush1.bf16.msra.mxu0 %v1029
        %1090 = vmatprep.subr.bf16.mxu0 0
        %1091 = vmatpush1.bf16.msra.mxu0 %v1028
        %1092 = vmatprep.subr.bf16.mxu0 0
        %1093 = vmatpush2.bf16.msra.mxu0 %v1043
        %1094 = vmatprep.subr.bf16.mxu0 0
        %1095 = vmatpush2.bf16.msra.mxu0 %v1042
        %1096 = vmatprep.subr.bf16.mxu0 0
        %1097 = vmatpush2.bf16.msra.mxu0 %v1041
        %1098 = vmatprep.subr.bf16.mxu0 0
        %1099 = vmatpush2.bf16.msra.mxu0 %v1040
        %1100 = vmatprep.subr.bf16.mxu0 0
        %1101 = vmatpush2.bf16.msra.mxu0 %v1039
        %1102 = vmatprep.subr.bf16.mxu0 0
        %1103 = vmatpush2.bf16.msra.mxu0 %v1038
        %1104 = vmatprep.subr.bf16.mxu0 0
        %1105 = vmatpush2.bf16.msra.mxu0 %v1037
        %1106 = vmatprep.subr.bf16.mxu0 0
        %1107 = vmatpush2.bf16.msra.mxu0 %v1036
        %1108 = vmatprep.mubr.bf16.mxu0 %v868
        %1109 = vmatmul.mubr.bf16.gmra.mxu0 %v841
        %v1110 = vpop.f32.mrf.mxu0
        %v1111 = vadd.f32 %v931, %v1110
        %v1112 = vpop.f32.mrf.mxu0
        %v1113 = vpop.f32.mrf.mxu0
        %v1114 = vadd.f32 %v931, %v1113
        %v1115 = vpop.f32.mrf.mxu0
        %1116 = vmatprep.mubr.bf16.mxu0 %v876
        %1117 = vmatmul.mubr.bf16.gmra.mxu0 %v842
        %v1118 = vpop.f32.mrf.mxu0
        %v1119 = vadd.f32 %v931, %v1118
        %v1120 = vpop.f32.mrf.mxu0
        %v1121 = vpop.f32.mrf.mxu0
        %v1122 = vadd.f32 %v931, %v1121
        %v1123 = vpop.f32.mrf.mxu0
        %1124 = vmatprep.mubr.bf16.mxu0 %v884
        %1125 = vmatmul.mubr.bf16.gmra.mxu0 %v843
        %v1126 = vpop.f32.mrf.mxu0
        %v1127 = vadd.f32 %v931, %v1126
        %v1128 = vpop.f32.mrf.mxu0
        %v1129 = vpop.f32.mrf.mxu0
        %v1130 = vadd.f32 %v931, %v1129
        %v1131 = vpop.f32.mrf.mxu0
        %1132 = vmatprep.mubr.bf16.mxu0 %v892
        %1133 = vmatmul.mubr.bf16.gmra.mxu0 %v844
        %v1134 = vpop.f32.mrf.mxu0
        %v1135 = vadd.f32 %v931, %v1134
        %v1136 = vpop.f32.mrf.mxu0
        %v1137 = vpop.f32.mrf.mxu0
        %v1138 = vadd.f32 %v931, %v1137
        %v1139 = vpop.f32.mrf.mxu0
        %1140 = vmatprep.mubr.bf16.mxu0 %v900
        %1141 = vmatmul.mubr.bf16.gmra.mxu0 %v845
        %v1142 = vpop.f32.mrf.mxu0
        %v1143 = vadd.f32 %v931, %v1142
        %v1144 = vpop.f32.mrf.mxu0
        %v1145 = vpop.f32.mrf.mxu0
        %v1146 = vadd.f32 %v931, %v1145
        %v1147 = vpop.f32.mrf.mxu0
        %1148 = vmatprep.mubr.bf16.mxu0 %v903
        %1149 = vmatmul.mubr.bf16.gmra.mxu0 %v846
        %v1150 = vpop.f32.mrf.mxu0
        %v1151 = vadd.f32 %v931, %v1150
        %v1152 = vpop.f32.mrf.mxu0
        %v1153 = vpop.f32.mrf.mxu0
        %v1154 = vpop.f32.mrf.mxu0
        %1155 = vdwg.mxu0
        %1156 = vmatprep.subr.bf16.mxu0 0
        %1157 = vmatpush1.bf16.msra.mxu0 %v1051
        %1158 = vmatprep.subr.bf16.mxu0 0
        %1159 = vmatpush1.bf16.msra.mxu0 %v1050
        %1160 = vmatprep.subr.bf16.mxu0 0
        %1161 = vmatpush1.bf16.msra.mxu0 %v1049
        %1162 = vmatprep.subr.bf16.mxu0 0
        %1163 = vmatpush1.bf16.msra.mxu0 %v1048
        %1164 = vmatprep.subr.bf16.mxu0 0
        %1165 = vmatpush1.bf16.msra.mxu0 %v1047
        %1166 = vmatprep.subr.bf16.mxu0 0
        %1167 = vmatpush1.bf16.msra.mxu0 %v1046
        %1168 = vmatprep.subr.bf16.mxu0 0
        %1169 = vmatpush1.bf16.msra.mxu0 %v1045
        %1170 = vmatprep.subr.bf16.mxu0 0
        %1171 = vmatpush1.bf16.msra.mxu0 %v1044
        %1172 = vmatprep.subr.bf16.mxu0 0
        %1173 = vmatpush2.bf16.msra.mxu0 0
        %1174 = vmatprep.subr.bf16.mxu0 0
        %1175 = vmatpush2.bf16.msra.mxu0 0
        %1176 = vmatprep.subr.bf16.mxu0 0
        %1177 = vmatpush2.bf16.msra.mxu0 0
        %1178 = vmatprep.subr.bf16.mxu0 0
        %1179 = vmatpush2.bf16.msra.mxu0 0
        %1180 = vmatprep.subr.bf16.mxu0 0
        %1181 = vmatpush2.bf16.msra.mxu0 0
        %1182 = vmatprep.subr.bf16.mxu0 0
        %1183 = vmatpush2.bf16.msra.mxu0 0
        %1184 = vmatprep.subr.bf16.mxu0 0
        %1185 = vmatpush2.bf16.msra.mxu0 0
        %1186 = vmatprep.subr.bf16.mxu0 0
        %1187 = vmatpush2.bf16.msra.mxu0 0
        %1188 = vmatprep.mubr.bf16.mxu0 0
        %1189 = vmatmul.mubr.bf16.gmra.mxu0 %v913
        %v1190 = vpop.f32.mrf.mxu0
        %v1191 = vadd.f32 %v1111, %v1190
        %v1192 = vpop.f32.mrf.mxu0
        %v1193 = vpop.f32.mrf.mxu0
        %v1194 = vadd.f32 %v1114, %v1193
        %v1195 = vpop.f32.mrf.mxu0
        %1196 = vmatprep.mubr.bf16.mxu0 0
        %1197 = vmatmul.mubr.bf16.gmra.mxu0 %v915
        %v1198 = vpop.f32.mrf.mxu0
        %v1199 = vadd.f32 %v1119, %v1198
        %v1200 = vpop.f32.mrf.mxu0
        %v1201 = vpop.f32.mrf.mxu0
        %v1202 = vadd.f32 %v1122, %v1201
        %v1203 = vpop.f32.mrf.mxu0
        %1204 = vmatprep.mubr.bf16.mxu0 0
        %1205 = vmatmul.mubr.bf16.gmra.mxu0 %v917
        %v1206 = vpop.f32.mrf.mxu0
        %v1207 = vadd.f32 %v1127, %v1206
        %v1208 = vpop.f32.mrf.mxu0
        %v1209 = vpop.f32.mrf.mxu0
        %v1210 = vadd.f32 %v1130, %v1209
        %v1211 = vpop.f32.mrf.mxu0
        %1212 = vmatprep.mubr.bf16.mxu0 0
        %1213 = vmatmul.mubr.bf16.gmra.mxu0 %v919
        %v1214 = vpop.f32.mrf.mxu0
        %v1215 = vadd.f32 %v1135, %v1214
        %v1216 = vpop.f32.mrf.mxu0
        %v1217 = vpop.f32.mrf.mxu0
        %v1218 = vadd.f32 %v1138, %v1217
        %v1219 = vpop.f32.mrf.mxu0
        %1220 = vmatprep.mubr.bf16.mxu0 0
        %1221 = vmatmul.mubr.bf16.gmra.mxu0 %v921
        %v1222 = vpop.f32.mrf.mxu0
        %v1223 = vadd.f32 %v1143, %v1222
        %v1224 = vpop.f32.mrf.mxu0
        %v1225 = vpop.f32.mrf.mxu0
        %v1226 = vadd.f32 %v1146, %v1225
        %v1227 = vpop.f32.mrf.mxu0
        %1228 = vmatprep.mubr.bf16.mxu0 0
        %1229 = vmatmul.mubr.bf16.gmra.mxu0 %v920
        %v1230 = vpop.f32.mrf.mxu0
        %v1231 = vadd.f32 %v1151, %v1230
        %v1232 = vpop.f32.mrf.mxu0
        %v1233 = vpop.f32.mrf.mxu0
        %v1234 = vpop.f32.mrf.mxu0
        %1235 = vdwg.mxu0
        %v1236 = vpack.c.bf16 %v1194, %v1191
        %v1237 = vpack.c.bf16 %v1202, %v1199
        %v1238 = vpack.c.bf16 %v1210, %v1207
        %v1239 = vpack.c.bf16 %v1218, %v1215
        %v1240 = vpack.c.bf16 %v1226, %v1223
        %v1241 = vpack.c.bf16 %v1231, %v1231
        %v1243 = vshrl.u32 %v1236, 16
        %v1245 = vshll.u32 %v1236, 16
        %v1247 = vrot.slane %v1245, 1
        %v1248 = vor.u32 %v1243, %v1247
        %v1250 = vshll.u32 %v1237, 16
        %v1252 = vrot.slane %v1250, 1
        %v1253 = vsel %vm856, %v1248, %v1252
        %v1254 = vshrl.u32 %v1237, 16
        %v1256 = vor.u32 %v1254, %v1252
        %v1258 = vshll.u32 %v1238, 16
        %v1260 = vrot.slane %v1258, 1
        %v1261 = vsel %vm856, %v1256, %v1260
        %v1262 = vshrl.u32 %v1238, 16
        %v1264 = vor.u32 %v1262, %v1260
        %v1266 = vshll.u32 %v1239, 16
        %v1268 = vrot.slane %v1266, 1
        %v1269 = vsel %vm856, %v1264, %v1268
        %v1270 = vshrl.u32 %v1239, 16
        %v1272 = vor.u32 %v1270, %v1268
        %v1274 = vshll.u32 %v1240, 16
        %v1276 = vrot.slane %v1274, 1
        %v1277 = vsel %vm856, %v1272, %v1276
        %v1278 = vshrl.u32 %v1240, 16
        %v1280 = vor.u32 %v1278, %v1276
        %v1282 = vshll.u32 %v1241, 16
        %v1284 = vrot.slane %v1282, 1
        %v1285 = vsel %vm856, %v1280, %v1284
        %v1297 = vrot.slane %v1236, 1
        %v1298 = vrot.slane %v1237, 1
        %v1299 = vsel %vm910, %v1297, %v1298
        %v1300 = vrot.slane %v1238, 1
        %v1301 = vsel %vm910, %v1298, %v1300
        %v1302 = vrot.slane %v1239, 1
        %v1303 = vsel %vm910, %v1300, %v1302
        %v1304 = vrot.slane %v1240, 1
        %v1305 = vsel %vm910, %v1302, %v1304
        %v1306 = vrot.slane %v1241, 1
        %v1307 = vsel %vm910, %v1304, %v1306
        %vm1313 = vsmask.f32 6400
        %v1314 = vrot.slane %v1243, 1
        %v1315 = vrot.slane %v1245, 2
        %v1316 = vor.u32 %v1314, %v1315
        %v1317 = vrot.slane %v1254, 1
        %v1318 = vrot.slane %v1250, 2
        %v1319 = vor.u32 %v1317, %v1318
        %v1320 = vsel %vm1313, %v1316, %v1319
        %v1321 = vrot.slane %v1262, 1
        %v1322 = vrot.slane %v1258, 2
        %v1323 = vor.u32 %v1321, %v1322
        %v1324 = vsel %vm1313, %v1319, %v1323
        %v1325 = vrot.slane %v1270, 1
        %v1326 = vrot.slane %v1266, 2
        %v1327 = vor.u32 %v1325, %v1326
        %v1328 = vsel %vm1313, %v1323, %v1327
        %v1329 = vrot.slane %v1278, 1
        %v1330 = vrot.slane %v1274, 2
        %v1331 = vor.u32 %v1329, %v1330
        %v1332 = vsel %vm1313, %v1327, %v1331
        %v1333 = vshrl.u32 %v1241, 16
        %v1335 = vrot.slane %v1333, 1
        %v1336 = vrot.slane %v1282, 2
        %v1337 = vor.u32 %v1335, %v1336
        %v1338 = vsel %vm1313, %v1331, %v1337
        %vm1344 = vcmask 1045504
        %v1345 = vrot.slane %v1236, 2
        %v1346 = vrot.slane %v1237, 2
        %v1347 = vsel %vm1344, %v1345, %v1346
        %v1348 = vrot.slane %v1238, 2
        %v1349 = vsel %vm1344, %v1346, %v1348
        %v1350 = vrot.slane %v1239, 2
        %v1351 = vsel %vm1344, %v1348, %v1350
        %v1352 = vrot.slane %v1240, 2
        %v1353 = vsel %vm1344, %v1350, %v1352
        %v1354 = vrot.slane %v1241, 2
        %v1355 = vsel %vm1344, %v1352, %v1354
        %v1361 = vlaneseq
        %v1362 = vshrl.u32 %v1361, 7
        %v1363 = vsub.s32 1, %v1362
        %v1364 = vrot.slane %v801, %v1363
        %v1445 = vunpack.c.l.b16 %v273
        %v1446 = vunpack.c.l.b16 %v274
        %v1447 = vunpack.c.l.b16 %v275
        %v1448 = vunpack.c.l.b16 %v276
        %v1449 = vunpack.c.l.b16 %v277
        %v1450 = vunpack.c.l.b16 %v278
        %v1451 = vunpack.c.l.b16 %v279
        %v1452 = vunpack.c.l.b16 %v280
        %v1453 = vunpack.c.l.b16 %v281
        %v1454 = vunpack.c.l.b16 %v282
        %v1455 = vunpack.c.l.b16 %v283
        %v1456 = vunpack.c.l.b16 %v284
        %v1457 = vunpack.c.l.b16 %v285
        %v1458 = vunpack.c.l.b16 %v286
        %v1459 = vunpack.c.l.b16 %v287
        %v1460 = vunpack.c.l.b16 %v288
        %v1461 = vunpack.c.l.b16 %v289
        %v1462 = vunpack.c.l.b16 %v290
        %v1463 = vunpack.c.l.b16 %v291
        %v1464 = vunpack.c.l.b16 %v292
        %v1465 = vunpack.c.l.b16 %v293
        %v1466 = vunpack.c.l.b16 %v294
        %v1467 = vunpack.c.l.b16 %v295
        %v1468 = vunpack.c.l.b16 %v296
        %v1469 = vunpack.c.l.b16 %v297
        %v1470 = vunpack.c.l.b16 %v298
        %v1471 = vunpack.c.l.b16 %v299
        %v1472 = vunpack.c.l.b16 %v300
        %v1473 = vunpack.c.l.b16 %v301
        %v1474 = vunpack.c.l.b16 %v302
        %v1475 = vunpack.c.l.b16 %v303
        %v1476 = vunpack.c.l.b16 %v304
        %v1477 = vunpack.c.l.b16 %v305
        %v1478 = vunpack.c.l.b16 %v306
        %v1479 = vunpack.c.l.b16 %v307
        %v1480 = vunpack.c.l.b16 %v308
        %v1481 = vunpack.c.l.b16 %v309
        %v1482 = vunpack.c.l.b16 %v310
        %v1483 = vunpack.c.l.b16 %v311
        %v1484 = vunpack.c.l.b16 %v312
        %v1485 = vunpack.c.l.b16 %v313
        %v1486 = vunpack.c.l.b16 %v314
        %v1487 = vunpack.c.l.b16 %v315
        %v1488 = vunpack.c.l.b16 %v316
        %v1489 = vunpack.c.l.b16 %v317
        %v1490 = vunpack.c.l.b16 %v318
        %v1491 = vunpack.c.l.b16 %v319
        %v1492 = vunpack.c.l.b16 %v320
        %v1493 = vunpack.c.l.b16 %v321
        %v1494 = vunpack.c.l.b16 %v322
        %v1495 = vunpack.c.l.b16 %v323
        %v1496 = vunpack.c.l.b16 %v324
        %v1497 = vunpack.c.l.b16 %v325
        %v1498 = vunpack.c.l.b16 %v326
        %v1499 = vunpack.c.l.b16 %v327
        %v1500 = vunpack.c.l.b16 %v328
        %v1501 = vunpack.c.l.b16 %v329
        %v1502 = vunpack.c.l.b16 %v330
        %v1503 = vunpack.c.l.b16 %v331
        %v1504 = vunpack.c.l.b16 %v332
        %v1505 = vunpack.c.l.b16 %v333
        %v1506 = vunpack.c.l.b16 %v334
        %v1507 = vunpack.c.l.b16 %v335
        %v1508 = vunpack.c.l.b16 %v336
        %v1509 = vunpack.c.l.b16 %v337
        %v1510 = vunpack.c.l.b16 %v338
        %v1511 = vunpack.c.l.b16 %v339
        %v1512 = vunpack.c.l.b16 %v340
        %v1513 = vunpack.c.l.b16 %v341
        %v1514 = vunpack.c.l.b16 %v342
        %v1515 = vunpack.c.l.b16 %v343
        %v1516 = vunpack.c.l.b16 %v344
        %v1517 = vunpack.c.l.b16 %v345
        %v1518 = vunpack.c.l.b16 %v346
        %v1519 = vunpack.c.l.b16 %v347
        %v1520 = vunpack.c.l.b16 %v348
        %v1521 = vunpack.c.l.b16 %v349
        %v1522 = vunpack.c.l.b16 %v350
        %v1523 = vunpack.c.l.b16 %v351
        %v1524 = vunpack.c.l.b16 %v352
        %v1525 = vpack.c.b16 %v1446, %v1445
        %v1526 = vpack.c.b16 %v1448, %v1447
        %v1527 = vpack.c.b16 %v1450, %v1449
        %v1528 = vpack.c.b16 %v1452, %v1451
        %v1529 = vpack.c.b16 %v1454, %v1453
        %v1530 = vpack.c.b16 %v1456, %v1455
        %v1531 = vpack.c.b16 %v1458, %v1457
        %v1532 = vpack.c.b16 %v1460, %v1459
        %v1533 = vpack.c.b16 %v1462, %v1461
        %v1534 = vpack.c.b16 %v1464, %v1463
        %v1535 = vpack.c.b16 %v1466, %v1465
        %v1536 = vpack.c.b16 %v1468, %v1467
        %v1537 = vpack.c.b16 %v1470, %v1469
        %v1538 = vpack.c.b16 %v1472, %v1471
        %v1539 = vpack.c.b16 %v1474, %v1473
        %v1540 = vpack.c.b16 %v1476, %v1475
        %v1541 = vpack.c.b16 %v1478, %v1477
        %v1542 = vpack.c.b16 %v1480, %v1479
        %v1543 = vpack.c.b16 %v1482, %v1481
        %v1544 = vpack.c.b16 %v1484, %v1483
        %v1545 = vpack.c.b16 %v1486, %v1485
        %v1546 = vpack.c.b16 %v1488, %v1487
        %v1547 = vpack.c.b16 %v1490, %v1489
        %v1548 = vpack.c.b16 %v1492, %v1491
        %v1549 = vpack.c.b16 %v1494, %v1493
        %v1550 = vpack.c.b16 %v1496, %v1495
        %v1551 = vpack.c.b16 %v1498, %v1497
        %v1552 = vpack.c.b16 %v1500, %v1499
        %v1553 = vpack.c.b16 %v1502, %v1501
        %v1554 = vpack.c.b16 %v1504, %v1503
        %v1555 = vpack.c.b16 %v1506, %v1505
        %v1556 = vpack.c.b16 %v1508, %v1507
        %v1557 = vpack.c.b16 %v1510, %v1509
        %v1558 = vpack.c.b16 %v1512, %v1511
        %v1559 = vpack.c.b16 %v1514, %v1513
        %v1560 = vpack.c.b16 %v1516, %v1515
        %v1561 = vpack.c.b16 %v1518, %v1517
        %v1562 = vpack.c.b16 %v1520, %v1519
        %v1563 = vpack.c.b16 %v1522, %v1521
        %v1564 = vpack.c.b16 %v1524, %v1523
        %1605 = vmatprep.subr.bf16.mxu0 0
        %1606 = vmatpush1.bf16.msra.mxu0 %v1532
        %1607 = vmatprep.subr.bf16.mxu0 0
        %1608 = vmatpush1.bf16.msra.mxu0 %v1531
        %1609 = vmatprep.subr.bf16.mxu0 0
        %1610 = vmatpush1.bf16.msra.mxu0 %v1530
        %1611 = vmatprep.subr.bf16.mxu0 0
        %1612 = vmatpush1.bf16.msra.mxu0 %v1529
        %1613 = vmatprep.subr.bf16.mxu0 0
        %1614 = vmatpush1.bf16.msra.mxu0 %v1528
        %1615 = vmatprep.subr.bf16.mxu0 0
        %1616 = vmatpush1.bf16.msra.mxu0 %v1527
        %1617 = vmatprep.subr.bf16.mxu0 0
        %1618 = vmatpush1.bf16.msra.mxu0 %v1526
        %1619 = vmatprep.subr.bf16.mxu0 0
        %1620 = vmatpush1.bf16.msra.mxu0 %v1525
        %1621 = vmatprep.subr.bf16.mxu0 0
        %1622 = vmatpush2.bf16.msra.mxu0 %v1540
        %1623 = vmatprep.subr.bf16.mxu0 0
        %1624 = vmatpush2.bf16.msra.mxu0 %v1539
        %1625 = vmatprep.subr.bf16.mxu0 0
        %1626 = vmatpush2.bf16.msra.mxu0 %v1538
        %1627 = vmatprep.subr.bf16.mxu0 0
        %1628 = vmatpush2.bf16.msra.mxu0 %v1537
        %1629 = vmatprep.subr.bf16.mxu0 0
        %1630 = vmatpush2.bf16.msra.mxu0 %v1536
        %1631 = vmatprep.subr.bf16.mxu0 0
        %1632 = vmatpush2.bf16.msra.mxu0 %v1535
        %1633 = vmatprep.subr.bf16.mxu0 0
        %1634 = vmatpush2.bf16.msra.mxu0 %v1534
        %1635 = vmatprep.subr.bf16.mxu0 0
        %1636 = vmatpush2.bf16.msra.mxu0 %v1533
        %1637 = vmatprep.mubr.bf16.mxu0 %v1253
        %1638 = vmatmul.mubr.bf16.gmra.mxu0 %v1236
        %v1639 = vpop.f32.mrf.mxu0
        %v1640 = vadd.f32 %v1364, %v1639
        %v1641 = vpop.f32.mrf.mxu0
        %v1642 = vpop.f32.mrf.mxu0
        %v1643 = vadd.f32 %v1364, %v1642
        %v1644 = vpop.f32.mrf.mxu0
        %1645 = vmatprep.mubr.bf16.mxu0 %v1261
        %1646 = vmatmul.mubr.bf16.gmra.mxu0 %v1237
        %v1647 = vpop.f32.mrf.mxu0
        %v1648 = vadd.f32 %v1364, %v1647
        %v1649 = vpop.f32.mrf.mxu0
        %v1650 = vpop.f32.mrf.mxu0
        %v1651 = vadd.f32 %v1364, %v1650
        %v1652 = vpop.f32.mrf.mxu0
        %1653 = vmatprep.mubr.bf16.mxu0 %v1269
        %1654 = vmatmul.mubr.bf16.gmra.mxu0 %v1238
        %v1655 = vpop.f32.mrf.mxu0
        %v1656 = vadd.f32 %v1364, %v1655
        %v1657 = vpop.f32.mrf.mxu0
        %v1658 = vpop.f32.mrf.mxu0
        %v1659 = vadd.f32 %v1364, %v1658
        %v1660 = vpop.f32.mrf.mxu0
        %1661 = vmatprep.mubr.bf16.mxu0 %v1277
        %1662 = vmatmul.mubr.bf16.gmra.mxu0 %v1239
        %v1663 = vpop.f32.mrf.mxu0
        %v1664 = vadd.f32 %v1364, %v1663
        %v1665 = vpop.f32.mrf.mxu0
        %v1666 = vpop.f32.mrf.mxu0
        %v1667 = vadd.f32 %v1364, %v1666
        %v1668 = vpop.f32.mrf.mxu0
        %1669 = vmatprep.mubr.bf16.mxu0 %v1285
        %1670 = vmatmul.mubr.bf16.gmra.mxu0 %v1240
        %v1671 = vpop.f32.mrf.mxu0
        %v1672 = vadd.f32 %v1364, %v1671
        %v1673 = vpop.f32.mrf.mxu0
        %v1674 = vpop.f32.mrf.mxu0
        %v1675 = vadd.f32 %v1364, %v1674
        %v1676 = vpop.f32.mrf.mxu0
        %1677 = vdwg.mxu0
        %1678 = vmatprep.subr.bf16.mxu0 0
        %1679 = vmatpush1.bf16.msra.mxu0 %v1548
        %1680 = vmatprep.subr.bf16.mxu0 0
        %1681 = vmatpush1.bf16.msra.mxu0 %v1547
        %1682 = vmatprep.subr.bf16.mxu0 0
        %1683 = vmatpush1.bf16.msra.mxu0 %v1546
        %1684 = vmatprep.subr.bf16.mxu0 0
        %1685 = vmatpush1.bf16.msra.mxu0 %v1545
        %1686 = vmatprep.subr.bf16.mxu0 0
        %1687 = vmatpush1.bf16.msra.mxu0 %v1544
        %1688 = vmatprep.subr.bf16.mxu0 0
        %1689 = vmatpush1.bf16.msra.mxu0 %v1543
        %1690 = vmatprep.subr.bf16.mxu0 0
        %1691 = vmatpush1.bf16.msra.mxu0 %v1542
        %1692 = vmatprep.subr.bf16.mxu0 0
        %1693 = vmatpush1.bf16.msra.mxu0 %v1541
        %1694 = vmatprep.subr.bf16.mxu0 0
        %1695 = vmatpush2.bf16.msra.mxu0 %v1556
        %1696 = vmatprep.subr.bf16.mxu0 0
        %1697 = vmatpush2.bf16.msra.mxu0 %v1555
        %1698 = vmatprep.subr.bf16.mxu0 0
        %1699 = vmatpush2.bf16.msra.mxu0 %v1554
        %1700 = vmatprep.subr.bf16.mxu0 0
        %1701 = vmatpush2.bf16.msra.mxu0 %v1553
        %1702 = vmatprep.subr.bf16.mxu0 0
        %1703 = vmatpush2.bf16.msra.mxu0 %v1552
        %1704 = vmatprep.subr.bf16.mxu0 0
        %1705 = vmatpush2.bf16.msra.mxu0 %v1551
        %1706 = vmatprep.subr.bf16.mxu0 0
        %1707 = vmatpush2.bf16.msra.mxu0 %v1550
        %1708 = vmatprep.subr.bf16.mxu0 0
        %1709 = vmatpush2.bf16.msra.mxu0 %v1549
        %1710 = vmatprep.mubr.bf16.mxu0 %v1320
        %1711 = vmatmul.mubr.bf16.gmra.mxu0 %v1299
        %v1712 = vpop.f32.mrf.mxu0
        %v1713 = vadd.f32 %v1640, %v1712
        %v1714 = vpop.f32.mrf.mxu0
        %v1715 = vpop.f32.mrf.mxu0
        %v1716 = vadd.f32 %v1643, %v1715
        %v1717 = vpop.f32.mrf.mxu0
        %1718 = vmatprep.mubr.bf16.mxu0 %v1324
        %1719 = vmatmul.mubr.bf16.gmra.mxu0 %v1301
        %v1720 = vpop.f32.mrf.mxu0
        %v1721 = vadd.f32 %v1648, %v1720
        %v1722 = vpop.f32.mrf.mxu0
        %v1723 = vpop.f32.mrf.mxu0
        %v1724 = vadd.f32 %v1651, %v1723
        %v1725 = vpop.f32.mrf.mxu0
        %1726 = vmatprep.mubr.bf16.mxu0 %v1328
        %1727 = vmatmul.mubr.bf16.gmra.mxu0 %v1303
        %v1728 = vpop.f32.mrf.mxu0
        %v1729 = vadd.f32 %v1656, %v1728
        %v1730 = vpop.f32.mrf.mxu0
        %v1731 = vpop.f32.mrf.mxu0
        %v1732 = vadd.f32 %v1659, %v1731
        %v1733 = vpop.f32.mrf.mxu0
        %1734 = vmatprep.mubr.bf16.mxu0 %v1332
        %1735 = vmatmul.mubr.bf16.gmra.mxu0 %v1305
        %v1736 = vpop.f32.mrf.mxu0
        %v1737 = vadd.f32 %v1664, %v1736
        %v1738 = vpop.f32.mrf.mxu0
        %v1739 = vpop.f32.mrf.mxu0
        %v1740 = vadd.f32 %v1667, %v1739
        %v1741 = vpop.f32.mrf.mxu0
        %1742 = vmatprep.mubr.bf16.mxu0 %v1338
        %1743 = vmatmul.mubr.bf16.gmra.mxu0 %v1307
        %v1744 = vpop.f32.mrf.mxu0
        %v1745 = vadd.f32 %v1672, %v1744
        %v1746 = vpop.f32.mrf.mxu0
        %v1747 = vpop.f32.mrf.mxu0
        %v1748 = vadd.f32 %v1675, %v1747
        %v1749 = vpop.f32.mrf.mxu0
        %1750 = vdwg.mxu0
        %1751 = vmatprep.subr.bf16.mxu0 0
        %1752 = vmatpush1.bf16.msra.mxu0 %v1564
        %1753 = vmatprep.subr.bf16.mxu0 0
        %1754 = vmatpush1.bf16.msra.mxu0 %v1563
        %1755 = vmatprep.subr.bf16.mxu0 0
        %1756 = vmatpush1.bf16.msra.mxu0 %v1562
        %1757 = vmatprep.subr.bf16.mxu0 0
        %1758 = vmatpush1.bf16.msra.mxu0 %v1561
        %1759 = vmatprep.subr.bf16.mxu0 0
        %1760 = vmatpush1.bf16.msra.mxu0 %v1560
        %1761 = vmatprep.subr.bf16.mxu0 0
        %1762 = vmatpush1.bf16.msra.mxu0 %v1559
        %1763 = vmatprep.subr.bf16.mxu0 0
        %1764 = vmatpush1.bf16.msra.mxu0 %v1558
        %1765 = vmatprep.subr.bf16.mxu0 0
        %1766 = vmatpush1.bf16.msra.mxu0 %v1557
        %1767 = vmatprep.subr.bf16.mxu0 0
        %1768 = vmatpush2.bf16.msra.mxu0 0
        %1769 = vmatprep.subr.bf16.mxu0 0
        %1770 = vmatpush2.bf16.msra.mxu0 0
        %1771 = vmatprep.subr.bf16.mxu0 0
        %1772 = vmatpush2.bf16.msra.mxu0 0
        %1773 = vmatprep.subr.bf16.mxu0 0
        %1774 = vmatpush2.bf16.msra.mxu0 0
        %1775 = vmatprep.subr.bf16.mxu0 0
        %1776 = vmatpush2.bf16.msra.mxu0 0
        %1777 = vmatprep.subr.bf16.mxu0 0
        %1778 = vmatpush2.bf16.msra.mxu0 0
        %1779 = vmatprep.subr.bf16.mxu0 0
        %1780 = vmatpush2.bf16.msra.mxu0 0
        %1781 = vmatprep.subr.bf16.mxu0 0
        %1782 = vmatpush2.bf16.msra.mxu0 0
        %1783 = vmatprep.mubr.bf16.mxu0 0
        %1784 = vmatmul.mubr.bf16.gmra.mxu0 %v1347
        %v1785 = vpop.f32.mrf.mxu0
        %v1786 = vadd.f32 %v1713, %v1785
        %v1787 = vpop.f32.mrf.mxu0
        %v1788 = vpop.f32.mrf.mxu0
        %v1789 = vadd.f32 %v1716, %v1788
        %v1790 = vpop.f32.mrf.mxu0
        %1791 = vmatprep.mubr.bf16.mxu0 0
        %1792 = vmatmul.mubr.bf16.gmra.mxu0 %v1349
        %v1793 = vpop.f32.mrf.mxu0
        %v1794 = vadd.f32 %v1721, %v1793
        %v1795 = vpop.f32.mrf.mxu0
        %v1796 = vpop.f32.mrf.mxu0
        %v1797 = vadd.f32 %v1724, %v1796
        %v1798 = vpop.f32.mrf.mxu0
        %1799 = vmatprep.mubr.bf16.mxu0 0
        %1800 = vmatmul.mubr.bf16.gmra.mxu0 %v1351
        %v1801 = vpop.f32.mrf.mxu0
        %v1802 = vadd.f32 %v1729, %v1801
        %v1803 = vpop.f32.mrf.mxu0
        %v1804 = vpop.f32.mrf.mxu0
        %v1805 = vadd.f32 %v1732, %v1804
        %v1806 = vpop.f32.mrf.mxu0
        %1807 = vmatprep.mubr.bf16.mxu0 0
        %1808 = vmatmul.mubr.bf16.gmra.mxu0 %v1353
        %v1809 = vpop.f32.mrf.mxu0
        %v1810 = vadd.f32 %v1737, %v1809
        %v1811 = vpop.f32.mrf.mxu0
        %v1812 = vpop.f32.mrf.mxu0
        %v1813 = vadd.f32 %v1740, %v1812
        %v1814 = vpop.f32.mrf.mxu0
        %1815 = vmatprep.mubr.bf16.mxu0 0
        %1816 = vmatmul.mubr.bf16.gmra.mxu0 %v1355
        %v1817 = vpop.f32.mrf.mxu0
        %v1818 = vadd.f32 %v1745, %v1817
        %v1819 = vpop.f32.mrf.mxu0
        %v1820 = vpop.f32.mrf.mxu0
        %v1821 = vadd.f32 %v1748, %v1820
        %v1822 = vpop.f32.mrf.mxu0
        %1823 = vdwg.mxu0
        %v1824 = vpack.c.bf16 %v1789, %v1786
        %v1825 = vpack.c.bf16 %v1797, %v1794
        %v1826 = vpack.c.bf16 %v1805, %v1802
        %v1827 = vpack.c.bf16 %v1813, %v1810
        %v1828 = vpack.c.bf16 %v1821, %v1818
        %v1834 = vunpack.c.l.b16 %v802
        %v1835 = vunpack.c.l.b16 %v803
        %v1836 = vunpack.c.l.b16 %v804
        %v1837 = vunpack.c.l.b16 %v805
        %v1838 = vunpack.c.l.b16 %v806
        %v1839 = vpack.c.b16 %v1835, %v1834
        %v1840 = vpack.c.b16 %v1837, %v1836
        %v1841 = vpack.c.b16 %v1838, %v1838
        %vm1842 = vcmask 654336
        %v1844 = vsel %vm1842, %v1839, 0
        %v1847 = vsel %vm1842, %v1840, 0
        %v1850 = vsel %vm1842, %v1841, 0
        %1852 = vmatprep.subr.bf16.mxu0 0
        %1853 = vmatpush1.bf16.msra.mxu0 0
        %1854 = vmatprep.subr.bf16.mxu0 0
        %1855 = vmatpush1.bf16.msra.mxu0 0
        %1856 = vmatprep.subr.bf16.mxu0 0
        %1857 = vmatpush1.bf16.msra.mxu0 0
        %1858 = vmatprep.subr.bf16.mxu0 0
        %1859 = vmatpush1.bf16.msra.mxu0 %v1828
        %1860 = vmatprep.subr.bf16.mxu0 0
        %1861 = vmatpush1.bf16.msra.mxu0 %v1827
        %1862 = vmatprep.subr.bf16.mxu0 0
        %1863 = vmatpush1.bf16.msra.mxu0 %v1826
        %1864 = vmatprep.subr.bf16.mxu0 0
        %1865 = vmatpush1.bf16.msra.mxu0 %v1825
        %1866 = vmatprep.subr.bf16.mxu0 0
        %1867 = vmatpush1.bf16.msra.mxu0 %v1824
        %1868 = vmatprep.subr.bf16.mxu0 0
        %1869 = vmatpush2.bf16.msra.mxu0 0
        %1870 = vmatprep.subr.bf16.mxu0 0
        %1871 = vmatpush2.bf16.msra.mxu0 0
        %1872 = vmatprep.subr.bf16.mxu0 0
        %1873 = vmatpush2.bf16.msra.mxu0 0
        %1874 = vmatprep.subr.bf16.mxu0 0
        %1875 = vmatpush2.bf16.msra.mxu0 0
        %1876 = vmatprep.subr.bf16.mxu0 0
        %1877 = vmatpush2.bf16.msra.mxu0 0
        %1878 = vmatprep.subr.bf16.mxu0 0
        %1879 = vmatpush2.bf16.msra.mxu0 0
        %1880 = vmatprep.subr.bf16.mxu0 0
        %1881 = vmatpush2.bf16.msra.mxu0 0
        %1882 = vmatprep.subr.bf16.mxu0 0
        %1883 = vmatpush2.bf16.msra.mxu0 0
        %1884 = vmatprep.mubr.bf16.mxu0 0
        %1885 = vmatmul.mubr.bf16.gmra.mxu0 %v1844
        %v1886 = vpop.f32.mrf.mxu0
        %v1887 = vadd.f32 0.0, %v1886
        %v1888 = vpop.f32.mrf.mxu0
        %v1889 = vpop.f32.mrf.mxu0
        %v1890 = vadd.f32 0.0, %v1889
        %v1891 = vpop.f32.mrf.mxu0
        %1892 = vmatprep.mubr.bf16.mxu0 0
        %1893 = vmatmul.mubr.bf16.gmra.mxu0 %v1847
        %v1894 = vpop.f32.mrf.mxu0
        %v1895 = vadd.f32 0.0, %v1894
        %v1896 = vpop.f32.mrf.mxu0
        %v1897 = vpop.f32.mrf.mxu0
        %v1898 = vadd.f32 0.0, %v1897
        %v1899 = vpop.f32.mrf.mxu0
        %1900 = vmatprep.mubr.bf16.mxu0 0
        %1901 = vmatmul.mubr.bf16.gmra.mxu0 %v1850
        %v1902 = vpop.f32.mrf.mxu0
        %v1903 = vadd.f32 0.0, %v1902
        %v1904 = vpop.f32.mrf.mxu0
        %v1905 = vpop.f32.mrf.mxu0
        %v1906 = vpop.f32.mrf.mxu0
        %1907 = vdwg.mxu0
        %v1908 = vpack.c.bf16 %v1890, %v1887
        %v1909 = vpack.c.bf16 %v1898, %v1895
        %v1910 = vpack.c.bf16 %v1903, %v1903
        %v1912 = vshrl.u32 %v1908, 16
        %v1914 = vshll.u32 %v1908, 16
        %v1916 = vrot.slane %v1914, 1
        %v1917 = vor.u32 %v1912, %v1916
        %v1919 = vshll.u32 %v1909, 16
        %v1921 = vrot.slane %v1919, 1
        %v1922 = vsel %vm856, %v1917, %v1921
        %v1923 = vshrl.u32 %v1909, 16
        %v1925 = vor.u32 %v1923, %v1921
        %v1927 = vshll.u32 %v1910, 16
        %v1929 = vrot.slane %v1927, 1
        %v1930 = vsel %vm856, %v1925, %v1929
        %v1936 = vrot.slane %v1908, 1
        %v1937 = vrot.slane %v1909, 1
        %v1938 = vsel %vm910, %v1936, %v1937
        %v1939 = vrot.slane %v1910, 1
        %v1940 = vsel %vm910, %v1937, %v1939
        %v1943 = vrot.slane %v1912, 1
        %v1944 = vrot.slane %v1914, 2
        %v1945 = vor.u32 %v1943, %v1944
        %v1946 = vrot.slane %v1923, 1
        %v1947 = vrot.slane %v1919, 2
        %v1948 = vor.u32 %v1946, %v1947
        %v1949 = vsel %vm1313, %v1945, %v1948
        %v1950 = vshrl.u32 %v1910, 16
        %v1952 = vrot.slane %v1950, 1
        %v1953 = vrot.slane %v1927, 2
        %v1954 = vor.u32 %v1952, %v1953
        %v1955 = vsel %vm1313, %v1948, %v1954
        %v1958 = vrot.slane %v1908, 2
        %v1959 = vrot.slane %v1909, 2
        %v1960 = vsel %vm1344, %v1958, %v1959
        %v1961 = vrot.slane %v1910, 2
        %v1962 = vsel %vm1344, %v1959, %v1961
        %vm1965 = vsmask.f32 5376
        %v1966 = vrot.slane %v1912, 2
        %v1967 = vrot.slane %v1914, 3
        %v1968 = vor.u32 %v1966, %v1967
        %v1969 = vrot.slane %v1923, 2
        %v1970 = vrot.slane %v1919, 3
        %v1971 = vor.u32 %v1969, %v1970
        %v1972 = vsel %vm1965, %v1968, %v1971
        %v1973 = vrot.slane %v1950, 2
        %v1974 = vrot.slane %v1927, 3
        %v1975 = vor.u32 %v1973, %v1974
        %v1976 = vsel %vm1965, %v1971, %v1975
        %vm1979 = vcmask 1044480
        %v1980 = vrot.slane %v1908, 3
        %v1981 = vrot.slane %v1909, 3
        %v1982 = vsel %vm1979, %v1980, %v1981
        %v1983 = vrot.slane %v1910, 3
        %v1984 = vsel %vm1979, %v1981, %v1983
        %v1987 = vlaneseq
        %v1988 = vshrl.u32 %v1987, 7
        %v1989 = vsub.s32 2, %v1988
        %v1990 = vrot.slane %v801, %v1989
        %v2103 = vunpack.c.l.b16 %v353
        %v2104 = vunpack.c.l.b16 %v354
        %v2105 = vunpack.c.l.b16 %v355
        %v2106 = vunpack.c.l.b16 %v356
        %v2107 = vunpack.c.l.b16 %v357
        %v2108 = vunpack.c.l.b16 %v358
        %v2109 = vunpack.c.l.b16 %v359
        %v2110 = vunpack.c.l.b16 %v360
        %v2111 = vunpack.c.l.b16 %v361
        %v2112 = vunpack.c.l.b16 %v362
        %v2113 = vunpack.c.l.b16 %v363
        %v2114 = vunpack.c.l.b16 %v364
        %v2115 = vunpack.c.l.b16 %v365
        %v2116 = vunpack.c.l.b16 %v366
        %v2117 = vunpack.c.l.b16 %v367
        %v2118 = vunpack.c.l.b16 %v368
        %v2119 = vunpack.c.l.b16 %v369
        %v2120 = vunpack.c.l.b16 %v370
        %v2121 = vunpack.c.l.b16 %v371
        %v2122 = vunpack.c.l.b16 %v372
        %v2123 = vunpack.c.l.b16 %v373
        %v2124 = vunpack.c.l.b16 %v374
        %v2125 = vunpack.c.l.b16 %v375
        %v2126 = vunpack.c.l.b16 %v376
        %v2127 = vunpack.c.l.b16 %v377
        %v2128 = vunpack.c.l.b16 %v378
        %v2129 = vunpack.c.l.b16 %v379
        %v2130 = vunpack.c.l.b16 %v380
        %v2131 = vunpack.c.l.b16 %v381
        %v2132 = vunpack.c.l.b16 %v382
        %v2133 = vunpack.c.l.b16 %v383
        %v2134 = vunpack.c.l.b16 %v384
        %v2135 = vunpack.c.l.b16 %v385
        %v2136 = vunpack.c.l.b16 %v386
        %v2137 = vunpack.c.l.b16 %v387
        %v2138 = vunpack.c.l.b16 %v388
        %v2139 = vunpack.c.l.b16 %v389
        %v2140 = vunpack.c.l.b16 %v390
        %v2141 = vunpack.c.l.b16 %v391
        %v2142 = vunpack.c.l.b16 %v392
        %v2143 = vunpack.c.l.b16 %v393
        %v2144 = vunpack.c.l.b16 %v394
        %v2145 = vunpack.c.l.b16 %v395
        %v2146 = vunpack.c.l.b16 %v396
        %v2147 = vunpack.c.l.b16 %v397
        %v2148 = vunpack.c.l.b16 %v398
        %v2149 = vunpack.c.l.b16 %v399
        %v2150 = vunpack.c.l.b16 %v400
        %v2151 = vunpack.c.l.b16 %v401
        %v2152 = vunpack.c.l.b16 %v402
        %v2153 = vunpack.c.l.b16 %v403
        %v2154 = vunpack.c.l.b16 %v404
        %v2155 = vunpack.c.l.b16 %v405
        %v2156 = vunpack.c.l.b16 %v406
        %v2157 = vunpack.c.l.b16 %v407
        %v2158 = vunpack.c.l.b16 %v408
        %v2159 = vunpack.c.l.b16 %v409
        %v2160 = vunpack.c.l.b16 %v410
        %v2161 = vunpack.c.l.b16 %v411
        %v2162 = vunpack.c.l.b16 %v412
        %v2163 = vunpack.c.l.b16 %v413
        %v2164 = vunpack.c.l.b16 %v414
        %v2165 = vunpack.c.l.b16 %v415
        %v2166 = vunpack.c.l.b16 %v416
        %v2167 = vunpack.c.l.b16 %v417
        %v2168 = vunpack.c.l.b16 %v418
        %v2169 = vunpack.c.l.b16 %v419
        %v2170 = vunpack.c.l.b16 %v420
        %v2171 = vunpack.c.l.b16 %v421
        %v2172 = vunpack.c.l.b16 %v422
        %v2173 = vunpack.c.l.b16 %v423
        %v2174 = vunpack.c.l.b16 %v424
        %v2175 = vunpack.c.l.b16 %v425
        %v2176 = vunpack.c.l.b16 %v426
        %v2177 = vunpack.c.l.b16 %v427
        %v2178 = vunpack.c.l.b16 %v428
        %v2179 = vunpack.c.l.b16 %v429
        %v2180 = vunpack.c.l.b16 %v430
        %v2181 = vunpack.c.l.b16 %v431
        %v2182 = vunpack.c.l.b16 %v432
        %v2183 = vunpack.c.l.b16 %v433
        %v2184 = vunpack.c.l.b16 %v434
        %v2185 = vunpack.c.l.b16 %v435
        %v2186 = vunpack.c.l.b16 %v436
        %v2187 = vunpack.c.l.b16 %v437
        %v2188 = vunpack.c.l.b16 %v438
        %v2189 = vunpack.c.l.b16 %v439
        %v2190 = vunpack.c.l.b16 %v440
        %v2191 = vunpack.c.l.b16 %v441
        %v2192 = vunpack.c.l.b16 %v442
        %v2193 = vunpack.c.l.b16 %v443
        %v2194 = vunpack.c.l.b16 %v444
        %v2195 = vunpack.c.l.b16 %v445
        %v2196 = vunpack.c.l.b16 %v446
        %v2197 = vunpack.c.l.b16 %v447
        %v2198 = vunpack.c.l.b16 %v448
        %v2199 = vunpack.c.l.b16 %v449
        %v2200 = vunpack.c.l.b16 %v450
        %v2201 = vunpack.c.l.b16 %v451
        %v2202 = vunpack.c.l.b16 %v452
        %v2203 = vunpack.c.l.b16 %v453
        %v2204 = vunpack.c.l.b16 %v454
        %v2205 = vunpack.c.l.b16 %v455
        %v2206 = vunpack.c.l.b16 %v456
        %v2207 = vunpack.c.l.b16 %v457
        %v2208 = vunpack.c.l.b16 %v458
        %v2209 = vunpack.c.l.b16 %v459
        %v2210 = vunpack.c.l.b16 %v460
        %v2211 = vunpack.c.l.b16 %v461
        %v2212 = vunpack.c.l.b16 %v462
        %v2213 = vunpack.c.l.b16 %v463
        %v2214 = vunpack.c.l.b16 %v464
        %v2215 = vpack.c.b16 %v2104, %v2103
        %v2216 = vpack.c.b16 %v2106, %v2105
        %v2217 = vpack.c.b16 %v2108, %v2107
        %v2218 = vpack.c.b16 %v2110, %v2109
        %v2219 = vpack.c.b16 %v2112, %v2111
        %v2220 = vpack.c.b16 %v2114, %v2113
        %v2221 = vpack.c.b16 %v2116, %v2115
        %v2222 = vpack.c.b16 %v2118, %v2117
        %v2223 = vpack.c.b16 %v2120, %v2119
        %v2224 = vpack.c.b16 %v2122, %v2121
        %v2225 = vpack.c.b16 %v2124, %v2123
        %v2226 = vpack.c.b16 %v2126, %v2125
        %v2227 = vpack.c.b16 %v2128, %v2127
        %v2228 = vpack.c.b16 %v2130, %v2129
        %v2229 = vpack.c.b16 %v2132, %v2131
        %v2230 = vpack.c.b16 %v2134, %v2133
        %v2231 = vpack.c.b16 %v2136, %v2135
        %v2232 = vpack.c.b16 %v2138, %v2137
        %v2233 = vpack.c.b16 %v2140, %v2139
        %v2234 = vpack.c.b16 %v2142, %v2141
        %v2235 = vpack.c.b16 %v2144, %v2143
        %v2236 = vpack.c.b16 %v2146, %v2145
        %v2237 = vpack.c.b16 %v2148, %v2147
        %v2238 = vpack.c.b16 %v2150, %v2149
        %v2239 = vpack.c.b16 %v2152, %v2151
        %v2240 = vpack.c.b16 %v2154, %v2153
        %v2241 = vpack.c.b16 %v2156, %v2155
        %v2242 = vpack.c.b16 %v2158, %v2157
        %v2243 = vpack.c.b16 %v2160, %v2159
        %v2244 = vpack.c.b16 %v2162, %v2161
        %v2245 = vpack.c.b16 %v2164, %v2163
        %v2246 = vpack.c.b16 %v2166, %v2165
        %v2247 = vpack.c.b16 %v2168, %v2167
        %v2248 = vpack.c.b16 %v2170, %v2169
        %v2249 = vpack.c.b16 %v2172, %v2171
        %v2250 = vpack.c.b16 %v2174, %v2173
        %v2251 = vpack.c.b16 %v2176, %v2175
        %v2252 = vpack.c.b16 %v2178, %v2177
        %v2253 = vpack.c.b16 %v2180, %v2179
        %v2254 = vpack.c.b16 %v2182, %v2181
        %v2255 = vpack.c.b16 %v2184, %v2183
        %v2256 = vpack.c.b16 %v2186, %v2185
        %v2257 = vpack.c.b16 %v2188, %v2187
        %v2258 = vpack.c.b16 %v2190, %v2189
        %v2259 = vpack.c.b16 %v2192, %v2191
        %v2260 = vpack.c.b16 %v2194, %v2193
        %v2261 = vpack.c.b16 %v2196, %v2195
        %v2262 = vpack.c.b16 %v2198, %v2197
        %v2263 = vpack.c.b16 %v2200, %v2199
        %v2264 = vpack.c.b16 %v2202, %v2201
        %v2265 = vpack.c.b16 %v2204, %v2203
        %v2266 = vpack.c.b16 %v2206, %v2205
        %v2267 = vpack.c.b16 %v2208, %v2207
        %v2268 = vpack.c.b16 %v2210, %v2209
        %v2269 = vpack.c.b16 %v2212, %v2211
        %v2270 = vpack.c.b16 %v2214, %v2213
        %2327 = vmatprep.subr.bf16.mxu0 0
        %2328 = vmatpush1.bf16.msra.mxu0 %v2222
        %2329 = vmatprep.subr.bf16.mxu0 0
        %2330 = vmatpush1.bf16.msra.mxu0 %v2221
        %2331 = vmatprep.subr.bf16.mxu0 0
        %2332 = vmatpush1.bf16.msra.mxu0 %v2220
        %2333 = vmatprep.subr.bf16.mxu0 0
        %2334 = vmatpush1.bf16.msra.mxu0 %v2219
        %2335 = vmatprep.subr.bf16.mxu0 0
        %2336 = vmatpush1.bf16.msra.mxu0 %v2218
        %2337 = vmatprep.subr.bf16.mxu0 0
        %2338 = vmatpush1.bf16.msra.mxu0 %v2217
        %2339 = vmatprep.subr.bf16.mxu0 0
        %2340 = vmatpush1.bf16.msra.mxu0 %v2216
        %2341 = vmatprep.subr.bf16.mxu0 0
        %2342 = vmatpush1.bf16.msra.mxu0 %v2215
        %2343 = vmatprep.subr.bf16.mxu0 0
        %2344 = vmatpush2.bf16.msra.mxu0 %v2230
        %2345 = vmatprep.subr.bf16.mxu0 0
        %2346 = vmatpush2.bf16.msra.mxu0 %v2229
        %2347 = vmatprep.subr.bf16.mxu0 0
        %2348 = vmatpush2.bf16.msra.mxu0 %v2228
        %2349 = vmatprep.subr.bf16.mxu0 0
        %2350 = vmatpush2.bf16.msra.mxu0 %v2227
        %2351 = vmatprep.subr.bf16.mxu0 0
        %2352 = vmatpush2.bf16.msra.mxu0 %v2226
        %2353 = vmatprep.subr.bf16.mxu0 0
        %2354 = vmatpush2.bf16.msra.mxu0 %v2225
        %2355 = vmatprep.subr.bf16.mxu0 0
        %2356 = vmatpush2.bf16.msra.mxu0 %v2224
        %2357 = vmatprep.subr.bf16.mxu0 0
        %2358 = vmatpush2.bf16.msra.mxu0 %v2223
        %2359 = vmatprep.mubr.bf16.mxu0 %v1922
        %2360 = vmatmul.mubr.bf16.gmra.mxu0 %v1908
        %v2361 = vpop.f32.mrf.mxu0
        %v2362 = vadd.f32 %v1990, %v2361
        %v2363 = vpop.f32.mrf.mxu0
        %v2364 = vpop.f32.mrf.mxu0
        %v2365 = vadd.f32 %v1990, %v2364
        %v2366 = vpop.f32.mrf.mxu0
        %2367 = vmatprep.mubr.bf16.mxu0 %v1930
        %2368 = vmatmul.mubr.bf16.gmra.mxu0 %v1909
        %v2369 = vpop.f32.mrf.mxu0
        %v2370 = vadd.f32 %v1990, %v2369
        %v2371 = vpop.f32.mrf.mxu0
        %v2372 = vpop.f32.mrf.mxu0
        %v2373 = vadd.f32 %v1990, %v2372
        %v2374 = vpop.f32.mrf.mxu0
        %2375 = vdwg.mxu0
        %2376 = vmatprep.subr.bf16.mxu0 0
        %2377 = vmatpush1.bf16.msra.mxu0 %v2238
        %2378 = vmatprep.subr.bf16.mxu0 0
        %2379 = vmatpush1.bf16.msra.mxu0 %v2237
        %2380 = vmatprep.subr.bf16.mxu0 0
        %2381 = vmatpush1.bf16.msra.mxu0 %v2236
        %2382 = vmatprep.subr.bf16.mxu0 0
        %2383 = vmatpush1.bf16.msra.mxu0 %v2235
        %2384 = vmatprep.subr.bf16.mxu0 0
        %2385 = vmatpush1.bf16.msra.mxu0 %v2234
        %2386 = vmatprep.subr.bf16.mxu0 0
        %2387 = vmatpush1.bf16.msra.mxu0 %v2233
        %2388 = vmatprep.subr.bf16.mxu0 0
        %2389 = vmatpush1.bf16.msra.mxu0 %v2232
        %2390 = vmatprep.subr.bf16.mxu0 0
        %2391 = vmatpush1.bf16.msra.mxu0 %v2231
        %2392 = vmatprep.subr.bf16.mxu0 0
        %2393 = vmatpush2.bf16.msra.mxu0 %v2246
        %2394 = vmatprep.subr.bf16.mxu0 0
        %2395 = vmatpush2.bf16.msra.mxu0 %v2245
        %2396 = vmatprep.subr.bf16.mxu0 0
        %2397 = vmatpush2.bf16.msra.mxu0 %v2244
        %2398 = vmatprep.subr.bf16.mxu0 0
        %2399 = vmatpush2.bf16.msra.mxu0 %v2243
        %2400 = vmatprep.subr.bf16.mxu0 0
        %2401 = vmatpush2.bf16.msra.mxu0 %v2242
        %2402 = vmatprep.subr.bf16.mxu0 0
        %2403 = vmatpush2.bf16.msra.mxu0 %v2241
        %2404 = vmatprep.subr.bf16.mxu0 0
        %2405 = vmatpush2.bf16.msra.mxu0 %v2240
        %2406 = vmatprep.subr.bf16.mxu0 0
        %2407 = vmatpush2.bf16.msra.mxu0 %v2239
        %2408 = vmatprep.mubr.bf16.mxu0 %v1949
        %2409 = vmatmul.mubr.bf16.gmra.mxu0 %v1938
        %v2410 = vpop.f32.mrf.mxu0
        %v2411 = vadd.f32 %v2362, %v2410
        %v2412 = vpop.f32.mrf.mxu0
        %v2413 = vpop.f32.mrf.mxu0
        %v2414 = vadd.f32 %v2365, %v2413
        %v2415 = vpop.f32.mrf.mxu0
        %2416 = vmatprep.mubr.bf16.mxu0 %v1955
        %2417 = vmatmul.mubr.bf16.gmra.mxu0 %v1940
        %v2418 = vpop.f32.mrf.mxu0
        %v2419 = vadd.f32 %v2370, %v2418
        %v2420 = vpop.f32.mrf.mxu0
        %v2421 = vpop.f32.mrf.mxu0
        %v2422 = vadd.f32 %v2373, %v2421
        %v2423 = vpop.f32.mrf.mxu0
        %2424 = vdwg.mxu0
        %2425 = vmatprep.subr.bf16.mxu0 0
        %2426 = vmatpush1.bf16.msra.mxu0 %v2254
        %2427 = vmatprep.subr.bf16.mxu0 0
        %2428 = vmatpush1.bf16.msra.mxu0 %v2253
        %2429 = vmatprep.subr.bf16.mxu0 0
        %2430 = vmatpush1.bf16.msra.mxu0 %v2252
        %2431 = vmatprep.subr.bf16.mxu0 0
        %2432 = vmatpush1.bf16.msra.mxu0 %v2251
        %2433 = vmatprep.subr.bf16.mxu0 0
        %2434 = vmatpush1.bf16.msra.mxu0 %v2250
        %2435 = vmatprep.subr.bf16.mxu0 0
        %2436 = vmatpush1.bf16.msra.mxu0 %v2249
        %2437 = vmatprep.subr.bf16.mxu0 0
        %2438 = vmatpush1.bf16.msra.mxu0 %v2248
        %2439 = vmatprep.subr.bf16.mxu0 0
        %2440 = vmatpush1.bf16.msra.mxu0 %v2247
        %2441 = vmatprep.subr.bf16.mxu0 0
        %2442 = vmatpush2.bf16.msra.mxu0 %v2262
        %2443 = vmatprep.subr.bf16.mxu0 0
        %2444 = vmatpush2.bf16.msra.mxu0 %v2261
        %2445 = vmatprep.subr.bf16.mxu0 0
        %2446 = vmatpush2.bf16.msra.mxu0 %v2260
        %2447 = vmatprep.subr.bf16.mxu0 0
        %2448 = vmatpush2.bf16.msra.mxu0 %v2259
        %2449 = vmatprep.subr.bf16.mxu0 0
        %2450 = vmatpush2.bf16.msra.mxu0 %v2258
        %2451 = vmatprep.subr.bf16.mxu0 0
        %2452 = vmatpush2.bf16.msra.mxu0 %v2257
        %2453 = vmatprep.subr.bf16.mxu0 0
        %2454 = vmatpush2.bf16.msra.mxu0 %v2256
        %2455 = vmatprep.subr.bf16.mxu0 0
        %2456 = vmatpush2.bf16.msra.mxu0 %v2255
        %2457 = vmatprep.mubr.bf16.mxu0 %v1972
        %2458 = vmatmul.mubr.bf16.gmra.mxu0 %v1960
        %v2459 = vpop.f32.mrf.mxu0
        %v2460 = vadd.f32 %v2411, %v2459
        %v2461 = vpop.f32.mrf.mxu0
        %v2462 = vpop.f32.mrf.mxu0
        %v2463 = vadd.f32 %v2414, %v2462
        %v2464 = vpop.f32.mrf.mxu0
        %2465 = vmatprep.mubr.bf16.mxu0 %v1976
        %2466 = vmatmul.mubr.bf16.gmra.mxu0 %v1962
        %v2467 = vpop.f32.mrf.mxu0
        %v2468 = vadd.f32 %v2419, %v2467
        %v2469 = vpop.f32.mrf.mxu0
        %v2470 = vpop.f32.mrf.mxu0
        %v2471 = vadd.f32 %v2422, %v2470
        %v2472 = vpop.f32.mrf.mxu0
        %2473 = vdwg.mxu0
        %2474 = vmatprep.subr.bf16.mxu0 0
        %2475 = vmatpush1.bf16.msra.mxu0 %v2270
        %2476 = vmatprep.subr.bf16.mxu0 0
        %2477 = vmatpush1.bf16.msra.mxu0 %v2269
        %2478 = vmatprep.subr.bf16.mxu0 0
        %2479 = vmatpush1.bf16.msra.mxu0 %v2268
        %2480 = vmatprep.subr.bf16.mxu0 0
        %2481 = vmatpush1.bf16.msra.mxu0 %v2267
        %2482 = vmatprep.subr.bf16.mxu0 0
        %2483 = vmatpush1.bf16.msra.mxu0 %v2266
        %2484 = vmatprep.subr.bf16.mxu0 0
        %2485 = vmatpush1.bf16.msra.mxu0 %v2265
        %2486 = vmatprep.subr.bf16.mxu0 0
        %2487 = vmatpush1.bf16.msra.mxu0 %v2264
        %2488 = vmatprep.subr.bf16.mxu0 0
        %2489 = vmatpush1.bf16.msra.mxu0 %v2263
        %2490 = vmatprep.subr.bf16.mxu0 0
        %2491 = vmatpush2.bf16.msra.mxu0 0
        %2492 = vmatprep.subr.bf16.mxu0 0
        %2493 = vmatpush2.bf16.msra.mxu0 0
        %2494 = vmatprep.subr.bf16.mxu0 0
        %2495 = vmatpush2.bf16.msra.mxu0 0
        %2496 = vmatprep.subr.bf16.mxu0 0
        %2497 = vmatpush2.bf16.msra.mxu0 0
        %2498 = vmatprep.subr.bf16.mxu0 0
        %2499 = vmatpush2.bf16.msra.mxu0 0
        %2500 = vmatprep.subr.bf16.mxu0 0
        %2501 = vmatpush2.bf16.msra.mxu0 0
        %2502 = vmatprep.subr.bf16.mxu0 0
        %2503 = vmatpush2.bf16.msra.mxu0 0
        %2504 = vmatprep.subr.bf16.mxu0 0
        %2505 = vmatpush2.bf16.msra.mxu0 0
        %2506 = vmatprep.mubr.bf16.mxu0 0
        %2507 = vmatmul.mubr.bf16.gmra.mxu0 %v1982
        %v2508 = vpop.f32.mrf.mxu0
        %v2509 = vadd.f32 %v2460, %v2508
        %v2510 = vpop.f32.mrf.mxu0
        %v2511 = vpop.f32.mrf.mxu0
        %v2512 = vadd.f32 %v2463, %v2511
        %v2513 = vpop.f32.mrf.mxu0
        %2514 = vmatprep.mubr.bf16.mxu0 0
        %2515 = vmatmul.mubr.bf16.gmra.mxu0 %v1984
        %v2516 = vpop.f32.mrf.mxu0
        %v2517 = vadd.f32 %v2468, %v2516
        %v2518 = vpop.f32.mrf.mxu0
        %v2519 = vpop.f32.mrf.mxu0
        %v2520 = vadd.f32 %v2471, %v2519
        %v2521 = vpop.f32.mrf.mxu0
        %2522 = vdwg.mxu0
        %v2523 = vpack.c.bf16 %v2512, %v2509
        %v2524 = vpack.c.bf16 %v2520, %v2517
        %v2526 = vshrl.u32 %v2523, 16
        %v2528 = vshll.u32 %v2523, 16
        %v2530 = vrot.slane %v2528, 1
        %v2531 = vor.u32 %v2526, %v2530
        %v2533 = vshll.u32 %v2524, 16
        %v2535 = vrot.slane %v2533, 1
        %v2536 = vsel %vm856, %v2531, %v2535
        %v2537 = vshrl.u32 %v2524, 16
        %v2539 = vor.u32 %v2537, %v2535
        %v2544 = vrot.slane %v2523, 1
        %v2545 = vrot.slane %v2524, 1
        %v2546 = vsel %vm910, %v2544, %v2545
        %v2549 = vrot.slane %v2526, 1
        %v2550 = vrot.slane %v2528, 2
        %v2551 = vor.u32 %v2549, %v2550
        %v2552 = vrot.slane %v2537, 1
        %v2553 = vrot.slane %v2533, 2
        %v2554 = vor.u32 %v2552, %v2553
        %v2555 = vsel %vm1313, %v2551, %v2554
        %v2558 = vrot.slane %v2523, 2
        %v2559 = vrot.slane %v2524, 2
        %v2560 = vsel %vm1344, %v2558, %v2559
        %v2563 = vrot.slane %v2526, 2
        %v2564 = vrot.slane %v2528, 3
        %v2565 = vor.u32 %v2563, %v2564
        %v2566 = vrot.slane %v2537, 2
        %v2567 = vrot.slane %v2533, 3
        %v2568 = vor.u32 %v2566, %v2567
        %v2569 = vsel %vm1965, %v2565, %v2568
        %v2572 = vrot.slane %v2523, 3
        %v2573 = vrot.slane %v2524, 3
        %v2574 = vsel %vm1979, %v2572, %v2573
        %v2577 = vlaneseq
        %v2578 = vshrl.u32 %v2577, 7
        %v2579 = vsub.s32 3, %v2578
        %v2580 = vrot.slane %v801, %v2579
        %v2693 = vunpack.c.l.b16 %v465
        %v2694 = vunpack.c.l.b16 %v466
        %v2695 = vunpack.c.l.b16 %v467
        %v2696 = vunpack.c.l.b16 %v468
        %v2697 = vunpack.c.l.b16 %v469
        %v2698 = vunpack.c.l.b16 %v470
        %v2699 = vunpack.c.l.b16 %v471
        %v2700 = vunpack.c.l.b16 %v472
        %v2701 = vunpack.c.l.b16 %v473
        %v2702 = vunpack.c.l.b16 %v474
        %v2703 = vunpack.c.l.b16 %v475
        %v2704 = vunpack.c.l.b16 %v476
        %v2705 = vunpack.c.l.b16 %v477
        %v2706 = vunpack.c.l.b16 %v478
        %v2707 = vunpack.c.l.b16 %v479
        %v2708 = vunpack.c.l.b16 %v480
        %v2709 = vunpack.c.l.b16 %v481
        %v2710 = vunpack.c.l.b16 %v482
        %v2711 = vunpack.c.l.b16 %v483
        %v2712 = vunpack.c.l.b16 %v484
        %v2713 = vunpack.c.l.b16 %v485
        %v2714 = vunpack.c.l.b16 %v486
        %v2715 = vunpack.c.l.b16 %v487
        %v2716 = vunpack.c.l.b16 %v488
        %v2717 = vunpack.c.l.b16 %v489
        %v2718 = vunpack.c.l.b16 %v490
        %v2719 = vunpack.c.l.b16 %v491
        %v2720 = vunpack.c.l.b16 %v492
        %v2721 = vunpack.c.l.b16 %v493
        %v2722 = vunpack.c.l.b16 %v494
        %v2723 = vunpack.c.l.b16 %v495
        %v2724 = vunpack.c.l.b16 %v496
        %v2725 = vunpack.c.l.b16 %v497
        %v2726 = vunpack.c.l.b16 %v498
        %v2727 = vunpack.c.l.b16 %v499
        %v2728 = vunpack.c.l.b16 %v500
        %v2729 = vunpack.c.l.b16 %v501
        %v2730 = vunpack.c.l.b16 %v502
        %v2731 = vunpack.c.l.b16 %v503
        %v2732 = vunpack.c.l.b16 %v504
        %v2733 = vunpack.c.l.b16 %v505
        %v2734 = vunpack.c.l.b16 %v506
        %v2735 = vunpack.c.l.b16 %v507
        %v2736 = vunpack.c.l.b16 %v508
        %v2737 = vunpack.c.l.b16 %v509
        %v2738 = vunpack.c.l.b16 %v510
        %v2739 = vunpack.c.l.b16 %v511
        %v2740 = vunpack.c.l.b16 %v512
        %v2741 = vunpack.c.l.b16 %v513
        %v2742 = vunpack.c.l.b16 %v514
        %v2743 = vunpack.c.l.b16 %v515
        %v2744 = vunpack.c.l.b16 %v516
        %v2745 = vunpack.c.l.b16 %v517
        %v2746 = vunpack.c.l.b16 %v518
        %v2747 = vunpack.c.l.b16 %v519
        %v2748 = vunpack.c.l.b16 %v520
        %v2749 = vunpack.c.l.b16 %v521
        %v2750 = vunpack.c.l.b16 %v522
        %v2751 = vunpack.c.l.b16 %v523
        %v2752 = vunpack.c.l.b16 %v524
        %v2753 = vunpack.c.l.b16 %v525
        %v2754 = vunpack.c.l.b16 %v526
        %v2755 = vunpack.c.l.b16 %v527
        %v2756 = vunpack.c.l.b16 %v528
        %v2757 = vunpack.c.l.b16 %v529
        %v2758 = vunpack.c.l.b16 %v530
        %v2759 = vunpack.c.l.b16 %v531
        %v2760 = vunpack.c.l.b16 %v532
        %v2761 = vunpack.c.l.b16 %v533
        %v2762 = vunpack.c.l.b16 %v534
        %v2763 = vunpack.c.l.b16 %v535
        %v2764 = vunpack.c.l.b16 %v536
        %v2765 = vunpack.c.l.b16 %v537
        %v2766 = vunpack.c.l.b16 %v538
        %v2767 = vunpack.c.l.b16 %v539
        %v2768 = vunpack.c.l.b16 %v540
        %v2769 = vunpack.c.l.b16 %v541
        %v2770 = vunpack.c.l.b16 %v542
        %v2771 = vunpack.c.l.b16 %v543
        %v2772 = vunpack.c.l.b16 %v544
        %v2773 = vunpack.c.l.b16 %v545
        %v2774 = vunpack.c.l.b16 %v546
        %v2775 = vunpack.c.l.b16 %v547
        %v2776 = vunpack.c.l.b16 %v548
        %v2777 = vunpack.c.l.b16 %v549
        %v2778 = vunpack.c.l.b16 %v550
        %v2779 = vunpack.c.l.b16 %v551
        %v2780 = vunpack.c.l.b16 %v552
        %v2781 = vunpack.c.l.b16 %v553
        %v2782 = vunpack.c.l.b16 %v554
        %v2783 = vunpack.c.l.b16 %v555
        %v2784 = vunpack.c.l.b16 %v556
        %v2785 = vunpack.c.l.b16 %v557
        %v2786 = vunpack.c.l.b16 %v558
        %v2787 = vunpack.c.l.b16 %v559
        %v2788 = vunpack.c.l.b16 %v560
        %v2789 = vunpack.c.l.b16 %v561
        %v2790 = vunpack.c.l.b16 %v562
        %v2791 = vunpack.c.l.b16 %v563
        %v2792 = vunpack.c.l.b16 %v564
        %v2793 = vunpack.c.l.b16 %v565
        %v2794 = vunpack.c.l.b16 %v566
        %v2795 = vunpack.c.l.b16 %v567
        %v2796 = vunpack.c.l.b16 %v568
        %v2797 = vunpack.c.l.b16 %v569
        %v2798 = vunpack.c.l.b16 %v570
        %v2799 = vunpack.c.l.b16 %v571
        %v2800 = vunpack.c.l.b16 %v572
        %v2801 = vunpack.c.l.b16 %v573
        %v2802 = vunpack.c.l.b16 %v574
        %v2803 = vunpack.c.l.b16 %v575
        %v2804 = vunpack.c.l.b16 %v576
        %v2805 = vpack.c.b16 %v2694, %v2693
        %v2806 = vpack.c.b16 %v2696, %v2695
        %v2807 = vpack.c.b16 %v2698, %v2697
        %v2808 = vpack.c.b16 %v2700, %v2699
        %v2809 = vpack.c.b16 %v2702, %v2701
        %v2810 = vpack.c.b16 %v2704, %v2703
        %v2811 = vpack.c.b16 %v2706, %v2705
        %v2812 = vpack.c.b16 %v2708, %v2707
        %v2813 = vpack.c.b16 %v2710, %v2709
        %v2814 = vpack.c.b16 %v2712, %v2711
        %v2815 = vpack.c.b16 %v2714, %v2713
        %v2816 = vpack.c.b16 %v2716, %v2715
        %v2817 = vpack.c.b16 %v2718, %v2717
        %v2818 = vpack.c.b16 %v2720, %v2719
        %v2819 = vpack.c.b16 %v2722, %v2721
        %v2820 = vpack.c.b16 %v2724, %v2723
        %v2821 = vpack.c.b16 %v2726, %v2725
        %v2822 = vpack.c.b16 %v2728, %v2727
        %v2823 = vpack.c.b16 %v2730, %v2729
        %v2824 = vpack.c.b16 %v2732, %v2731
        %v2825 = vpack.c.b16 %v2734, %v2733
        %v2826 = vpack.c.b16 %v2736, %v2735
        %v2827 = vpack.c.b16 %v2738, %v2737
        %v2828 = vpack.c.b16 %v2740, %v2739
        %v2829 = vpack.c.b16 %v2742, %v2741
        %v2830 = vpack.c.b16 %v2744, %v2743
        %v2831 = vpack.c.b16 %v2746, %v2745
        %v2832 = vpack.c.b16 %v2748, %v2747
        %v2833 = vpack.c.b16 %v2750, %v2749
        %v2834 = vpack.c.b16 %v2752, %v2751
        %v2835 = vpack.c.b16 %v2754, %v2753
        %v2836 = vpack.c.b16 %v2756, %v2755
        %v2837 = vpack.c.b16 %v2758, %v2757
        %v2838 = vpack.c.b16 %v2760, %v2759
        %v2839 = vpack.c.b16 %v2762, %v2761
        %v2840 = vpack.c.b16 %v2764, %v2763
        %v2841 = vpack.c.b16 %v2766, %v2765
        %v2842 = vpack.c.b16 %v2768, %v2767
        %v2843 = vpack.c.b16 %v2770, %v2769
        %v2844 = vpack.c.b16 %v2772, %v2771
        %v2845 = vpack.c.b16 %v2774, %v2773
        %v2846 = vpack.c.b16 %v2776, %v2775
        %v2847 = vpack.c.b16 %v2778, %v2777
        %v2848 = vpack.c.b16 %v2780, %v2779
        %v2849 = vpack.c.b16 %v2782, %v2781
        %v2850 = vpack.c.b16 %v2784, %v2783
        %v2851 = vpack.c.b16 %v2786, %v2785
        %v2852 = vpack.c.b16 %v2788, %v2787
        %v2853 = vpack.c.b16 %v2790, %v2789
        %v2854 = vpack.c.b16 %v2792, %v2791
        %v2855 = vpack.c.b16 %v2794, %v2793
        %v2856 = vpack.c.b16 %v2796, %v2795
        %v2857 = vpack.c.b16 %v2798, %v2797
        %v2858 = vpack.c.b16 %v2800, %v2799
        %v2859 = vpack.c.b16 %v2802, %v2801
        %v2860 = vpack.c.b16 %v2804, %v2803
        %2917 = vmatprep.subr.bf16.mxu0 0
        %2918 = vmatpush1.bf16.msra.mxu0 %v2812
        %2919 = vmatprep.subr.bf16.mxu0 0
        %2920 = vmatpush1.bf16.msra.mxu0 %v2811
        %2921 = vmatprep.subr.bf16.mxu0 0
        %2922 = vmatpush1.bf16.msra.mxu0 %v2810
        %2923 = vmatprep.subr.bf16.mxu0 0
        %2924 = vmatpush1.bf16.msra.mxu0 %v2809
        %2925 = vmatprep.subr.bf16.mxu0 0
        %2926 = vmatpush1.bf16.msra.mxu0 %v2808
        %2927 = vmatprep.subr.bf16.mxu0 0
        %2928 = vmatpush1.bf16.msra.mxu0 %v2807
        %2929 = vmatprep.subr.bf16.mxu0 0
        %2930 = vmatpush1.bf16.msra.mxu0 %v2806
        %2931 = vmatprep.subr.bf16.mxu0 0
        %2932 = vmatpush1.bf16.msra.mxu0 %v2805
        %2933 = vmatprep.subr.bf16.mxu0 0
        %2934 = vmatpush2.bf16.msra.mxu0 %v2820
        %2935 = vmatprep.subr.bf16.mxu0 0
        %2936 = vmatpush2.bf16.msra.mxu0 %v2819
        %2937 = vmatprep.subr.bf16.mxu0 0
        %2938 = vmatpush2.bf16.msra.mxu0 %v2818
        %2939 = vmatprep.subr.bf16.mxu0 0
        %2940 = vmatpush2.bf16.msra.mxu0 %v2817
        %2941 = vmatprep.subr.bf16.mxu0 0
        %2942 = vmatpush2.bf16.msra.mxu0 %v2816
        %2943 = vmatprep.subr.bf16.mxu0 0
        %2944 = vmatpush2.bf16.msra.mxu0 %v2815
        %2945 = vmatprep.subr.bf16.mxu0 0
        %2946 = vmatpush2.bf16.msra.mxu0 %v2814
        %2947 = vmatprep.subr.bf16.mxu0 0
        %2948 = vmatpush2.bf16.msra.mxu0 %v2813
        %2949 = vmatprep.mubr.bf16.mxu0 %v2536
        %2950 = vmatmul.mubr.bf16.gmra.mxu0 %v2523
        %v2951 = vpop.f32.mrf.mxu0
        %v2952 = vadd.f32 %v2580, %v2951
        %v2953 = vpop.f32.mrf.mxu0
        %v2954 = vpop.f32.mrf.mxu0
        %v2955 = vadd.f32 %v2580, %v2954
        %v2956 = vpop.f32.mrf.mxu0
        %2957 = vmatprep.mubr.bf16.mxu0 %v2539
        %2958 = vmatmul.mubr.bf16.gmra.mxu0 %v2524
        %v2959 = vpop.f32.mrf.mxu0
        %v2960 = vadd.f32 %v2580, %v2959
        %v2961 = vpop.f32.mrf.mxu0
        %v2962 = vpop.f32.mrf.mxu0
        %v2963 = vpop.f32.mrf.mxu0
        %2964 = vdwg.mxu0
        %2965 = vmatprep.subr.bf16.mxu0 0
        %2966 = vmatpush1.bf16.msra.mxu0 %v2828
        %2967 = vmatprep.subr.bf16.mxu0 0
        %2968 = vmatpush1.bf16.msra.mxu0 %v2827
        %2969 = vmatprep.subr.bf16.mxu0 0
        %2970 = vmatpush1.bf16.msra.mxu0 %v2826
        %2971 = vmatprep.subr.bf16.mxu0 0
        %2972 = vmatpush1.bf16.msra.mxu0 %v2825
        %2973 = vmatprep.subr.bf16.mxu0 0
        %2974 = vmatpush1.bf16.msra.mxu0 %v2824
        %2975 = vmatprep.subr.bf16.mxu0 0
        %2976 = vmatpush1.bf16.msra.mxu0 %v2823
        %2977 = vmatprep.subr.bf16.mxu0 0
        %2978 = vmatpush1.bf16.msra.mxu0 %v2822
        %2979 = vmatprep.subr.bf16.mxu0 0
        %2980 = vmatpush1.bf16.msra.mxu0 %v2821
        %2981 = vmatprep.subr.bf16.mxu0 0
        %2982 = vmatpush2.bf16.msra.mxu0 %v2836
        %2983 = vmatprep.subr.bf16.mxu0 0
        %2984 = vmatpush2.bf16.msra.mxu0 %v2835
        %2985 = vmatprep.subr.bf16.mxu0 0
        %2986 = vmatpush2.bf16.msra.mxu0 %v2834
        %2987 = vmatprep.subr.bf16.mxu0 0
        %2988 = vmatpush2.bf16.msra.mxu0 %v2833
        %2989 = vmatprep.subr.bf16.mxu0 0
        %2990 = vmatpush2.bf16.msra.mxu0 %v2832
        %2991 = vmatprep.subr.bf16.mxu0 0
        %2992 = vmatpush2.bf16.msra.mxu0 %v2831
        %2993 = vmatprep.subr.bf16.mxu0 0
        %2994 = vmatpush2.bf16.msra.mxu0 %v2830
        %2995 = vmatprep.subr.bf16.mxu0 0
        %2996 = vmatpush2.bf16.msra.mxu0 %v2829
        %2997 = vmatprep.mubr.bf16.mxu0 %v2555
        %2998 = vmatmul.mubr.bf16.gmra.mxu0 %v2546
        %v2999 = vpop.f32.mrf.mxu0
        %v3000 = vadd.f32 %v2952, %v2999
        %v3001 = vpop.f32.mrf.mxu0
        %v3002 = vpop.f32.mrf.mxu0
        %v3003 = vadd.f32 %v2955, %v3002
        %v3004 = vpop.f32.mrf.mxu0
        %3005 = vmatprep.mubr.bf16.mxu0 %v2554
        %3006 = vmatmul.mubr.bf16.gmra.mxu0 %v2545
        %v3007 = vpop.f32.mrf.mxu0
        %v3008 = vadd.f32 %v2960, %v3007
        %v3009 = vpop.f32.mrf.mxu0
        %v3010 = vpop.f32.mrf.mxu0
        %v3011 = vpop.f32.mrf.mxu0
        %3012 = vdwg.mxu0
        %3013 = vmatprep.subr.bf16.mxu0 0
        %3014 = vmatpush1.bf16.msra.mxu0 %v2844
        %3015 = vmatprep.subr.bf16.mxu0 0
        %3016 = vmatpush1.bf16.msra.mxu0 %v2843
        %3017 = vmatprep.subr.bf16.mxu0 0
        %3018 = vmatpush1.bf16.msra.mxu0 %v2842
        %3019 = vmatprep.subr.bf16.mxu0 0
        %3020 = vmatpush1.bf16.msra.mxu0 %v2841
        %3021 = vmatprep.subr.bf16.mxu0 0
        %3022 = vmatpush1.bf16.msra.mxu0 %v2840
        %3023 = vmatprep.subr.bf16.mxu0 0
        %3024 = vmatpush1.bf16.msra.mxu0 %v2839
        %3025 = vmatprep.subr.bf16.mxu0 0
        %3026 = vmatpush1.bf16.msra.mxu0 %v2838
        %3027 = vmatprep.subr.bf16.mxu0 0
        %3028 = vmatpush1.bf16.msra.mxu0 %v2837
        %3029 = vmatprep.subr.bf16.mxu0 0
        %3030 = vmatpush2.bf16.msra.mxu0 %v2852
        %3031 = vmatprep.subr.bf16.mxu0 0
        %3032 = vmatpush2.bf16.msra.mxu0 %v2851
        %3033 = vmatprep.subr.bf16.mxu0 0
        %3034 = vmatpush2.bf16.msra.mxu0 %v2850
        %3035 = vmatprep.subr.bf16.mxu0 0
        %3036 = vmatpush2.bf16.msra.mxu0 %v2849
        %3037 = vmatprep.subr.bf16.mxu0 0
        %3038 = vmatpush2.bf16.msra.mxu0 %v2848
        %3039 = vmatprep.subr.bf16.mxu0 0
        %3040 = vmatpush2.bf16.msra.mxu0 %v2847
        %3041 = vmatprep.subr.bf16.mxu0 0
        %3042 = vmatpush2.bf16.msra.mxu0 %v2846
        %3043 = vmatprep.subr.bf16.mxu0 0
        %3044 = vmatpush2.bf16.msra.mxu0 %v2845
        %3045 = vmatprep.mubr.bf16.mxu0 %v2569
        %3046 = vmatmul.mubr.bf16.gmra.mxu0 %v2560
        %v3047 = vpop.f32.mrf.mxu0
        %v3048 = vadd.f32 %v3000, %v3047
        %v3049 = vpop.f32.mrf.mxu0
        %v3050 = vpop.f32.mrf.mxu0
        %v3051 = vadd.f32 %v3003, %v3050
        %v3052 = vpop.f32.mrf.mxu0
        %3053 = vmatprep.mubr.bf16.mxu0 %v2568
        %3054 = vmatmul.mubr.bf16.gmra.mxu0 %v2559
        %v3055 = vpop.f32.mrf.mxu0
        %v3056 = vadd.f32 %v3008, %v3055
        %v3057 = vpop.f32.mrf.mxu0
        %v3058 = vpop.f32.mrf.mxu0
        %v3059 = vpop.f32.mrf.mxu0
        %3060 = vdwg.mxu0
        %3061 = vmatprep.subr.bf16.mxu0 0
        %3062 = vmatpush1.bf16.msra.mxu0 %v2860
        %3063 = vmatprep.subr.bf16.mxu0 0
        %3064 = vmatpush1.bf16.msra.mxu0 %v2859
        %3065 = vmatprep.subr.bf16.mxu0 0
        %3066 = vmatpush1.bf16.msra.mxu0 %v2858
        %3067 = vmatprep.subr.bf16.mxu0 0
        %3068 = vmatpush1.bf16.msra.mxu0 %v2857
        %3069 = vmatprep.subr.bf16.mxu0 0
        %3070 = vmatpush1.bf16.msra.mxu0 %v2856
        %3071 = vmatprep.subr.bf16.mxu0 0
        %3072 = vmatpush1.bf16.msra.mxu0 %v2855
        %3073 = vmatprep.subr.bf16.mxu0 0
        %3074 = vmatpush1.bf16.msra.mxu0 %v2854
        %3075 = vmatprep.subr.bf16.mxu0 0
        %3076 = vmatpush1.bf16.msra.mxu0 %v2853
        %3077 = vmatprep.subr.bf16.mxu0 0
        %3078 = vmatpush2.bf16.msra.mxu0 0
        %3079 = vmatprep.subr.bf16.mxu0 0
        %3080 = vmatpush2.bf16.msra.mxu0 0
        %3081 = vmatprep.subr.bf16.mxu0 0
        %3082 = vmatpush2.bf16.msra.mxu0 0
        %3083 = vmatprep.subr.bf16.mxu0 0
        %3084 = vmatpush2.bf16.msra.mxu0 0
        %3085 = vmatprep.subr.bf16.mxu0 0
        %3086 = vmatpush2.bf16.msra.mxu0 0
        %3087 = vmatprep.subr.bf16.mxu0 0
        %3088 = vmatpush2.bf16.msra.mxu0 0
        %3089 = vmatprep.subr.bf16.mxu0 0
        %3090 = vmatpush2.bf16.msra.mxu0 0
        %3091 = vmatprep.subr.bf16.mxu0 0
        %3092 = vmatpush2.bf16.msra.mxu0 0
        %3093 = vmatprep.mubr.bf16.mxu0 0
        %3094 = vmatmul.mubr.bf16.gmra.mxu0 %v2574
        %v3095 = vpop.f32.mrf.mxu0
        %v3096 = vadd.f32 %v3048, %v3095
        %v3097 = vpop.f32.mrf.mxu0
        %v3098 = vpop.f32.mrf.mxu0
        %v3099 = vadd.f32 %v3051, %v3098
        %v3100 = vpop.f32.mrf.mxu0
        %3101 = vmatprep.mubr.bf16.mxu0 0
        %3102 = vmatmul.mubr.bf16.gmra.mxu0 %v2573
        %v3103 = vpop.f32.mrf.mxu0
        %v3104 = vadd.f32 %v3056, %v3103
        %v3105 = vpop.f32.mrf.mxu0
        %v3106 = vpop.f32.mrf.mxu0
        %v3107 = vpop.f32.mrf.mxu0
        %3108 = vdwg.mxu0
        %v3109 = vpack.c.bf16 %v3099, %v3096
        %v3110 = vpack.c.bf16 %v3104, %v3104
        %v3112 = vshrl.u32 %v3109, 16
        %v3114 = vshll.u32 %v3109, 16
        %v3116 = vrot.slane %v3114, 1
        %v3117 = vor.u32 %v3112, %v3116
        %v3120 = vrot.slane %v3109, 1
        %v3122 = vrot.slane %v3112, 1
        %v3123 = vrot.slane %v3114, 2
        %v3124 = vor.u32 %v3122, %v3123
        %v3126 = vrot.slane %v3109, 2
        %v3128 = vrot.slane %v3112, 2
        %v3129 = vrot.slane %v3114, 3
        %v3130 = vor.u32 %v3128, %v3129
        %v3132 = vrot.slane %v3109, 3
        %v3134 = vrot.slane %v3112, 3
        %v3135 = vrot.slane %v3114, 4
        %v3136 = vor.u32 %v3134, %v3135
        %v3138 = vrot.slane %v3109, 4
        %vm3140 = vsmask.f32 3328
        %v3141 = vrot.slane %v3112, 4
        %v3142 = vrot.slane %v3114, 5
        %v3143 = vor.u32 %v3141, %v3142
        %v3145 = vshll.u32 %v3110, 16
        %v3147 = vrot.slane %v3145, 5
        %v3148 = vsel %vm3140, %v3143, %v3147
        %vm3151 = vcmask 1042432
        %v3152 = vrot.slane %v3109, 5
        %v3153 = vrot.slane %v3110, 5
        %v3154 = vsel %vm3151, %v3152, %v3153
        %vm3156 = vsmask.f32 2304
        %v3157 = vrot.slane %v3112, 5
        %v3158 = vrot.slane %v3114, 6
        %v3159 = vor.u32 %v3157, %v3158
        %v3160 = vshrl.u32 %v3110, 16
        %v3162 = vrot.slane %v3160, 5
        %v3163 = vrot.slane %v3145, 6
        %v3164 = vor.u32 %v3162, %v3163
        %v3165 = vsel %vm3156, %v3159, %v3164
        %vm3167 = vcmask 1041408
        %v3168 = vrot.slane %v3109, 6
        %v3169 = vrot.slane %v3110, 6
        %v3170 = vsel %vm3167, %v3168, %v3169
        %vm3172 = vsmask.f32 1280
        %v3173 = vrot.slane %v3112, 6
        %v3174 = vrot.slane %v3114, 7
        %v3175 = vor.u32 %v3173, %v3174
        %v3176 = vrot.slane %v3160, 6
        %v3177 = vrot.slane %v3145, 7
        %v3178 = vor.u32 %v3176, %v3177
        %v3179 = vsel %vm3172, %v3175, %v3178
        %v3181 = vlaneseq
        %v3182 = vshrl.u32 %v3181, 7
        %v3183 = vsub.s32 4, %v3182
        %v3184 = vrot.slane %v801, %v3183
        %v3409 = vunpack.c.l.b16 %v577
        %v3410 = vunpack.c.l.b16 %v578
        %v3411 = vunpack.c.l.b16 %v579
        %v3412 = vunpack.c.l.b16 %v580
        %v3413 = vunpack.c.l.b16 %v581
        %v3414 = vunpack.c.l.b16 %v582
        %v3415 = vunpack.c.l.b16 %v583
        %v3416 = vunpack.c.l.b16 %v584
        %v3417 = vunpack.c.l.b16 %v585
        %v3418 = vunpack.c.l.b16 %v586
        %v3419 = vunpack.c.l.b16 %v587
        %v3420 = vunpack.c.l.b16 %v588
        %v3421 = vunpack.c.l.b16 %v589
        %v3422 = vunpack.c.l.b16 %v590
        %v3423 = vunpack.c.l.b16 %v591
        %v3424 = vunpack.c.l.b16 %v592
        %v3425 = vunpack.c.l.b16 %v593
        %v3426 = vunpack.c.l.b16 %v594
        %v3427 = vunpack.c.l.b16 %v595
        %v3428 = vunpack.c.l.b16 %v596
        %v3429 = vunpack.c.l.b16 %v597
        %v3430 = vunpack.c.l.b16 %v598
        %v3431 = vunpack.c.l.b16 %v599
        %v3432 = vunpack.c.l.b16 %v600
        %v3433 = vunpack.c.l.b16 %v601
        %v3434 = vunpack.c.l.b16 %v602
        %v3435 = vunpack.c.l.b16 %v603
        %v3436 = vunpack.c.l.b16 %v604
        %v3437 = vunpack.c.l.b16 %v605
        %v3438 = vunpack.c.l.b16 %v606
        %v3439 = vunpack.c.l.b16 %v607
        %v3440 = vunpack.c.l.b16 %v608
        %v3441 = vunpack.c.l.b16 %v609
        %v3442 = vunpack.c.l.b16 %v610
        %v3443 = vunpack.c.l.b16 %v611
        %v3444 = vunpack.c.l.b16 %v612
        %v3445 = vunpack.c.l.b16 %v613
        %v3446 = vunpack.c.l.b16 %v614
        %v3447 = vunpack.c.l.b16 %v615
        %v3448 = vunpack.c.l.b16 %v616
        %v3449 = vunpack.c.l.b16 %v617
        %v3450 = vunpack.c.l.b16 %v618
        %v3451 = vunpack.c.l.b16 %v619
        %v3452 = vunpack.c.l.b16 %v620
        %v3453 = vunpack.c.l.b16 %v621
        %v3454 = vunpack.c.l.b16 %v622
        %v3455 = vunpack.c.l.b16 %v623
        %v3456 = vunpack.c.l.b16 %v624
        %v3457 = vunpack.c.l.b16 %v625
        %v3458 = vunpack.c.l.b16 %v626
        %v3459 = vunpack.c.l.b16 %v627
        %v3460 = vunpack.c.l.b16 %v628
        %v3461 = vunpack.c.l.b16 %v629
        %v3462 = vunpack.c.l.b16 %v630
        %v3463 = vunpack.c.l.b16 %v631
        %v3464 = vunpack.c.l.b16 %v632
        %v3465 = vunpack.c.l.b16 %v633
        %v3466 = vunpack.c.l.b16 %v634
        %v3467 = vunpack.c.l.b16 %v635
        %v3468 = vunpack.c.l.b16 %v636
        %v3469 = vunpack.c.l.b16 %v637
        %v3470 = vunpack.c.l.b16 %v638
        %v3471 = vunpack.c.l.b16 %v639
        %v3472 = vunpack.c.l.b16 %v640
        %v3473 = vunpack.c.l.b16 %v641
        %v3474 = vunpack.c.l.b16 %v642
        %v3475 = vunpack.c.l.b16 %v643
        %v3476 = vunpack.c.l.b16 %v644
        %v3477 = vunpack.c.l.b16 %v645
        %v3478 = vunpack.c.l.b16 %v646
        %v3479 = vunpack.c.l.b16 %v647
        %v3480 = vunpack.c.l.b16 %v648
        %v3481 = vunpack.c.l.b16 %v649
        %v3482 = vunpack.c.l.b16 %v650
        %v3483 = vunpack.c.l.b16 %v651
        %v3484 = vunpack.c.l.b16 %v652
        %v3485 = vunpack.c.l.b16 %v653
        %v3486 = vunpack.c.l.b16 %v654
        %v3487 = vunpack.c.l.b16 %v655
        %v3488 = vunpack.c.l.b16 %v656
        %v3489 = vunpack.c.l.b16 %v657
        %v3490 = vunpack.c.l.b16 %v658
        %v3491 = vunpack.c.l.b16 %v659
        %v3492 = vunpack.c.l.b16 %v660
        %v3493 = vunpack.c.l.b16 %v661
        %v3494 = vunpack.c.l.b16 %v662
        %v3495 = vunpack.c.l.b16 %v663
        %v3496 = vunpack.c.l.b16 %v664
        %v3497 = vunpack.c.l.b16 %v665
        %v3498 = vunpack.c.l.b16 %v666
        %v3499 = vunpack.c.l.b16 %v667
        %v3500 = vunpack.c.l.b16 %v668
        %v3501 = vunpack.c.l.b16 %v669
        %v3502 = vunpack.c.l.b16 %v670
        %v3503 = vunpack.c.l.b16 %v671
        %v3504 = vunpack.c.l.b16 %v672
        %v3505 = vunpack.c.l.b16 %v673
        %v3506 = vunpack.c.l.b16 %v674
        %v3507 = vunpack.c.l.b16 %v675
        %v3508 = vunpack.c.l.b16 %v676
        %v3509 = vunpack.c.l.b16 %v677
        %v3510 = vunpack.c.l.b16 %v678
        %v3511 = vunpack.c.l.b16 %v679
        %v3512 = vunpack.c.l.b16 %v680
        %v3513 = vunpack.c.l.b16 %v681
        %v3514 = vunpack.c.l.b16 %v682
        %v3515 = vunpack.c.l.b16 %v683
        %v3516 = vunpack.c.l.b16 %v684
        %v3517 = vunpack.c.l.b16 %v685
        %v3518 = vunpack.c.l.b16 %v686
        %v3519 = vunpack.c.l.b16 %v687
        %v3520 = vunpack.c.l.b16 %v688
        %v3521 = vunpack.c.l.b16 %v689
        %v3522 = vunpack.c.l.b16 %v690
        %v3523 = vunpack.c.l.b16 %v691
        %v3524 = vunpack.c.l.b16 %v692
        %v3525 = vunpack.c.l.b16 %v693
        %v3526 = vunpack.c.l.b16 %v694
        %v3527 = vunpack.c.l.b16 %v695
        %v3528 = vunpack.c.l.b16 %v696
        %v3529 = vunpack.c.l.b16 %v697
        %v3530 = vunpack.c.l.b16 %v698
        %v3531 = vunpack.c.l.b16 %v699
        %v3532 = vunpack.c.l.b16 %v700
        %v3533 = vunpack.c.l.b16 %v701
        %v3534 = vunpack.c.l.b16 %v702
        %v3535 = vunpack.c.l.b16 %v703
        %v3536 = vunpack.c.l.b16 %v704
        %v3537 = vunpack.c.l.b16 %v705
        %v3538 = vunpack.c.l.b16 %v706
        %v3539 = vunpack.c.l.b16 %v707
        %v3540 = vunpack.c.l.b16 %v708
        %v3541 = vunpack.c.l.b16 %v709
        %v3542 = vunpack.c.l.b16 %v710
        %v3543 = vunpack.c.l.b16 %v711
        %v3544 = vunpack.c.l.b16 %v712
        %v3545 = vunpack.c.l.b16 %v713
        %v3546 = vunpack.c.l.b16 %v714
        %v3547 = vunpack.c.l.b16 %v715
        %v3548 = vunpack.c.l.b16 %v716
        %v3549 = vunpack.c.l.b16 %v717
        %v3550 = vunpack.c.l.b16 %v718
        %v3551 = vunpack.c.l.b16 %v719
        %v3552 = vunpack.c.l.b16 %v720
        %v3553 = vunpack.c.l.b16 %v721
        %v3554 = vunpack.c.l.b16 %v722
        %v3555 = vunpack.c.l.b16 %v723
        %v3556 = vunpack.c.l.b16 %v724
        %v3557 = vunpack.c.l.b16 %v725
        %v3558 = vunpack.c.l.b16 %v726
        %v3559 = vunpack.c.l.b16 %v727
        %v3560 = vunpack.c.l.b16 %v728
        %v3561 = vunpack.c.l.b16 %v729
        %v3562 = vunpack.c.l.b16 %v730
        %v3563 = vunpack.c.l.b16 %v731
        %v3564 = vunpack.c.l.b16 %v732
        %v3565 = vunpack.c.l.b16 %v733
        %v3566 = vunpack.c.l.b16 %v734
        %v3567 = vunpack.c.l.b16 %v735
        %v3568 = vunpack.c.l.b16 %v736
        %v3569 = vunpack.c.l.b16 %v737
        %v3570 = vunpack.c.l.b16 %v738
        %v3571 = vunpack.c.l.b16 %v739
        %v3572 = vunpack.c.l.b16 %v740
        %v3573 = vunpack.c.l.b16 %v741
        %v3574 = vunpack.c.l.b16 %v742
        %v3575 = vunpack.c.l.b16 %v743
        %v3576 = vunpack.c.l.b16 %v744
        %v3577 = vunpack.c.l.b16 %v745
        %v3578 = vunpack.c.l.b16 %v746
        %v3579 = vunpack.c.l.b16 %v747
        %v3580 = vunpack.c.l.b16 %v748
        %v3581 = vunpack.c.l.b16 %v749
        %v3582 = vunpack.c.l.b16 %v750
        %v3583 = vunpack.c.l.b16 %v751
        %v3584 = vunpack.c.l.b16 %v752
        %v3585 = vunpack.c.l.b16 %v753
        %v3586 = vunpack.c.l.b16 %v754
        %v3587 = vunpack.c.l.b16 %v755
        %v3588 = vunpack.c.l.b16 %v756
        %v3589 = vunpack.c.l.b16 %v757
        %v3590 = vunpack.c.l.b16 %v758
        %v3591 = vunpack.c.l.b16 %v759
        %v3592 = vunpack.c.l.b16 %v760
        %v3593 = vunpack.c.l.b16 %v761
        %v3594 = vunpack.c.l.b16 %v762
        %v3595 = vunpack.c.l.b16 %v763
        %v3596 = vunpack.c.l.b16 %v764
        %v3597 = vunpack.c.l.b16 %v765
        %v3598 = vunpack.c.l.b16 %v766
        %v3599 = vunpack.c.l.b16 %v767
        %v3600 = vunpack.c.l.b16 %v768
        %v3601 = vunpack.c.l.b16 %v769
        %v3602 = vunpack.c.l.b16 %v770
        %v3603 = vunpack.c.l.b16 %v771
        %v3604 = vunpack.c.l.b16 %v772
        %v3605 = vunpack.c.l.b16 %v773
        %v3606 = vunpack.c.l.b16 %v774
        %v3607 = vunpack.c.l.b16 %v775
        %v3608 = vunpack.c.l.b16 %v776
        %v3609 = vunpack.c.l.b16 %v777
        %v3610 = vunpack.c.l.b16 %v778
        %v3611 = vunpack.c.l.b16 %v779
        %v3612 = vunpack.c.l.b16 %v780
        %v3613 = vunpack.c.l.b16 %v781
        %v3614 = vunpack.c.l.b16 %v782
        %v3615 = vunpack.c.l.b16 %v783
        %v3616 = vunpack.c.l.b16 %v784
        %v3617 = vunpack.c.l.b16 %v785
        %v3618 = vunpack.c.l.b16 %v786
        %v3619 = vunpack.c.l.b16 %v787
        %v3620 = vunpack.c.l.b16 %v788
        %v3621 = vunpack.c.l.b16 %v789
        %v3622 = vunpack.c.l.b16 %v790
        %v3623 = vunpack.c.l.b16 %v791
        %v3624 = vunpack.c.l.b16 %v792
        %v3625 = vunpack.c.l.b16 %v793
        %v3626 = vunpack.c.l.b16 %v794
        %v3627 = vunpack.c.l.b16 %v795
        %v3628 = vunpack.c.l.b16 %v796
        %v3629 = vunpack.c.l.b16 %v797
        %v3630 = vunpack.c.l.b16 %v798
        %v3631 = vunpack.c.l.b16 %v799
        %v3632 = vunpack.c.l.b16 %v800
        %v3633 = vpack.c.b16 %v3410, %v3409
        %v3634 = vpack.c.b16 %v3412, %v3411
        %v3635 = vpack.c.b16 %v3414, %v3413
        %v3636 = vpack.c.b16 %v3416, %v3415
        %v3637 = vpack.c.b16 %v3418, %v3417
        %v3638 = vpack.c.b16 %v3420, %v3419
        %v3639 = vpack.c.b16 %v3422, %v3421
        %v3640 = vpack.c.b16 %v3424, %v3423
        %v3641 = vpack.c.b16 %v3426, %v3425
        %v3642 = vpack.c.b16 %v3428, %v3427
        %v3643 = vpack.c.b16 %v3430, %v3429
        %v3644 = vpack.c.b16 %v3432, %v3431
        %v3645 = vpack.c.b16 %v3434, %v3433
        %v3646 = vpack.c.b16 %v3436, %v3435
        %v3647 = vpack.c.b16 %v3438, %v3437
        %v3648 = vpack.c.b16 %v3440, %v3439
        %v3649 = vpack.c.b16 %v3442, %v3441
        %v3650 = vpack.c.b16 %v3444, %v3443
        %v3651 = vpack.c.b16 %v3446, %v3445
        %v3652 = vpack.c.b16 %v3448, %v3447
        %v3653 = vpack.c.b16 %v3450, %v3449
        %v3654 = vpack.c.b16 %v3452, %v3451
        %v3655 = vpack.c.b16 %v3454, %v3453
        %v3656 = vpack.c.b16 %v3456, %v3455
        %v3657 = vpack.c.b16 %v3458, %v3457
        %v3658 = vpack.c.b16 %v3460, %v3459
        %v3659 = vpack.c.b16 %v3462, %v3461
        %v3660 = vpack.c.b16 %v3464, %v3463
        %v3661 = vpack.c.b16 %v3466, %v3465
        %v3662 = vpack.c.b16 %v3468, %v3467
        %v3663 = vpack.c.b16 %v3470, %v3469
        %v3664 = vpack.c.b16 %v3472, %v3471
        %v3665 = vpack.c.b16 %v3474, %v3473
        %v3666 = vpack.c.b16 %v3476, %v3475
        %v3667 = vpack.c.b16 %v3478, %v3477
        %v3668 = vpack.c.b16 %v3480, %v3479
        %v3669 = vpack.c.b16 %v3482, %v3481
        %v3670 = vpack.c.b16 %v3484, %v3483
        %v3671 = vpack.c.b16 %v3486, %v3485
        %v3672 = vpack.c.b16 %v3488, %v3487
        %v3673 = vpack.c.b16 %v3490, %v3489
        %v3674 = vpack.c.b16 %v3492, %v3491
        %v3675 = vpack.c.b16 %v3494, %v3493
        %v3676 = vpack.c.b16 %v3496, %v3495
        %v3677 = vpack.c.b16 %v3498, %v3497
        %v3678 = vpack.c.b16 %v3500, %v3499
        %v3679 = vpack.c.b16 %v3502, %v3501
        %v3680 = vpack.c.b16 %v3504, %v3503
        %v3681 = vpack.c.b16 %v3506, %v3505
        %v3682 = vpack.c.b16 %v3508, %v3507
        %v3683 = vpack.c.b16 %v3510, %v3509
        %v3684 = vpack.c.b16 %v3512, %v3511
        %v3685 = vpack.c.b16 %v3514, %v3513
        %v3686 = vpack.c.b16 %v3516, %v3515
        %v3687 = vpack.c.b16 %v3518, %v3517
        %v3688 = vpack.c.b16 %v3520, %v3519
        %v3689 = vpack.c.b16 %v3522, %v3521
        %v3690 = vpack.c.b16 %v3524, %v3523
        %v3691 = vpack.c.b16 %v3526, %v3525
        %v3692 = vpack.c.b16 %v3528, %v3527
        %v3693 = vpack.c.b16 %v3530, %v3529
        %v3694 = vpack.c.b16 %v3532, %v3531
        %v3695 = vpack.c.b16 %v3534, %v3533
        %v3696 = vpack.c.b16 %v3536, %v3535
        %v3697 = vpack.c.b16 %v3538, %v3537
        %v3698 = vpack.c.b16 %v3540, %v3539
        %v3699 = vpack.c.b16 %v3542, %v3541
        %v3700 = vpack.c.b16 %v3544, %v3543
        %v3701 = vpack.c.b16 %v3546, %v3545
        %v3702 = vpack.c.b16 %v3548, %v3547
        %v3703 = vpack.c.b16 %v3550, %v3549
        %v3704 = vpack.c.b16 %v3552, %v3551
        %v3705 = vpack.c.b16 %v3554, %v3553
        %v3706 = vpack.c.b16 %v3556, %v3555
        %v3707 = vpack.c.b16 %v3558, %v3557
        %v3708 = vpack.c.b16 %v3560, %v3559
        %v3709 = vpack.c.b16 %v3562, %v3561
        %v3710 = vpack.c.b16 %v3564, %v3563
        %v3711 = vpack.c.b16 %v3566, %v3565
        %v3712 = vpack.c.b16 %v3568, %v3567
        %v3713 = vpack.c.b16 %v3570, %v3569
        %v3714 = vpack.c.b16 %v3572, %v3571
        %v3715 = vpack.c.b16 %v3574, %v3573
        %v3716 = vpack.c.b16 %v3576, %v3575
        %v3717 = vpack.c.b16 %v3578, %v3577
        %v3718 = vpack.c.b16 %v3580, %v3579
        %v3719 = vpack.c.b16 %v3582, %v3581
        %v3720 = vpack.c.b16 %v3584, %v3583
        %v3721 = vpack.c.b16 %v3586, %v3585
        %v3722 = vpack.c.b16 %v3588, %v3587
        %v3723 = vpack.c.b16 %v3590, %v3589
        %v3724 = vpack.c.b16 %v3592, %v3591
        %v3725 = vpack.c.b16 %v3594, %v3593
        %v3726 = vpack.c.b16 %v3596, %v3595
        %v3727 = vpack.c.b16 %v3598, %v3597
        %v3728 = vpack.c.b16 %v3600, %v3599
        %v3729 = vpack.c.b16 %v3602, %v3601
        %v3730 = vpack.c.b16 %v3604, %v3603
        %v3731 = vpack.c.b16 %v3606, %v3605
        %v3732 = vpack.c.b16 %v3608, %v3607
        %v3733 = vpack.c.b16 %v3610, %v3609
        %v3734 = vpack.c.b16 %v3612, %v3611
        %v3735 = vpack.c.b16 %v3614, %v3613
        %v3736 = vpack.c.b16 %v3616, %v3615
        %v3737 = vpack.c.b16 %v3618, %v3617
        %v3738 = vpack.c.b16 %v3620, %v3619
        %v3739 = vpack.c.b16 %v3622, %v3621
        %v3740 = vpack.c.b16 %v3624, %v3623
        %v3741 = vpack.c.b16 %v3626, %v3625
        %v3742 = vpack.c.b16 %v3628, %v3627
        %v3743 = vpack.c.b16 %v3630, %v3629
        %v3744 = vpack.c.b16 %v3632, %v3631
        %3857 = vmatprep.subr.bf16.mxu0 0
        %3858 = vmatpush1.bf16.msra.mxu0 %v3640
        %3859 = vmatprep.subr.bf16.mxu0 0
        %3860 = vmatpush1.bf16.msra.mxu0 %v3639
        %3861 = vmatprep.subr.bf16.mxu0 0
        %3862 = vmatpush1.bf16.msra.mxu0 %v3638
        %3863 = vmatprep.subr.bf16.mxu0 0
        %3864 = vmatpush1.bf16.msra.mxu0 %v3637
        %3865 = vmatprep.subr.bf16.mxu0 0
        %3866 = vmatpush1.bf16.msra.mxu0 %v3636
        %3867 = vmatprep.subr.bf16.mxu0 0
        %3868 = vmatpush1.bf16.msra.mxu0 %v3635
        %3869 = vmatprep.subr.bf16.mxu0 0
        %3870 = vmatpush1.bf16.msra.mxu0 %v3634
        %3871 = vmatprep.subr.bf16.mxu0 0
        %3872 = vmatpush1.bf16.msra.mxu0 %v3633
        %3873 = vmatprep.subr.bf16.mxu0 0
        %3874 = vmatpush2.bf16.msra.mxu0 %v3648
        %3875 = vmatprep.subr.bf16.mxu0 0
        %3876 = vmatpush2.bf16.msra.mxu0 %v3647
        %3877 = vmatprep.subr.bf16.mxu0 0
        %3878 = vmatpush2.bf16.msra.mxu0 %v3646
        %3879 = vmatprep.subr.bf16.mxu0 0
        %3880 = vmatpush2.bf16.msra.mxu0 %v3645
        %3881 = vmatprep.subr.bf16.mxu0 0
        %3882 = vmatpush2.bf16.msra.mxu0 %v3644
        %3883 = vmatprep.subr.bf16.mxu0 0
        %3884 = vmatpush2.bf16.msra.mxu0 %v3643
        %3885 = vmatprep.subr.bf16.mxu0 0
        %3886 = vmatpush2.bf16.msra.mxu0 %v3642
        %3887 = vmatprep.subr.bf16.mxu0 0
        %3888 = vmatpush2.bf16.msra.mxu0 %v3641
        %3889 = vmatprep.mubr.bf16.mxu0 %v3117
        %3890 = vmatmul.mubr.bf16.gmra.mxu0 %v3109
        %v3891 = vpop.f32.mrf.mxu0
        %v3892 = vadd.f32 %v3184, %v3891
        %v3893 = vpop.f32.mrf.mxu0
        %v3894 = vpop.f32.mrf.mxu0
        %v3895 = vpop.f32.mrf.mxu0
        %3896 = vdwg.mxu0
        %3897 = vmatprep.subr.bf16.mxu0 0
        %3898 = vmatpush1.bf16.msra.mxu0 %v3656
        %3899 = vmatprep.subr.bf16.mxu0 0
        %3900 = vmatpush1.bf16.msra.mxu0 %v3655
        %3901 = vmatprep.subr.bf16.mxu0 0
        %3902 = vmatpush1.bf16.msra.mxu0 %v3654
        %3903 = vmatprep.subr.bf16.mxu0 0
        %3904 = vmatpush1.bf16.msra.mxu0 %v3653
        %3905 = vmatprep.subr.bf16.mxu0 0
        %3906 = vmatpush1.bf16.msra.mxu0 %v3652
        %3907 = vmatprep.subr.bf16.mxu0 0
        %3908 = vmatpush1.bf16.msra.mxu0 %v3651
        %3909 = vmatprep.subr.bf16.mxu0 0
        %3910 = vmatpush1.bf16.msra.mxu0 %v3650
        %3911 = vmatprep.subr.bf16.mxu0 0
        %3912 = vmatpush1.bf16.msra.mxu0 %v3649
        %3913 = vmatprep.subr.bf16.mxu0 0
        %3914 = vmatpush2.bf16.msra.mxu0 %v3664
        %3915 = vmatprep.subr.bf16.mxu0 0
        %3916 = vmatpush2.bf16.msra.mxu0 %v3663
        %3917 = vmatprep.subr.bf16.mxu0 0
        %3918 = vmatpush2.bf16.msra.mxu0 %v3662
        %3919 = vmatprep.subr.bf16.mxu0 0
        %3920 = vmatpush2.bf16.msra.mxu0 %v3661
        %3921 = vmatprep.subr.bf16.mxu0 0
        %3922 = vmatpush2.bf16.msra.mxu0 %v3660
        %3923 = vmatprep.subr.bf16.mxu0 0
        %3924 = vmatpush2.bf16.msra.mxu0 %v3659
        %3925 = vmatprep.subr.bf16.mxu0 0
        %3926 = vmatpush2.bf16.msra.mxu0 %v3658
        %3927 = vmatprep.subr.bf16.mxu0 0
        %3928 = vmatpush2.bf16.msra.mxu0 %v3657
        %3929 = vmatprep.mubr.bf16.mxu0 %v3124
        %3930 = vmatmul.mubr.bf16.gmra.mxu0 %v3120
        %v3931 = vpop.f32.mrf.mxu0
        %v3932 = vadd.f32 %v3892, %v3931
        %v3933 = vpop.f32.mrf.mxu0
        %v3934 = vpop.f32.mrf.mxu0
        %v3935 = vpop.f32.mrf.mxu0
        %3936 = vdwg.mxu0
        %3937 = vmatprep.subr.bf16.mxu0 0
        %3938 = vmatpush1.bf16.msra.mxu0 %v3672
        %3939 = vmatprep.subr.bf16.mxu0 0
        %3940 = vmatpush1.bf16.msra.mxu0 %v3671
        %3941 = vmatprep.subr.bf16.mxu0 0
        %3942 = vmatpush1.bf16.msra.mxu0 %v3670
        %3943 = vmatprep.subr.bf16.mxu0 0
        %3944 = vmatpush1.bf16.msra.mxu0 %v3669
        %3945 = vmatprep.subr.bf16.mxu0 0
        %3946 = vmatpush1.bf16.msra.mxu0 %v3668
        %3947 = vmatprep.subr.bf16.mxu0 0
        %3948 = vmatpush1.bf16.msra.mxu0 %v3667
        %3949 = vmatprep.subr.bf16.mxu0 0
        %3950 = vmatpush1.bf16.msra.mxu0 %v3666
        %3951 = vmatprep.subr.bf16.mxu0 0
        %3952 = vmatpush1.bf16.msra.mxu0 %v3665
        %3953 = vmatprep.subr.bf16.mxu0 0
        %3954 = vmatpush2.bf16.msra.mxu0 %v3680
        %3955 = vmatprep.subr.bf16.mxu0 0
        %3956 = vmatpush2.bf16.msra.mxu0 %v3679
        %3957 = vmatprep.subr.bf16.mxu0 0
        %3958 = vmatpush2.bf16.msra.mxu0 %v3678
        %3959 = vmatprep.subr.bf16.mxu0 0
        %3960 = vmatpush2.bf16.msra.mxu0 %v3677
        %3961 = vmatprep.subr.bf16.mxu0 0
        %3962 = vmatpush2.bf16.msra.mxu0 %v3676
        %3963 = vmatprep.subr.bf16.mxu0 0
        %3964 = vmatpush2.bf16.msra.mxu0 %v3675
        %3965 = vmatprep.subr.bf16.mxu0 0
        %3966 = vmatpush2.bf16.msra.mxu0 %v3674
        %3967 = vmatprep.subr.bf16.mxu0 0
        %3968 = vmatpush2.bf16.msra.mxu0 %v3673
        %3969 = vmatprep.mubr.bf16.mxu0 %v3130
        %3970 = vmatmul.mubr.bf16.gmra.mxu0 %v3126
        %v3971 = vpop.f32.mrf.mxu0
        %v3972 = vadd.f32 %v3932, %v3971
        %v3973 = vpop.f32.mrf.mxu0
        %v3974 = vpop.f32.mrf.mxu0
        %v3975 = vpop.f32.mrf.mxu0
        %3976 = vdwg.mxu0
        %3977 = vmatprep.subr.bf16.mxu0 0
        %3978 = vmatpush1.bf16.msra.mxu0 %v3688
        %3979 = vmatprep.subr.bf16.mxu0 0
        %3980 = vmatpush1.bf16.msra.mxu0 %v3687
        %3981 = vmatprep.subr.bf16.mxu0 0
        %3982 = vmatpush1.bf16.msra.mxu0 %v3686
        %3983 = vmatprep.subr.bf16.mxu0 0
        %3984 = vmatpush1.bf16.msra.mxu0 %v3685
        %3985 = vmatprep.subr.bf16.mxu0 0
        %3986 = vmatpush1.bf16.msra.mxu0 %v3684
        %3987 = vmatprep.subr.bf16.mxu0 0
        %3988 = vmatpush1.bf16.msra.mxu0 %v3683
        %3989 = vmatprep.subr.bf16.mxu0 0
        %3990 = vmatpush1.bf16.msra.mxu0 %v3682
        %3991 = vmatprep.subr.bf16.mxu0 0
        %3992 = vmatpush1.bf16.msra.mxu0 %v3681
        %3993 = vmatprep.subr.bf16.mxu0 0
        %3994 = vmatpush2.bf16.msra.mxu0 %v3696
        %3995 = vmatprep.subr.bf16.mxu0 0
        %3996 = vmatpush2.bf16.msra.mxu0 %v3695
        %3997 = vmatprep.subr.bf16.mxu0 0
        %3998 = vmatpush2.bf16.msra.mxu0 %v3694
        %3999 = vmatprep.subr.bf16.mxu0 0
        %4000 = vmatpush2.bf16.msra.mxu0 %v3693
        %4001 = vmatprep.subr.bf16.mxu0 0
        %4002 = vmatpush2.bf16.msra.mxu0 %v3692
        %4003 = vmatprep.subr.bf16.mxu0 0
        %4004 = vmatpush2.bf16.msra.mxu0 %v3691
        %4005 = vmatprep.subr.bf16.mxu0 0
        %4006 = vmatpush2.bf16.msra.mxu0 %v3690
        %4007 = vmatprep.subr.bf16.mxu0 0
        %4008 = vmatpush2.bf16.msra.mxu0 %v3689
        %4009 = vmatprep.mubr.bf16.mxu0 %v3136
        %4010 = vmatmul.mubr.bf16.gmra.mxu0 %v3132
        %v4011 = vpop.f32.mrf.mxu0
        %v4012 = vadd.f32 %v3972, %v4011
        %v4013 = vpop.f32.mrf.mxu0
        %v4014 = vpop.f32.mrf.mxu0
        %v4015 = vpop.f32.mrf.mxu0
        %4016 = vdwg.mxu0
        %4017 = vmatprep.subr.bf16.mxu0 0
        %4018 = vmatpush1.bf16.msra.mxu0 %v3704
        %4019 = vmatprep.subr.bf16.mxu0 0
        %4020 = vmatpush1.bf16.msra.mxu0 %v3703
        %4021 = vmatprep.subr.bf16.mxu0 0
        %4022 = vmatpush1.bf16.msra.mxu0 %v3702
        %4023 = vmatprep.subr.bf16.mxu0 0
        %4024 = vmatpush1.bf16.msra.mxu0 %v3701
        %4025 = vmatprep.subr.bf16.mxu0 0
        %4026 = vmatpush1.bf16.msra.mxu0 %v3700
        %4027 = vmatprep.subr.bf16.mxu0 0
        %4028 = vmatpush1.bf16.msra.mxu0 %v3699
        %4029 = vmatprep.subr.bf16.mxu0 0
        %4030 = vmatpush1.bf16.msra.mxu0 %v3698
        %4031 = vmatprep.subr.bf16.mxu0 0
        %4032 = vmatpush1.bf16.msra.mxu0 %v3697
        %4033 = vmatprep.subr.bf16.mxu0 0
        %4034 = vmatpush2.bf16.msra.mxu0 %v3712
        %4035 = vmatprep.subr.bf16.mxu0 0
        %4036 = vmatpush2.bf16.msra.mxu0 %v3711
        %4037 = vmatprep.subr.bf16.mxu0 0
        %4038 = vmatpush2.bf16.msra.mxu0 %v3710
        %4039 = vmatprep.subr.bf16.mxu0 0
        %4040 = vmatpush2.bf16.msra.mxu0 %v3709
        %4041 = vmatprep.subr.bf16.mxu0 0
        %4042 = vmatpush2.bf16.msra.mxu0 %v3708
        %4043 = vmatprep.subr.bf16.mxu0 0
        %4044 = vmatpush2.bf16.msra.mxu0 %v3707
        %4045 = vmatprep.subr.bf16.mxu0 0
        %4046 = vmatpush2.bf16.msra.mxu0 %v3706
        %4047 = vmatprep.subr.bf16.mxu0 0
        %4048 = vmatpush2.bf16.msra.mxu0 %v3705
        %4049 = vmatprep.mubr.bf16.mxu0 %v3148
        %4050 = vmatmul.mubr.bf16.gmra.mxu0 %v3138
        %v4051 = vpop.f32.mrf.mxu0
        %v4052 = vadd.f32 %v4012, %v4051
        %v4053 = vpop.f32.mrf.mxu0
        %v4054 = vpop.f32.mrf.mxu0
        %v4055 = vpop.f32.mrf.mxu0
        %4056 = vdwg.mxu0
        %4057 = vmatprep.subr.bf16.mxu0 0
        %4058 = vmatpush1.bf16.msra.mxu0 %v3720
        %4059 = vmatprep.subr.bf16.mxu0 0
        %4060 = vmatpush1.bf16.msra.mxu0 %v3719
        %4061 = vmatprep.subr.bf16.mxu0 0
        %4062 = vmatpush1.bf16.msra.mxu0 %v3718
        %4063 = vmatprep.subr.bf16.mxu0 0
        %4064 = vmatpush1.bf16.msra.mxu0 %v3717
        %4065 = vmatprep.subr.bf16.mxu0 0
        %4066 = vmatpush1.bf16.msra.mxu0 %v3716
        %4067 = vmatprep.subr.bf16.mxu0 0
        %4068 = vmatpush1.bf16.msra.mxu0 %v3715
        %4069 = vmatprep.subr.bf16.mxu0 0
        %4070 = vmatpush1.bf16.msra.mxu0 %v3714
        %4071 = vmatprep.subr.bf16.mxu0 0
        %4072 = vmatpush1.bf16.msra.mxu0 %v3713
        %4073 = vmatprep.subr.bf16.mxu0 0
        %4074 = vmatpush2.bf16.msra.mxu0 %v3728
        %4075 = vmatprep.subr.bf16.mxu0 0
        %4076 = vmatpush2.bf16.msra.mxu0 %v3727
        %4077 = vmatprep.subr.bf16.mxu0 0
        %4078 = vmatpush2.bf16.msra.mxu0 %v3726
        %4079 = vmatprep.subr.bf16.mxu0 0
        %4080 = vmatpush2.bf16.msra.mxu0 %v3725
        %4081 = vmatprep.subr.bf16.mxu0 0
        %4082 = vmatpush2.bf16.msra.mxu0 %v3724
        %4083 = vmatprep.subr.bf16.mxu0 0
        %4084 = vmatpush2.bf16.msra.mxu0 %v3723
        %4085 = vmatprep.subr.bf16.mxu0 0
        %4086 = vmatpush2.bf16.msra.mxu0 %v3722
        %4087 = vmatprep.subr.bf16.mxu0 0
        %4088 = vmatpush2.bf16.msra.mxu0 %v3721
        %4089 = vmatprep.mubr.bf16.mxu0 %v3165
        %4090 = vmatmul.mubr.bf16.gmra.mxu0 %v3154
        %v4091 = vpop.f32.mrf.mxu0
        %v4092 = vadd.f32 %v4052, %v4091
        %v4093 = vpop.f32.mrf.mxu0
        %v4094 = vpop.f32.mrf.mxu0
        %v4095 = vpop.f32.mrf.mxu0
        %4096 = vdwg.mxu0
        %4097 = vmatprep.subr.bf16.mxu0 0
        %4098 = vmatpush1.bf16.msra.mxu0 %v3736
        %4099 = vmatprep.subr.bf16.mxu0 0
        %4100 = vmatpush1.bf16.msra.mxu0 %v3735
        %4101 = vmatprep.subr.bf16.mxu0 0
        %4102 = vmatpush1.bf16.msra.mxu0 %v3734
        %4103 = vmatprep.subr.bf16.mxu0 0
        %4104 = vmatpush1.bf16.msra.mxu0 %v3733
        %4105 = vmatprep.subr.bf16.mxu0 0
        %4106 = vmatpush1.bf16.msra.mxu0 %v3732
        %4107 = vmatprep.subr.bf16.mxu0 0
        %4108 = vmatpush1.bf16.msra.mxu0 %v3731
        %4109 = vmatprep.subr.bf16.mxu0 0
        %4110 = vmatpush1.bf16.msra.mxu0 %v3730
        %4111 = vmatprep.subr.bf16.mxu0 0
        %4112 = vmatpush1.bf16.msra.mxu0 %v3729
        %4113 = vmatprep.subr.bf16.mxu0 0
        %4114 = vmatpush2.bf16.msra.mxu0 %v3744
        %4115 = vmatprep.subr.bf16.mxu0 0
        %4116 = vmatpush2.bf16.msra.mxu0 %v3743
        %4117 = vmatprep.subr.bf16.mxu0 0
        %4118 = vmatpush2.bf16.msra.mxu0 %v3742
        %4119 = vmatprep.subr.bf16.mxu0 0
        %4120 = vmatpush2.bf16.msra.mxu0 %v3741
        %4121 = vmatprep.subr.bf16.mxu0 0
        %4122 = vmatpush2.bf16.msra.mxu0 %v3740
        %4123 = vmatprep.subr.bf16.mxu0 0
        %4124 = vmatpush2.bf16.msra.mxu0 %v3739
        %4125 = vmatprep.subr.bf16.mxu0 0
        %4126 = vmatpush2.bf16.msra.mxu0 %v3738
        %4127 = vmatprep.subr.bf16.mxu0 0
        %4128 = vmatpush2.bf16.msra.mxu0 %v3737
        %4129 = vmatprep.mubr.bf16.mxu0 %v3179
        %4130 = vmatmul.mubr.bf16.gmra.mxu0 %v3170
        %v4131 = vpop.f32.mrf.mxu0
        %v4132 = vadd.f32 %v4092, %v4131
        %v4133 = vpop.f32.mrf.mxu0
        %v4134 = vpop.f32.mrf.mxu0
        %v4135 = vpop.f32.mrf.mxu0
        %4136 = vdwg.mxu0
        %4137 = vst [vmem:[%s223] sm:$0xff] %v4132
        %p4138 = scmp.lt.s32.totalorder %s17, 1
        %s4139 = scalar_select %p4138, %s17, 1
        %s4140 = smul.addr %s4139, 8
        %s4141 = scalar_lea.vmem %s4, %s4140
        // Predicated region
        $region45: #{decoder_forward.1} parent=35 // pred_check
          %p4142 = pneg %p124
        $region46: #{decoder_forward.1} parent=35 // pred_check_branch
          %4144 = sbr.rel (%p4142) target = $region48
        $region47: #{decoder_forward.1} parent=35 // pred_region
          _
        $region48: #{decoder_forward.1} parent=35 // pred_fallthru
          _
      $region36: #{decoder_forward.1} parent=5 // pred_fallthru
        _
      %p4145 = scmp.le.s32.totalorder 2, %s12
      // Predicated region
      $region49: #{decoder_forward.1} parent=5 // pred_check
        %p4146 = pneg %p4145
      $region50: #{decoder_forward.1} parent=5 // pred_check_branch
        %4148 = sbr.rel (%p4146) target = $region52
      $region51: #{decoder_forward.1} parent=5 // pred_region
        %s4149 = ssub.s32 %s12, 2
        // Predicated region
        $region53: #{decoder_forward.1} parent=51 // pred_check
          %p4150 = pneg %p130
        $region54: #{decoder_forward.1} parent=51 // pred_check_branch
          %4152 = sbr.rel (%p4150) target = $region56
        $region55: #{decoder_forward.1} parent=51 // pred_region
          %p4153 = scmp.lt.s32.totalorder %s18, 1
          %s4154 = scalar_select %p4153, %s18, 1
          %s4155 = smul.addr %s4154, 8
          %s4156 = scalar_lea.vmem %s4, %s4155
        $region56: #{decoder_forward.1} parent=51 // pred_fallthru
          _
      $region52: #{decoder_forward.1} parent=5 // pred_fallthru
        _
    $region6: #{decoder_forward.1} parent=1 // loop_footer
      %s16 = sadd.s32 1, %s12
    $region7: #{decoder_forward.1} parent=1 // loop_footer_branch
      %11 = sbr.rel target = $region3
    $region8: #{decoder_forward.1} parent=1 // loop_exit
      _
    %4157 = vsyncpa [#allocation3], 1
    %s4158 = scalar_lea.sflag [#allocation3], 1
    %4159 = vsyncpa %s4158, 1
    %4160 = vsyncpa [#allocation5], 1

</llo_original>
